<compile_context>
chip_gen: v7x
topology: tpu7x:2x2x1
jax: 0.10.0
libtpu: 0.0.40
codegen_flags: <defaults>
</compile_context>

<pallas_src>
import functools

import jax
import jax.numpy as jnp
from jax.experimental import pallas as pl
from jax.experimental.pallas import tpu as pltpu

_VMEM_LIMIT = 40 * 1024 * 1024  # fits v7x (64 MiB physical) with headroom


def _round_up(x, m):
    return ((x + m - 1) // m) * m


def _choose_row_tile(m, k, n, out_bytes):
    """Largest row tile whose double-buffered footprint stays under ~20 MiB."""
    budget = 20 * 1024 * 1024
    tm = 4096
    while tm > 512:
        foot = 2 * tm * k * 2 + 2 * tm * n * out_bytes + 2 * k * n * 2
        if foot <= budget:
            break
        tm //= 2
    if m <= tm:
        mp = _round_up(m, 16)  # 16-aligned keeps bf16 sublane tiling happy
        return mp, mp          # single grid step, block == full array
    return _round_up(m, tm), tm


# --------------- stride-2 layers: im2col + fused MXU kernel -----------------
def _conv_s2_kernel(a_ref, w_ref, b_ref, *out_refs, epilogue, want_stats):
    raw = jnp.dot(a_ref[...], w_ref[...], preferred_element_type=jnp.float32)
    if want_stats:
        o_ref, s_ref, q_ref = out_refs
        # Pre-bias stats: zero (padding) A rows contribute nothing -> no mask
        # work, and per-step partial sums keep the grid axis "parallel".
        s_ref[0] = jnp.sum(raw, axis=0, keepdims=True)
        q_ref[0] = jnp.sum(raw * raw, axis=0, keepdims=True)
    else:
        (o_ref,) = out_refs
    acc = raw + b_ref[...]
    if epilogue == "leaky":
        acc = jnp.where(acc >= 0, acc, 0.2 * acc)
    elif epilogue == "sigmoid":
        acc = jax.nn.sigmoid(acc)
    o_ref[...] = acc.astype(o_ref.dtype)


def _fused_conv_s2(a, wmat, bias, *, out_dtype, epilogue="none",
                   want_stats=False):
    """a: (M, K) bf16 patches; wmat: (K, N) bf16; bias: (N,) f32."""
    m, k = a.shape
    n = wmat.shape[1]
    mp, tm = _choose_row_tile(m, k, n, jnp.dtype(out_dtype).itemsize)
    if mp != m:
        a = jnp.pad(a, ((0, mp - m), (0, 0)))
    nsteps = mp // tm

    kern = functools.partial(_conv_s2_kernel, epilogue=epilogue,
                             want_stats=want_stats)
    in_specs = [
        pl.BlockSpec((tm, k), lambda i: (i, 0)),
        # TODO(synk): constant-index W/bias blocks are double-buffered by
        # default; pl.Buffered(1) would save ~K*N*2B of VMEM per layer.
        pl.BlockSpec((k, n), lambda i: (0, 0)),
        pl.BlockSpec((1, n), lambda i: (0, 0)),
    ]
    cparams = pltpu.CompilerParams(
        dimension_semantics=("parallel",),
        vmem_limit_bytes=_VMEM_LIMIT,
    )

    if want_stats:
        out_shape = (jax.ShapeDtypeStruct((mp, n), out_dtype),
                     jax.ShapeDtypeStruct((nsteps, 1, n), jnp.float32),
                     jax.ShapeDtypeStruct((nsteps, 1, n), jnp.float32))
        out_specs = (pl.BlockSpec((tm, n), lambda i: (i, 0)),
                     pl.BlockSpec((1, 1, n), lambda i: (i, 0, 0)),
                     pl.BlockSpec((1, 1, n), lambda i: (i, 0, 0)))
        out, s, q = pl.pallas_call(
            kern, out_shape=out_shape, grid=(nsteps,),
            in_specs=in_specs, out_specs=out_specs,
            compiler_params=cparams,
        )(a, wmat, bias.reshape(1, n))
        if mp != m:
            out = out[:m]
        return out, jnp.sum(s, axis=0)[0], jnp.sum(q, axis=0)[0]

    out = pl.pallas_call(
        kern, out_shape=jax.ShapeDtypeStruct((mp, n), out_dtype),
        grid=(nsteps,), in_specs=in_specs,
        out_specs=pl.BlockSpec((tm, n), lambda i: (i, 0)),
        compiler_params=cparams,
    )(a, wmat, bias.reshape(1, n))
    if mp != m:
        out = out[:m]
    return out


def _im2col_s2(x, kh, kw):
    # stride-2 / pad-1 im2col: (N,H,W,C) -> (N,Hout,Wout,kh*kw*C), taps (kh,kw,cin)
    n, h, w, c = x.shape
    xp = jnp.pad(x, ((0, 0), (1, 1), (1, 1), (0, 0)))
    hout = (h + 2 - kh) // 2 + 1
    wout = (w + 2 - kw) // 2 + 1
    cols = []
    for i in range(kh):
        for j in range(kw):
            cols.append(xp[:, i:i + 2 * hout:2, j:j + 2 * wout:2, :])
    return jnp.concatenate(cols, axis=-1), hout, wout


def conv_s2_layer(act_bf16, w, b, *, epilogue="none", want_stats=False):
    # act_bf16: (N,H,W,Cin) bf16 (already normalized / BN'd / activated)
    # w: (Cout,Cin,4,4) PyTorch layout; b: (Cout,)
    cout, cin, kh, kw = w.shape
    patches, hout, wout = _im2col_s2(act_bf16, kh, kw)
    nb = act_bf16.shape[0]
    a = patches.reshape(nb * hout * wout, kh * kw * cin)
    wmat = (jnp.transpose(w, (2, 3, 1, 0))
            .reshape(kh * kw * cin, cout).astype(jnp.bfloat16))
    res = _fused_conv_s2(a, wmat, b, out_dtype=jnp.bfloat16,
                         epilogue=epilogue, want_stats=want_stats)
    if want_stats:
        out, s, q = res
        return out.reshape(nb, hout, wout, cout), s, q
    return res.reshape(nb, hout, wout, cout)


# ------------- stride-1 layers: implicit GEMM (no im2col in HBM) ------------
def _conv_s1_kernel(*refs, tap_offs, m1, epilogue, want_stats):
    if want_stats:
        x_ref, w_ref, b_ref, mask_ref, o_ref, s_ref, q_ref = refs
    else:
        x_ref, w_ref, b_ref, o_ref = refs
    raw = None
    for t, off in enumerate(tap_offs):
        a = x_ref[0, off:off + m1, :]                   # (m1, Cin) bf16 slice
        c = jnp.dot(a, w_ref[t], preferred_element_type=jnp.float32)
        raw = c if raw is None else raw + c
    if want_stats:
        rm = raw * mask_ref[...]          # mask out wrap-around columns
        s_ref[0] = jnp.sum(rm, axis=0, keepdims=True)
        q_ref[0] = jnp.sum(rm * rm, axis=0, keepdims=True)
    acc = raw + b_ref[...]
    if epilogue == "leaky":
        acc = jnp.where(acc >= 0, acc, 0.2 * acc)
    elif epilogue == "sigmoid":
        acc = jax.nn.sigmoid(acc)
    o_ref[0] = acc.astype(o_ref.dtype)


def conv_s1_layer(act_bf16, w, b, *, out_dtype=jnp.bfloat16, epilogue="none",
                  want_stats=False, lane_pad_out=False):
    """Stride-1 / pad-1 4x4 conv as implicit GEMM.

    Padded activation flattened per batch to (Hp*Wp, Cin); each of the 16 taps
    is a contiguous sublane-offset slice of the VMEM-resident per-batch block.
    Output columns x >= Wout of each row are wrap-around garbage: excluded
    from BN stats in-kernel, sliced off outside.
    """
    nb, h, wdim, cin = act_bf16.shape
    cout = w.shape[0]
    wp = wdim + 2
    hout, wout = h - 1, wdim - 1
    m1 = hout * wp
    # pad 1 row top / 2 rows bottom (extra row keeps the (3,3) tap slice in
    # bounds), 1 col left/right; then flatten the spatial dims per batch.
    xp = jnp.pad(act_bf16, ((0, 0), (1, 2), (1, 1), (0, 0)))
    lrows = (h + 3) * wp
    xflat = xp.reshape(nb, lrows, cin)

    co = cout
    wt = jnp.transpose(w, (2, 3, 1, 0)).reshape(16, cin, cout)
    bias = b
    if lane_pad_out and cout < 128:
        co = 128                                   # lane-dense output store
        wt = jnp.pad(wt, ((0, 0), (0, 0), (0, co - cout)))
        bias = jnp.pad(b, (0, co - cout))
    wt = wt.astype(jnp.bfloat16)
    bias2 = bias.reshape(1, co).astype(jnp.float32)

    tap_offs = tuple(ki * wp + kj for ki in range(4) for kj in range(4))
    kern = functools.partial(_conv_s1_kernel, tap_offs=tap_offs, m1=m1,
                             epilogue=epilogue, want_stats=want_stats)

    in_specs = [
        pl.BlockSpec((1, lrows, cin), lambda i: (i, 0, 0)),
        pl.BlockSpec((16, cin, co), lambda i: (0, 0, 0)),
        pl.BlockSpec((1, co), lambda i: (0, 0)),
    ]
    inputs = [xflat, wt, bias2]
    if want_stats:
        rows = jnp.arange(m1)
        mask = ((rows % wp) < wout).astype(jnp.float32).reshape(m1, 1)
        in_specs.append(pl.BlockSpec((m1, 1), lambda i: (0, 0)))
        inputs.append(mask)

    cparams = pltpu.CompilerParams(
        dimension_semantics=("parallel",),
        vmem_limit_bytes=_VMEM_LIMIT,
    )

    if want_stats:
        out_shape = (jax.ShapeDtypeStruct((nb, m1, co), out_dtype),
                     jax.ShapeDtypeStruct((nb, 1, co), jnp.float32),
                     jax.ShapeDtypeStruct((nb, 1, co), jnp.float32))
        out_specs = (pl.BlockSpec((1, m1, co), lambda i: (i, 0, 0)),
                     pl.BlockSpec((1, 1, co), lambda i: (i, 0, 0)),
                     pl.BlockSpec((1, 1, co), lambda i: (i, 0, 0)))
        out, s, q = pl.pallas_call(
            kern, out_shape=out_shape, grid=(nb,),
            in_specs=in_specs, out_specs=out_specs,
            compiler_params=cparams,
        )(*inputs)
        out = out.reshape(nb, hout, wp, co)[:, :, :wout, :cout]
        return out, jnp.sum(s, axis=0)[0, :cout], jnp.sum(q, axis=0)[0, :cout]

    out = pl.pallas_call(
        kern, out_shape=jax.ShapeDtypeStruct((nb, m1, co), out_dtype),
        grid=(nb,), in_specs=in_specs,
        out_specs=pl.BlockSpec((1, m1, co), lambda i: (i, 0, 0)),
        compiler_params=cparams,
    )(*inputs)
    return out.reshape(nb, hout, wp, co)[:, :, :wout, :cout]


# ------------------------------- D.forward ----------------------------------
def d_forward(x_nchw, params, norm_mean_c, norm_std_c, eps=1e-5):
    x = jnp.transpose(x_nchw, (0, 2, 3, 1)).astype(jnp.float32)  # NCHW->NHWC

    def prep(t, scale=None, offset=None, leaky=False):
        # per-channel affine (+ leaky) in f32, then cast to bf16 for the MXU;
        # XLA fuses this with the downstream pad / patch construction, so it
        # is never a separate HBM round trip.
        t = t.astype(jnp.float32)
        if scale is not None:
            t = t * scale + offset
        if leaky:
            t = jnp.where(t >= 0, t, jnp.float32(0.2) * t)
        return t.astype(jnp.bfloat16)

    def bn_affine(s, q, cnt, bias, gamma, beta):
        # stats were accumulated on the pre-bias f32 accumulator (variance is
        # shift-invariant, bias re-added to the mean -> less cancellation)
        mu0 = s / cnt
        mean = mu0 + bias
        var = jnp.maximum(q / cnt - mu0 * mu0, 0.0)
        sc = gamma * jax.lax.rsqrt(var + eps)
        off = beta - mean * sc
        return sc, off

    # layer 1: input normalization folded into prep; leaky fused in-kernel
    a0 = prep(x, 1.0 / norm_std_c, -norm_mean_c / norm_std_c)
    a1 = conv_s2_layer(a0, params["w1"], params["b1"], epilogue="leaky")

    # layer 2: conv + in-kernel BN stats; BN affine + leaky folded into the
    # next layer's prep
    c2, s2, q2 = conv_s2_layer(a1, params["w2"], params["b2"], want_stats=True)
    m2 = c2.shape[0] * c2.shape[1] * c2.shape[2]
    sc2, off2 = bn_affine(s2, q2, m2, params["b2"], params["g2"], params["beta2"])

    c3, s3, q3 = conv_s2_layer(prep(c2, sc2, off2, leaky=True),
                               params["w3"], params["b3"], want_stats=True)
    m3 = c3.shape[0] * c3.shape[1] * c3.shape[2]
    sc3, off3 = bn_affine(s3, q3, m3, params["b3"], params["g4"], params["beta4"])

    # layer 4 (stride 1): implicit-GEMM conv + in-kernel BN stats
    c4, s4, q4 = conv_s1_layer(prep(c3, sc3, off3, leaky=True),
                               params["w4"], params["b4"], want_stats=True)
    m4 = c4.shape[0] * c4.shape[1] * c4.shape[2]
    sc4, off4 = bn_affine(s4, q4, m4, params["b4"], params["g8"], params["beta8"])

    # layer 5 (stride 1): implicit-GEMM conv, sigmoid fused, lane-padded Cout
    out = conv_s1_layer(prep(c4, sc4, off4, leaky=True),
                        params["w5"], params["b5"], out_dtype=jnp.float32,
                        epilogue="sigmoid", lane_pad_out=True)
    return jnp.transpose(out, (0, 3, 1, 2))  # back to NCHW


# ---------------------------- parameter setup -------------------------------
def init_params(key, n_channel_input, n_channel_output, n_filters):
    layers = [
        (n_channel_input + n_channel_output, n_filters),
        (n_filters, n_filters * 2),
        (n_filters * 2, n_filters * 4),
        (n_filters * 4, n_filters * 8),
        (n_filters * 8, 1),
    ]
    params = {}
    for idx, (cin, cout) in enumerate(layers, start=1):
        key, kw_, kb_ = jax.random.split(key, 3)
        params[f"w{idx}"] = 0.05 * jax.random.normal(kw_, (cout, cin, 4, 4),
                                                     jnp.float32)
        params[f"b{idx}"] = 0.05 * jax.random.normal(kb_, (cout,), jnp.float32)
    for name, cc in (("2", n_filters * 2), ("4", n_filters * 4),
                     ("8", n_filters * 8)):
        key, kg, kb = jax.random.split(key, 3)
        params[f"g{name}"] = 1.0 + 0.1 * jax.random.normal(kg, (cc,), jnp.float32)
        params[f"beta{name}"] = 0.1 * jax.random.normal(kb, (cc,), jnp.float32)
    return params


if __name__ == "__main__":
    key = jax.random.PRNGKey(0)
    n_channel_input, n_channel_output, n_filters = 3, 3, 8
    norm_means = [0.5, 0.45]   # one 3-channel block per entry, as in the module
    norm_stds = [0.25, 0.30]

    norm_mean_c = jnp.concatenate(
        [jnp.full((3,), m, jnp.float32) for m in norm_means])
    norm_std_c = jnp.concatenate(
        [jnp.full((3,), s, jnp.float32) for s in norm_stds])

    kparams, kx = jax.random.split(key)
    params = init_params(kparams, n_channel_input, n_channel_output, n_filters)

    B, C, H, W = 2, n_channel_input + n_channel_output, 32, 32
    x = jax.random.uniform(kx, (B, C, H, W), jnp.float32)

    fwd = jax.jit(d_forward)
    out = jax.block_until_ready(fwd(x, params, norm_mean_c, norm_std_c))

    # 32x32 -> 16 -> 8 -> 4 -> 3 -> 2 patch map
    assert out.shape == (B, 1, 2, 2), out.shape
    assert bool(jnp.all(jnp.isfinite(out)))
    assert bool(jnp.all((out >= 0.0) & (out <= 1.0)))  # sigmoid range
    print("KERNEL_OK")
</pallas_src>

<mosaic_0001>
module attributes {stable_mosaic.version = 11 : i64} {
  func.func @_conv_s2_kernel(%arg0: i32, %arg1: memref<512x96xbf16, #tpu.memory_space<vmem>>, %arg2: memref<96x8xbf16, #tpu.memory_space<vmem>>, %arg3: memref<1x8xf32, #tpu.memory_space<vmem>>, %arg4: memref<512x8xbf16, #tpu.memory_space<vmem>>) attributes {dimension_semantics = [#tpu.dimension_semantics<parallel>], iteration_bounds = array<i64: 1>, scalar_prefetch = 0 : i64, scratch_operands = 0 : i64, tpu.core_type = #tpu.core_type<tc>, window_params = [{transform_indices = @transform_0, window_bounds = array<i64: 512, 96>}, {pipeline_mode = #tpu.pipeline_mode<synchronous>, transform_indices = @transform_1, window_bounds = array<i64: 96, 8>}, {pipeline_mode = #tpu.pipeline_mode<synchronous>, transform_indices = @transform_2, window_bounds = array<i64: 1, 8>}, {transform_indices = @transform_3, window_bounds = array<i64: 512, 8>}]} {
    %c0 = arith.constant 0 : index
    %c0_0 = arith.constant 0 : index
    %0 = vector.load %arg1[%c0, %c0_0] : memref<512x96xbf16, #tpu.memory_space<vmem>>, vector<512x96xbf16>
    %c0_1 = arith.constant 0 : index
    %c0_2 = arith.constant 0 : index
    %1 = vector.load %arg2[%c0_1, %c0_2] : memref<96x8xbf16, #tpu.memory_space<vmem>>, vector<96x8xbf16>
    %cst = arith.constant dense<0.000000e+00> : vector<512x8xf32>
    %2 = tpu.matmul %0, %1, %cst {dimension_numbers = #tpu.dot_dimension_numbers<[1], [0], [0], [1], [0, 0, 1, 1], [], []>} : vector<512x96xbf16>, vector<96x8xbf16>, vector<512x8xf32> -> vector<512x8xf32>
    %c0_3 = arith.constant 0 : index
    %c0_4 = arith.constant 0 : index
    %3 = vector.load %arg3[%c0_3, %c0_4] : memref<1x8xf32, #tpu.memory_space<vmem>>, vector<1x8xf32>
    %4 = vector.broadcast %3 : vector<1x8xf32> to vector<512x8xf32>
    %5 = arith.addf %2, %4 : vector<512x8xf32>
    %cst_5 = arith.constant 0.000000e+00 : f32
    %6 = vector.broadcast %cst_5 : f32 to vector<512x8xf32>
    %7 = arith.cmpf oge, %5, %6 : vector<512x8xf32>
    %cst_6 = arith.constant 2.000000e-01 : f32
    %8 = vector.broadcast %cst_6 : f32 to vector<512x8xf32>
    %9 = arith.mulf %8, %5 : vector<512x8xf32>
    %10 = arith.select %7, %5, %9 : vector<512x8xi1>, vector<512x8xf32>
    %11 = arith.truncf %10 : vector<512x8xf32> to vector<512x8xbf16>
    %c0_7 = arith.constant 0 : index
    %c0_8 = arith.constant 0 : index
    %12 = vector.load %arg4[%c0_7, %c0_8] : memref<512x8xbf16, #tpu.memory_space<vmem>>, vector<512x8xbf16>
    tpu.vector_store %arg4[%c0_7, %c0_8], %11 {strides = array<i32>} : memref<512x8xbf16, #tpu.memory_space<vmem>>, vector<512x8xbf16>,
    return
  }
  func.func @transform_0(%arg0: i32) -> (i32, i32) {
    %c0_i32 = arith.constant 0 : i32
    %c0_i32_0 = arith.constant 0 : i32
    return %arg0, %c0_i32 : i32, i32
  }
  func.func @transform_1(%arg0: i32) -> (i32, i32) {
    %c0_i32 = arith.constant 0 : i32
    %c0_i32_0 = arith.constant 0 : i32
    %c0_i32_1 = arith.constant 0 : i32
    return %c0_i32, %c0_i32_0 : i32, i32
  }
  func.func @transform_2(%arg0: i32) -> (i32, i32) {
    %c0_i32 = arith.constant 0 : i32
    %c0_i32_0 = arith.constant 0 : i32
    %c0_i32_1 = arith.constant 0 : i32
    return %c0_i32, %c0_i32_0 : i32, i32
  }
  func.func @transform_3(%arg0: i32) -> (i32, i32) {
    %c0_i32 = arith.constant 0 : i32
    %c0_i32_0 = arith.constant 0 : i32
    return %arg0, %c0_i32 : i32, i32
  }
}

module attributes {stable_mosaic.version = 11 : i64} {
  func.func @_conv_s2_kernel(%arg0: i32, %arg1: memref<128x128xbf16, #tpu.memory_space<vmem>>, %arg2: memref<128x16xbf16, #tpu.memory_space<vmem>>, %arg3: memref<1x16xf32, #tpu.memory_space<vmem>>, %arg4: memref<128x16xbf16, #tpu.memory_space<vmem>>, %arg5: memref<1x1x16xf32, #tpu.memory_space<vmem>>, %arg6: memref<1x1x16xf32, #tpu.memory_space<vmem>>) attributes {dimension_semantics = [#tpu.dimension_semantics<parallel>], iteration_bounds = array<i64: 1>, scalar_prefetch = 0 : i64, scratch_operands = 0 : i64, tpu.core_type = #tpu.core_type<tc>, window_params = [{transform_indices = @transform_0, window_bounds = array<i64: 128, 128>}, {pipeline_mode = #tpu.pipeline_mode<synchronous>, transform_indices = @transform_1, window_bounds = array<i64: 128, 16>}, {pipeline_mode = #tpu.pipeline_mode<synchronous>, transform_indices = @transform_2, window_bounds = array<i64: 1, 16>}, {transform_indices = @transform_3, window_bounds = array<i64: 128, 16>}, {transform_indices = @transform_4, window_bounds = array<i64: 1, 1, 16>}, {transform_indices = @transform_5, window_bounds = array<i64: 1, 1, 16>}]} {
    %c0 = arith.constant 0 : index
    %c0_0 = arith.constant 0 : index
    %0 = vector.load %arg1[%c0, %c0_0] : memref<128x128xbf16, #tpu.memory_space<vmem>>, vector<128x128xbf16>
    %c0_1 = arith.constant 0 : index
    %c0_2 = arith.constant 0 : index
    %1 = vector.load %arg2[%c0_1, %c0_2] : memref<128x16xbf16, #tpu.memory_space<vmem>>, vector<128x16xbf16>
    %cst = arith.constant dense<0.000000e+00> : vector<128x16xf32>
    %2 = tpu.matmul %0, %1, %cst {dimension_numbers = #tpu.dot_dimension_numbers<[1], [0], [0], [1], [0, 0, 1, 1], [], []>} : vector<128x128xbf16>, vector<128x16xbf16>, vector<128x16xf32> -> vector<128x16xf32>
    %cst_3 = arith.constant dense<0.000000e+00> : vector<16xf32>
    %3 = vector.multi_reduction <add>, %2, %cst_3 [0] : vector<128x16xf32> to vector<16xf32>
    %4 = vector.shape_cast %3 : vector<16xf32> to vector<1x16xf32>
    %c0_4 = arith.constant 0 : index
    %c0_5 = arith.constant 0 : index
    %c0_6 = arith.constant 0 : index
    %5 = vector.load %arg5[%c0_4, %c0_5, %c0_6] : memref<1x1x16xf32, #tpu.memory_space<vmem>>, vector<1x1x16xf32>
    %6 = vector.shape_cast %5 : vector<1x1x16xf32> to vector<1x16xf32>
    %7 = vector.shape_cast %4 : vector<1x16xf32> to vector<1x1x16xf32>
    tpu.vector_store %arg5[%c0_4, %c0_5, %c0_6], %7 {strides = array<i32>} : memref<1x1x16xf32, #tpu.memory_space<vmem>>, vector<1x1x16xf32>,
    %8 = arith.mulf %2, %2 : vector<128x16xf32>
    %cst_7 = arith.constant dense<0.000000e+00> : vector<16xf32>
    %9 = vector.multi_reduction <add>, %8, %cst_7 [0] : vector<128x16xf32> to vector<16xf32>
    %10 = vector.shape_cast %9 : vector<16xf32> to vector<1x16xf32>
    %c0_8 = arith.constant 0 : index
    %c0_9 = arith.constant 0 : index
    %c0_10 = arith.constant 0 : index
    %11 = vector.load %arg6[%c0_8, %c0_9, %c0_10] : memref<1x1x16xf32, #tpu.memory_space<vmem>>, vector<1x1x16xf32>
    %12 = vector.shape_cast %11 : vector<1x1x16xf32> to vector<1x16xf32>
    %13 = vector.shape_cast %10 : vector<1x16xf32> to vector<1x1x16xf32>
    tpu.vector_store %arg6[%c0_8, %c0_9, %c0_10], %13 {strides = array<i32>} : memref<1x1x16xf32, #tpu.memory_space<vmem>>, vector<1x1x16xf32>,
    %c0_11 = arith.constant 0 : index
    %c0_12 = arith.constant 0 : index
    %14 = vector.load %arg3[%c0_11, %c0_12] : memref<1x16xf32, #tpu.memory_space<vmem>>, vector<1x16xf32>
    %15 = vector.broadcast %14 : vector<1x16xf32> to vector<128x16xf32>
    %16 = arith.addf %2, %15 : vector<128x16xf32>
    %17 = arith.truncf %16 : vector<128x16xf32> to vector<128x16xbf16>
    %c0_13 = arith.constant 0 : index
    %c0_14 = arith.constant 0 : index
    %18 = vector.load %arg4[%c0_13, %c0_14] : memref<128x16xbf16, #tpu.memory_space<vmem>>, vector<128x16xbf16>
    tpu.vector_store %arg4[%c0_13, %c0_14], %17 {strides = array<i32>} : memref<128x16xbf16, #tpu.memory_space<vmem>>, vector<128x16xbf16>,
    return
  }
  func.func @transform_0(%arg0: i32) -> (i32, i32) {
    %c0_i32 = arith.constant 0 : i32
    %c0_i32_0 = arith.constant 0 : i32
    return %arg0, %c0_i32 : i32, i32
  }
  func.func @transform_1(%arg0: i32) -> (i32, i32) {
    %c0_i32 = arith.constant 0 : i32
    %c0_i32_0 = arith.constant 0 : i32
    %c0_i32_1 = arith.constant 0 : i32
    return %c0_i32, %c0_i32_0 : i32, i32
  }
  func.func @transform_2(%arg0: i32) -> (i32, i32) {
    %c0_i32 = arith.constant 0 : i32
    %c0_i32_0 = arith.constant 0 : i32
    %c0_i32_1 = arith.constant 0 : i32
    return %c0_i32, %c0_i32_0 : i32, i32
  }
  func.func @transform_3(%arg0: i32) -> (i32, i32) {
    %c0_i32 = arith.constant 0 : i32
    %c0_i32_0 = arith.constant 0 : i32
    return %arg0, %c0_i32 : i32, i32
  }
  func.func @transform_4(%arg0: i32) -> (i32, i32, i32) {
    %c0_i32 = arith.constant 0 : i32
    %c0_i32_0 = arith.constant 0 : i32
    %c0_i32_1 = arith.constant 0 : i32
    return %arg0, %c0_i32, %c0_i32_0 : i32, i32, i32
  }
  func.func @transform_5(%arg0: i32) -> (i32, i32, i32) {
    %c0_i32 = arith.constant 0 : i32
    %c0_i32_0 = arith.constant 0 : i32
    %c0_i32_1 = arith.constant 0 : i32
    return %arg0, %c0_i32, %c0_i32_0 : i32, i32, i32
  }
}

module attributes {stable_mosaic.version = 11 : i64} {
  func.func @_conv_s2_kernel(%arg0: i32, %arg1: memref<32x256xbf16, #tpu.memory_space<vmem>>, %arg2: memref<256x32xbf16, #tpu.memory_space<vmem>>, %arg3: memref<1x32xf32, #tpu.memory_space<vmem>>, %arg4: memref<32x32xbf16, #tpu.memory_space<vmem>>, %arg5: memref<1x1x32xf32, #tpu.memory_space<vmem>>, %arg6: memref<1x1x32xf32, #tpu.memory_space<vmem>>) attributes {dimension_semantics = [#tpu.dimension_semantics<parallel>], iteration_bounds = array<i64: 1>, scalar_prefetch = 0 : i64, scratch_operands = 0 : i64, tpu.core_type = #tpu.core_type<tc>, window_params = [{transform_indices = @transform_0, window_bounds = array<i64: 32, 256>}, {pipeline_mode = #tpu.pipeline_mode<synchronous>, transform_indices = @transform_1, window_bounds = array<i64: 256, 32>}, {pipeline_mode = #tpu.pipeline_mode<synchronous>, transform_indices = @transform_2, window_bounds = array<i64: 1, 32>}, {transform_indices = @transform_3, window_bounds = array<i64: 32, 32>}, {transform_indices = @transform_4, window_bounds = array<i64: 1, 1, 32>}, {transform_indices = @transform_5, window_bounds = array<i64: 1, 1, 32>}]} {
    %c0 = arith.constant 0 : index
    %c0_0 = arith.constant 0 : index
    %0 = vector.load %arg1[%c0, %c0_0] : memref<32x256xbf16, #tpu.memory_space<vmem>>, vector<32x256xbf16>
    %c0_1 = arith.constant 0 : index
    %c0_2 = arith.constant 0 : index
    %1 = vector.load %arg2[%c0_1, %c0_2] : memref<256x32xbf16, #tpu.memory_space<vmem>>, vector<256x32xbf16>
    %cst = arith.constant dense<0.000000e+00> : vector<32x32xf32>
    %2 = tpu.matmul %0, %1, %cst {dimension_numbers = #tpu.dot_dimension_numbers<[1], [0], [0], [1], [0, 0, 1, 1], [], []>} : vector<32x256xbf16>, vector<256x32xbf16>, vector<32x32xf32> -> vector<32x32xf32>
    %cst_3 = arith.constant dense<0.000000e+00> : vector<32xf32>
    %3 = vector.multi_reduction <add>, %2, %cst_3 [0] : vector<32x32xf32> to vector<32xf32>
    %4 = vector.shape_cast %3 : vector<32xf32> to vector<1x32xf32>
    %c0_4 = arith.constant 0 : index
    %c0_5 = arith.constant 0 : index
    %c0_6 = arith.constant 0 : index
    %5 = vector.load %arg5[%c0_4, %c0_5, %c0_6] : memref<1x1x32xf32, #tpu.memory_space<vmem>>, vector<1x1x32xf32>
    %6 = vector.shape_cast %5 : vector<1x1x32xf32> to vector<1x32xf32>
    %7 = vector.shape_cast %4 : vector<1x32xf32> to vector<1x1x32xf32>
    tpu.vector_store %arg5[%c0_4, %c0_5, %c0_6], %7 {strides = array<i32>} : memref<1x1x32xf32, #tpu.memory_space<vmem>>, vector<1x1x32xf32>,
    %8 = arith.mulf %2, %2 : vector<32x32xf32>
    %cst_7 = arith.constant dense<0.000000e+00> : vector<32xf32>
    %9 = vector.multi_reduction <add>, %8, %cst_7 [0] : vector<32x32xf32> to vector<32xf32>
    %10 = vector.shape_cast %9 : vector<32xf32> to vector<1x32xf32>
    %c0_8 = arith.constant 0 : index
    %c0_9 = arith.constant 0 : index
    %c0_10 = arith.constant 0 : index
    %11 = vector.load %arg6[%c0_8, %c0_9, %c0_10] : memref<1x1x32xf32, #tpu.memory_space<vmem>>, vector<1x1x32xf32>
    %12 = vector.shape_cast %11 : vector<1x1x32xf32> to vector<1x32xf32>
    %13 = vector.shape_cast %10 : vector<1x32xf32> to vector<1x1x32xf32>
    tpu.vector_store %arg6[%c0_8, %c0_9, %c0_10], %13 {strides = array<i32>} : memref<1x1x32xf32, #tpu.memory_space<vmem>>, vector<1x1x32xf32>,
    %c0_11 = arith.constant 0 : index
    %c0_12 = arith.constant 0 : index
    %14 = vector.load %arg3[%c0_11, %c0_12] : memref<1x32xf32, #tpu.memory_space<vmem>>, vector<1x32xf32>
    %15 = vector.broadcast %14 : vector<1x32xf32> to vector<32x32xf32>
    %16 = arith.addf %2, %15 : vector<32x32xf32>
    %17 = arith.truncf %16 : vector<32x32xf32> to vector<32x32xbf16>
    %c0_13 = arith.constant 0 : index
    %c0_14 = arith.constant 0 : index
    %18 = vector.load %arg4[%c0_13, %c0_14] : memref<32x32xbf16, #tpu.memory_space<vmem>>, vector<32x32xbf16>
    tpu.vector_store %arg4[%c0_13, %c0_14], %17 {strides = array<i32>} : memref<32x32xbf16, #tpu.memory_space<vmem>>, vector<32x32xbf16>,
    return
  }
  func.func @transform_0(%arg0: i32) -> (i32, i32) {
    %c0_i32 = arith.constant 0 : i32
    %c0_i32_0 = arith.constant 0 : i32
    return %arg0, %c0_i32 : i32, i32
  }
  func.func @transform_1(%arg0: i32) -> (i32, i32) {
    %c0_i32 = arith.constant 0 : i32
    %c0_i32_0 = arith.constant 0 : i32
    %c0_i32_1 = arith.constant 0 : i32
    return %c0_i32, %c0_i32_0 : i32, i32
  }
  func.func @transform_2(%arg0: i32) -> (i32, i32) {
    %c0_i32 = arith.constant 0 : i32
    %c0_i32_0 = arith.constant 0 : i32
    %c0_i32_1 = arith.constant 0 : i32
    return %c0_i32, %c0_i32_0 : i32, i32
  }
  func.func @transform_3(%arg0: i32) -> (i32, i32) {
    %c0_i32 = arith.constant 0 : i32
    %c0_i32_0 = arith.constant 0 : i32
    return %arg0, %c0_i32 : i32, i32
  }
  func.func @transform_4(%arg0: i32) -> (i32, i32, i32) {
    %c0_i32 = arith.constant 0 : i32
    %c0_i32_0 = arith.constant 0 : i32
    %c0_i32_1 = arith.constant 0 : i32
    return %arg0, %c0_i32, %c0_i32_0 : i32, i32, i32
  }
  func.func @transform_5(%arg0: i32) -> (i32, i32, i32) {
    %c0_i32 = arith.constant 0 : i32
    %c0_i32_0 = arith.constant 0 : i32
    %c0_i32_1 = arith.constant 0 : i32
    return %arg0, %c0_i32, %c0_i32_0 : i32, i32, i32
  }
}

module attributes {stable_mosaic.version = 11 : i64} {
  func.func @_conv_s1_kernel(%arg0: i32, %arg1: memref<1x42x32xbf16, #tpu.memory_space<vmem>>, %arg2: memref<16x32x64xbf16, #tpu.memory_space<vmem>>, %arg3: memref<1x64xf32, #tpu.memory_space<vmem>>, %arg4: memref<18x1xf32, #tpu.memory_space<vmem>>, %arg5: memref<1x18x64xbf16, #tpu.memory_space<vmem>>, %arg6: memref<1x1x64xf32, #tpu.memory_space<vmem>>, %arg7: memref<1x1x64xf32, #tpu.memory_space<vmem>>) attributes {dimension_semantics = [#tpu.dimension_semantics<parallel>], iteration_bounds = array<i64: 2>, scalar_prefetch = 0 : i64, scratch_operands = 0 : i64, tpu.core_type = #tpu.core_type<tc>, window_params = [{transform_indices = @transform_0, window_bounds = array<i64: 1, 42, 32>}, {pipeline_mode = #tpu.pipeline_mode<synchronous>, transform_indices = @transform_1, window_bounds = array<i64: 16, 32, 64>}, {pipeline_mode = #tpu.pipeline_mode<synchronous>, transform_indices = @transform_2, window_bounds = array<i64: 1, 64>}, {pipeline_mode = #tpu.pipeline_mode<synchronous>, transform_indices = @transform_3, window_bounds = array<i64: 18, 1>}, {transform_indices = @transform_4, window_bounds = array<i64: 1, 18, 64>}, {transform_indices = @transform_5, window_bounds = array<i64: 1, 1, 64>}, {transform_indices = @transform_6, window_bounds = array<i64: 1, 1, 64>}]} {
    %c0 = arith.constant 0 : index
    %c0_0 = arith.constant 0 : index
    %c0_1 = arith.constant 0 : index
    %0 = vector.load %arg1[%c0, %c0_0, %c0_1] : memref<1x42x32xbf16, #tpu.memory_space<vmem>>, vector<1x18x32xbf16>
    %1 = vector.shape_cast %0 : vector<1x18x32xbf16> to vector<18x32xbf16>
    %c0_2 = arith.constant 0 : index
    %c0_3 = arith.constant 0 : index
    %c0_4 = arith.constant 0 : index
    %2 = vector.load %arg2[%c0_2, %c0_3, %c0_4] : memref<16x32x64xbf16, #tpu.memory_space<vmem>>, vector<1x32x64xbf16>
    %3 = vector.shape_cast %2 : vector<1x32x64xbf16> to vector<32x64xbf16>
    %cst = arith.constant dense<0.000000e+00> : vector<18x64xf32>
    %4 = tpu.matmul %1, %3, %cst {dimension_numbers = #tpu.dot_dimension_numbers<[1], [0], [0], [1], [0, 0, 1, 1], [], []>} : vector<18x32xbf16>, vector<32x64xbf16>, vector<18x64xf32> -> vector<18x64xf32>
    %c0_5 = arith.constant 0 : index
    %c1 = arith.constant 1 : index
    %c0_6 = arith.constant 0 : index
    %5 = vector.load %arg1[%c0_5, %c1, %c0_6] : memref<1x42x32xbf16, #tpu.memory_space<vmem>>, vector<1x18x32xbf16>
    %6 = vector.shape_cast %5 : vector<1x18x32xbf16> to vector<18x32xbf16>
    %c1_7 = arith.constant 1 : index
    %c0_8 = arith.constant 0 : index
    %c0_9 = arith.constant 0 : index
    %7 = vector.load %arg2[%c1_7, %c0_8, %c0_9] : memref<16x32x64xbf16, #tpu.memory_space<vmem>>, vector<1x32x64xbf16>
    %8 = vector.shape_cast %7 : vector<1x32x64xbf16> to vector<32x64xbf16>
    %cst_10 = arith.constant dense<0.000000e+00> : vector<18x64xf32>
    %9 = tpu.matmul %6, %8, %cst_10 {dimension_numbers = #tpu.dot_dimension_numbers<[1], [0], [0], [1], [0, 0, 1, 1], [], []>} : vector<18x32xbf16>, vector<32x64xbf16>, vector<18x64xf32> -> vector<18x64xf32>
    %10 = arith.addf %4, %9 : vector<18x64xf32>
    %c0_11 = arith.constant 0 : index
    %c2 = arith.constant 2 : index
    %c0_12 = arith.constant 0 : index
    %11 = vector.load %arg1[%c0_11, %c2, %c0_12] : memref<1x42x32xbf16, #tpu.memory_space<vmem>>, vector<1x18x32xbf16>
    %12 = vector.shape_cast %11 : vector<1x18x32xbf16> to vector<18x32xbf16>
    %c2_13 = arith.constant 2 : index
    %c0_14 = arith.constant 0 : index
    %c0_15 = arith.constant 0 : index
    %13 = vector.load %arg2[%c2_13, %c0_14, %c0_15] : memref<16x32x64xbf16, #tpu.memory_space<vmem>>, vector<1x32x64xbf16>
    %14 = vector.shape_cast %13 : vector<1x32x64xbf16> to vector<32x64xbf16>
    %cst_16 = arith.constant dense<0.000000e+00> : vector<18x64xf32>
    %15 = tpu.matmul %12, %14, %cst_16 {dimension_numbers = #tpu.dot_dimension_numbers<[1], [0], [0], [1], [0, 0, 1, 1], [], []>} : vector<18x32xbf16>, vector<32x64xbf16>, vector<18x64xf32> -> vector<18x64xf32>
    %16 = arith.addf %10, %15 : vector<18x64xf32>
    %c0_17 = arith.constant 0 : index
    %c3 = arith.constant 3 : index
    %c0_18 = arith.constant 0 : index
    %17 = vector.load %arg1[%c0_17, %c3, %c0_18] : memref<1x42x32xbf16, #tpu.memory_space<vmem>>, vector<1x18x32xbf16>
    %18 = vector.shape_cast %17 : vector<1x18x32xbf16> to vector<18x32xbf16>
    %c3_19 = arith.constant 3 : index
    %c0_20 = arith.constant 0 : index
    %c0_21 = arith.constant 0 : index
    %19 = vector.load %arg2[%c3_19, %c0_20, %c0_21] : memref<16x32x64xbf16, #tpu.memory_space<vmem>>, vector<1x32x64xbf16>
    %20 = vector.shape_cast %19 : vector<1x32x64xbf16> to vector<32x64xbf16>
    %cst_22 = arith.constant dense<0.000000e+00> : vector<18x64xf32>
    %21 = tpu.matmul %18, %20, %cst_22 {dimension_numbers = #tpu.dot_dimension_numbers<[1], [0], [0], [1], [0, 0, 1, 1], [], []>} : vector<18x32xbf16>, vector<32x64xbf16>, vector<18x64xf32> -> vector<18x64xf32>
    %22 = arith.addf %16, %21 : vector<18x64xf32>
    %c0_23 = arith.constant 0 : index
    %c6 = arith.constant 6 : index
    %c0_24 = arith.constant 0 : index
    %23 = vector.load %arg1[%c0_23, %c6, %c0_24] : memref<1x42x32xbf16, #tpu.memory_space<vmem>>, vector<1x18x32xbf16>
    %24 = vector.shape_cast %23 : vector<1x18x32xbf16> to vector<18x32xbf16>
    %c4 = arith.constant 4 : index
    %c0_25 = arith.constant 0 : index
    %c0_26 = arith.constant 0 : index
    %25 = vector.load %arg2[%c4, %c0_25, %c0_26] : memref<16x32x64xbf16, #tpu.memory_space<vmem>>, vector<1x32x64xbf16>
    %26 = vector.shape_cast %25 : vector<1x32x64xbf16> to vector<32x64xbf16>
    %cst_27 = arith.constant dense<0.000000e+00> : vector<18x64xf32>
    %27 = tpu.matmul %24, %26, %cst_27 {dimension_numbers = #tpu.dot_dimension_numbers<[1], [0], [0], [1], [0, 0, 1, 1], [], []>} : vector<18x32xbf16>, vector<32x64xbf16>, vector<18x64xf32> -> vector<18x64xf32>
    %28 = arith.addf %22, %27 : vector<18x64xf32>
    %c0_28 = arith.constant 0 : index
    %c7 = arith.constant 7 : index
    %c0_29 = arith.constant 0 : index
    %29 = vector.load %arg1[%c0_28, %c7, %c0_29] : memref<1x42x32xbf16, #tpu.memory_space<vmem>>, vector<1x18x32xbf16>
    %30 = vector.shape_cast %29 : vector<1x18x32xbf16> to vector<18x32xbf16>
    %c5 = arith.constant 5 : index
    %c0_30 = arith.constant 0 : index
    %c0_31 = arith.constant 0 : index
    %31 = vector.load %arg2[%c5, %c0_30, %c0_31] : memref<16x32x64xbf16, #tpu.memory_space<vmem>>, vector<1x32x64xbf16>
    %32 = vector.shape_cast %31 : vector<1x32x64xbf16> to vector<32x64xbf16>
    %cst_32 = arith.constant dense<0.000000e+00> : vector<18x64xf32>
    %33 = tpu.matmul %30, %32, %cst_32 {dimension_numbers = #tpu.dot_dimension_numbers<[1], [0], [0], [1], [0, 0, 1, 1], [], []>} : vector<18x32xbf16>, vector<32x64xbf16>, vector<18x64xf32> -> vector<18x64xf32>
    %34 = arith.addf %28, %33 : vector<18x64xf32>
    %c0_33 = arith.constant 0 : index
    %c8 = arith.constant 8 : index
    %c0_34 = arith.constant 0 : index
    %35 = vector.load %arg1[%c0_33, %c8, %c0_34] : memref<1x42x32xbf16, #tpu.memory_space<vmem>>, vector<1x18x32xbf16>
    %36 = vector.shape_cast %35 : vector<1x18x32xbf16> to vector<18x32xbf16>
    %c6_35 = arith.constant 6 : index
    %c0_36 = arith.constant 0 : index
    %c0_37 = arith.constant 0 : index
    %37 = vector.load %arg2[%c6_35, %c0_36, %c0_37] : memref<16x32x64xbf16, #tpu.memory_space<vmem>>, vector<1x32x64xbf16>
    %38 = vector.shape_cast %37 : vector<1x32x64xbf16> to vector<32x64xbf16>
    %cst_38 = arith.constant dense<0.000000e+00> : vector<18x64xf32>
    %39 = tpu.matmul %36, %38, %cst_38 {dimension_numbers = #tpu.dot_dimension_numbers<[1], [0], [0], [1], [0, 0, 1, 1], [], []>} : vector<18x32xbf16>, vector<32x64xbf16>, vector<18x64xf32> -> vector<18x64xf32>
    %40 = arith.addf %34, %39 : vector<18x64xf32>
    %c0_39 = arith.constant 0 : index
    %c9 = arith.constant 9 : index
    %c0_40 = arith.constant 0 : index
    %41 = vector.load %arg1[%c0_39, %c9, %c0_40] : memref<1x42x32xbf16, #tpu.memory_space<vmem>>, vector<1x18x32xbf16>
    %42 = vector.shape_cast %41 : vector<1x18x32xbf16> to vector<18x32xbf16>
    %c7_41 = arith.constant 7 : index
    %c0_42 = arith.constant 0 : index
    %c0_43 = arith.constant 0 : index
    %43 = vector.load %arg2[%c7_41, %c0_42, %c0_43] : memref<16x32x64xbf16, #tpu.memory_space<vmem>>, vector<1x32x64xbf16>
    %44 = vector.shape_cast %43 : vector<1x32x64xbf16> to vector<32x64xbf16>
    %cst_44 = arith.constant dense<0.000000e+00> : vector<18x64xf32>
    %45 = tpu.matmul %42, %44, %cst_44 {dimension_numbers = #tpu.dot_dimension_numbers<[1], [0], [0], [1], [0, 0, 1, 1], [], []>} : vector<18x32xbf16>, vector<32x64xbf16>, vector<18x64xf32> -> vector<18x64xf32>
    %46 = arith.addf %40, %45 : vector<18x64xf32>
    %c0_45 = arith.constant 0 : index
    %c12 = arith.constant 12 : index
    %c0_46 = arith.constant 0 : index
    %47 = vector.load %arg1[%c0_45, %c12, %c0_46] : memref<1x42x32xbf16, #tpu.memory_space<vmem>>, vector<1x18x32xbf16>
    %48 = vector.shape_cast %47 : vector<1x18x32xbf16> to vector<18x32xbf16>
    %c8_47 = arith.constant 8 : index
    %c0_48 = arith.constant 0 : index
    %c0_49 = arith.constant 0 : index
    %49 = vector.load %arg2[%c8_47, %c0_48, %c0_49] : memref<16x32x64xbf16, #tpu.memory_space<vmem>>, vector<1x32x64xbf16>
    %50 = vector.shape_cast %49 : vector<1x32x64xbf16> to vector<32x64xbf16>
    %cst_50 = arith.constant dense<0.000000e+00> : vector<18x64xf32>
    %51 = tpu.matmul %48, %50, %cst_50 {dimension_numbers = #tpu.dot_dimension_numbers<[1], [0], [0], [1], [0, 0, 1, 1], [], []>} : vector<18x32xbf16>, vector<32x64xbf16>, vector<18x64xf32> -> vector<18x64xf32>
    %52 = arith.addf %46, %51 : vector<18x64xf32>
    %c0_51 = arith.constant 0 : index
    %c13 = arith.constant 13 : index
    %c0_52 = arith.constant 0 : index
    %53 = vector.load %arg1[%c0_51, %c13, %c0_52] : memref<1x42x32xbf16, #tpu.memory_space<vmem>>, vector<1x18x32xbf16>
    %54 = vector.shape_cast %53 : vector<1x18x32xbf16> to vector<18x32xbf16>
    %c9_53 = arith.constant 9 : index
    %c0_54 = arith.constant 0 : index
    %c0_55 = arith.constant 0 : index
    %55 = vector.load %arg2[%c9_53, %c0_54, %c0_55] : memref<16x32x64xbf16, #tpu.memory_space<vmem>>, vector<1x32x64xbf16>
    %56 = vector.shape_cast %55 : vector<1x32x64xbf16> to vector<32x64xbf16>
    %cst_56 = arith.constant dense<0.000000e+00> : vector<18x64xf32>
    %57 = tpu.matmul %54, %56, %cst_56 {dimension_numbers = #tpu.dot_dimension_numbers<[1], [0], [0], [1], [0, 0, 1, 1], [], []>} : vector<18x32xbf16>, vector<32x64xbf16>, vector<18x64xf32> -> vector<18x64xf32>
    %58 = arith.addf %52, %57 : vector<18x64xf32>
    %c0_57 = arith.constant 0 : index
    %c14 = arith.constant 14 : index
    %c0_58 = arith.constant 0 : index
    %59 = vector.load %arg1[%c0_57, %c14, %c0_58] : memref<1x42x32xbf16, #tpu.memory_space<vmem>>, vector<1x18x32xbf16>
    %60 = vector.shape_cast %59 : vector<1x18x32xbf16> to vector<18x32xbf16>
    %c10 = arith.constant 10 : index
    %c0_59 = arith.constant 0 : index
    %c0_60 = arith.constant 0 : index
    %61 = vector.load %arg2[%c10, %c0_59, %c0_60] : memref<16x32x64xbf16, #tpu.memory_space<vmem>>, vector<1x32x64xbf16>
    %62 = vector.shape_cast %61 : vector<1x32x64xbf16> to vector<32x64xbf16>
    %cst_61 = arith.constant dense<0.000000e+00> : vector<18x64xf32>
    %63 = tpu.matmul %60, %62, %cst_61 {dimension_numbers = #tpu.dot_dimension_numbers<[1], [0], [0], [1], [0, 0, 1, 1], [], []>} : vector<18x32xbf16>, vector<32x64xbf16>, vector<18x64xf32> -> vector<18x64xf32>
    %64 = arith.addf %58, %63 : vector<18x64xf32>
    %c0_62 = arith.constant 0 : index
    %c15 = arith.constant 15 : index
    %c0_63 = arith.constant 0 : index
    %65 = vector.load %arg1[%c0_62, %c15, %c0_63] : memref<1x42x32xbf16, #tpu.memory_space<vmem>>, vector<1x18x32xbf16>
    %66 = vector.shape_cast %65 : vector<1x18x32xbf16> to vector<18x32xbf16>
    %c11 = arith.constant 11 : index
    %c0_64 = arith.constant 0 : index
    %c0_65 = arith.constant 0 : index
    %67 = vector.load %arg2[%c11, %c0_64, %c0_65] : memref<16x32x64xbf16, #tpu.memory_space<vmem>>, vector<1x32x64xbf16>
    %68 = vector.shape_cast %67 : vector<1x32x64xbf16> to vector<32x64xbf16>
    %cst_66 = arith.constant dense<0.000000e+00> : vector<18x64xf32>
    %69 = tpu.matmul %66, %68, %cst_66 {dimension_numbers = #tpu.dot_dimension_numbers<[1], [0], [0], [1], [0, 0, 1, 1], [], []>} : vector<18x32xbf16>, vector<32x64xbf16>, vector<18x64xf32> -> vector<18x64xf32>
    %70 = arith.addf %64, %69 : vector<18x64xf32>
    %c0_67 = arith.constant 0 : index
    %c18 = arith.constant 18 : index
    %c0_68 = arith.constant 0 : index
    %71 = vector.load %arg1[%c0_67, %c18, %c0_68] : memref<1x42x32xbf16, #tpu.memory_space<vmem>>, vector<1x18x32xbf16>
    %72 = vector.shape_cast %71 : vector<1x18x32xbf16> to vector<18x32xbf16>
    %c12_69 = arith.constant 12 : index
    %c0_70 = arith.constant 0 : index
    %c0_71 = arith.constant 0 : index
    %73 = vector.load %arg2[%c12_69, %c0_70, %c0_71] : memref<16x32x64xbf16, #tpu.memory_space<vmem>>, vector<1x32x64xbf16>
    %74 = vector.shape_cast %73 : vector<1x32x64xbf16> to vector<32x64xbf16>
    %cst_72 = arith.constant dense<0.000000e+00> : vector<18x64xf32>
    %75 = tpu.matmul %72, %74, %cst_72 {dimension_numbers = #tpu.dot_dimension_numbers<[1], [0], [0], [1], [0, 0, 1, 1], [], []>} : vector<18x32xbf16>, vector<32x64xbf16>, vector<18x64xf32> -> vector<18x64xf32>
    %76 = arith.addf %70, %75 : vector<18x64xf32>
    %c0_73 = arith.constant 0 : index
    %c19 = arith.constant 19 : index
    %c0_74 = arith.constant 0 : index
    %77 = vector.load %arg1[%c0_73, %c19, %c0_74] : memref<1x42x32xbf16, #tpu.memory_space<vmem>>, vector<1x18x32xbf16>
    %78 = vector.shape_cast %77 : vector<1x18x32xbf16> to vector<18x32xbf16>
    %c13_75 = arith.constant 13 : index
    %c0_76 = arith.constant 0 : index
    %c0_77 = arith.constant 0 : index
    %79 = vector.load %arg2[%c13_75, %c0_76, %c0_77] : memref<16x32x64xbf16, #tpu.memory_space<vmem>>, vector<1x32x64xbf16>
    %80 = vector.shape_cast %79 : vector<1x32x64xbf16> to vector<32x64xbf16>
    %cst_78 = arith.constant dense<0.000000e+00> : vector<18x64xf32>
    %81 = tpu.matmul %78, %80, %cst_78 {dimension_numbers = #tpu.dot_dimension_numbers<[1], [0], [0], [1], [0, 0, 1, 1], [], []>} : vector<18x32xbf16>, vector<32x64xbf16>, vector<18x64xf32> -> vector<18x64xf32>
    %82 = arith.addf %76, %81 : vector<18x64xf32>
    %c0_79 = arith.constant 0 : index
    %c20 = arith.constant 20 : index
    %c0_80 = arith.constant 0 : index
    %83 = vector.load %arg1[%c0_79, %c20, %c0_80] : memref<1x42x32xbf16, #tpu.memory_space<vmem>>, vector<1x18x32xbf16>
    %84 = vector.shape_cast %83 : vector<1x18x32xbf16> to vector<18x32xbf16>
    %c14_81 = arith.constant 14 : index
    %c0_82 = arith.constant 0 : index
    %c0_83 = arith.constant 0 : index
    %85 = vector.load %arg2[%c14_81, %c0_82, %c0_83] : memref<16x32x64xbf16, #tpu.memory_space<vmem>>, vector<1x32x64xbf16>
    %86 = vector.shape_cast %85 : vector<1x32x64xbf16> to vector<32x64xbf16>
    %cst_84 = arith.constant dense<0.000000e+00> : vector<18x64xf32>
    %87 = tpu.matmul %84, %86, %cst_84 {dimension_numbers = #tpu.dot_dimension_numbers<[1], [0], [0], [1], [0, 0, 1, 1], [], []>} : vector<18x32xbf16>, vector<32x64xbf16>, vector<18x64xf32> -> vector<18x64xf32>
    %88 = arith.addf %82, %87 : vector<18x64xf32>
    %c0_85 = arith.constant 0 : index
    %c21 = arith.constant 21 : index
    %c0_86 = arith.constant 0 : index
    %89 = vector.load %arg1[%c0_85, %c21, %c0_86] : memref<1x42x32xbf16, #tpu.memory_space<vmem>>, vector<1x18x32xbf16>
    %90 = vector.shape_cast %89 : vector<1x18x32xbf16> to vector<18x32xbf16>
    %c15_87 = arith.constant 15 : index
    %c0_88 = arith.constant 0 : index
    %c0_89 = arith.constant 0 : index
    %91 = vector.load %arg2[%c15_87, %c0_88, %c0_89] : memref<16x32x64xbf16, #tpu.memory_space<vmem>>, vector<1x32x64xbf16>
    %92 = vector.shape_cast %91 : vector<1x32x64xbf16> to vector<32x64xbf16>
    %cst_90 = arith.constant dense<0.000000e+00> : vector<18x64xf32>
    %93 = tpu.matmul %90, %92, %cst_90 {dimension_numbers = #tpu.dot_dimension_numbers<[1], [0], [0], [1], [0, 0, 1, 1], [], []>} : vector<18x32xbf16>, vector<32x64xbf16>, vector<18x64xf32> -> vector<18x64xf32>
    %94 = arith.addf %88, %93 : vector<18x64xf32>
    %c0_91 = arith.constant 0 : index
    %c0_92 = arith.constant 0 : index
    %95 = vector.load %arg4[%c0_91, %c0_92] : memref<18x1xf32, #tpu.memory_space<vmem>>, vector<18x1xf32>
    %96 = vector.broadcast %95 : vector<18x1xf32> to vector<18x64xf32>
    %97 = arith.mulf %94, %96 : vector<18x64xf32>
    %cst_93 = arith.constant dense<0.000000e+00> : vector<64xf32>
    %98 = vector.multi_reduction <add>, %97, %cst_93 [0] : vector<18x64xf32> to vector<64xf32>
    %99 = vector.shape_cast %98 : vector<64xf32> to vector<1x64xf32>
    %c0_94 = arith.constant 0 : index
    %c0_95 = arith.constant 0 : index
    %c0_96 = arith.constant 0 : index
    %100 = vector.load %arg6[%c0_94, %c0_95, %c0_96] : memref<1x1x64xf32, #tpu.memory_space<vmem>>, vector<1x1x64xf32>
    %101 = vector.shape_cast %100 : vector<1x1x64xf32> to vector<1x64xf32>
    %102 = vector.shape_cast %99 : vector<1x64xf32> to vector<1x1x64xf32>
    tpu.vector_store %arg6[%c0_94, %c0_95, %c0_96], %102 {strides = array<i32>} : memref<1x1x64xf32, #tpu.memory_space<vmem>>, vector<1x1x64xf32>,
    %103 = arith.mulf %97, %97 : vector<18x64xf32>
    %cst_97 = arith.constant dense<0.000000e+00> : vector<64xf32>
    %104 = vector.multi_reduction <add>, %103, %cst_97 [0] : vector<18x64xf32> to vector<64xf32>
    %105 = vector.shape_cast %104 : vector<64xf32> to vector<1x64xf32>
    %c0_98 = arith.constant 0 : index
    %c0_99 = arith.constant 0 : index
    %c0_100 = arith.constant 0 : index
    %106 = vector.load %arg7[%c0_98, %c0_99, %c0_100] : memref<1x1x64xf32, #tpu.memory_space<vmem>>, vector<1x1x64xf32>
    %107 = vector.shape_cast %106 : vector<1x1x64xf32> to vector<1x64xf32>
    %108 = vector.shape_cast %105 : vector<1x64xf32> to vector<1x1x64xf32>
    tpu.vector_store %arg7[%c0_98, %c0_99, %c0_100], %108 {strides = array<i32>} : memref<1x1x64xf32, #tpu.memory_space<vmem>>, vector<1x1x64xf32>,
    %c0_101 = arith.constant 0 : index
    %c0_102 = arith.constant 0 : index
    %109 = vector.load %arg3[%c0_101, %c0_102] : memref<1x64xf32, #tpu.memory_space<vmem>>, vector<1x64xf32>
    %110 = vector.broadcast %109 : vector<1x64xf32> to vector<18x64xf32>
    %111 = arith.addf %94, %110 : vector<18x64xf32>
    %112 = arith.truncf %111 : vector<18x64xf32> to vector<18x64xbf16>
    %c0_103 = arith.constant 0 : index
    %c0_104 = arith.constant 0 : index
    %c0_105 = arith.constant 0 : index
    %113 = vector.load %arg5[%c0_103, %c0_104, %c0_105] : memref<1x18x64xbf16, #tpu.memory_space<vmem>>, vector<1x18x64xbf16>
    %114 = vector.shape_cast %113 : vector<1x18x64xbf16> to vector<18x64xbf16>
    %115 = vector.shape_cast %112 : vector<18x64xbf16> to vector<1x18x64xbf16>
    tpu.vector_store %arg5[%c0_103, %c0_104, %c0_105], %115 {strides = array<i32>} : memref<1x18x64xbf16, #tpu.memory_space<vmem>>, vector<1x18x64xbf16>,
    return
  }
  func.func @transform_0(%arg0: i32) -> (i32, i32, i32) {
    %c0_i32 = arith.constant 0 : i32
    %c0_i32_0 = arith.constant 0 : i32
    %c0_i32_1 = arith.constant 0 : i32
    return %arg0, %c0_i32, %c0_i32_0 : i32, i32, i32
  }
  func.func @transform_1(%arg0: i32) -> (i32, i32, i32) {
    %c0_i32 = arith.constant 0 : i32
    %c0_i32_0 = arith.constant 0 : i32
    %c0_i32_1 = arith.constant 0 : i32
    %c0_i32_2 = arith.constant 0 : i32
    return %c0_i32, %c0_i32_0, %c0_i32_1 : i32, i32, i32
  }
  func.func @transform_2(%arg0: i32) -> (i32, i32) {
    %c0_i32 = arith.constant 0 : i32
    %c0_i32_0 = arith.constant 0 : i32
    %c0_i32_1 = arith.constant 0 : i32
    return %c0_i32, %c0_i32_0 : i32, i32
  }
  func.func @transform_3(%arg0: i32) -> (i32, i32) {
    %c0_i32 = arith.constant 0 : i32
    %c0_i32_0 = arith.constant 0 : i32
    %c0_i32_1 = arith.constant 0 : i32
    return %c0_i32, %c0_i32_0 : i32, i32
  }
  func.func @transform_4(%arg0: i32) -> (i32, i32, i32) {
    %c0_i32 = arith.constant 0 : i32
    %c0_i32_0 = arith.constant 0 : i32
    %c0_i32_1 = arith.constant 0 : i32
    return %arg0, %c0_i32, %c0_i32_0 : i32, i32, i32
  }
  func.func @transform_5(%arg0: i32) -> (i32, i32, i32) {
    %c0_i32 = arith.constant 0 : i32
    %c0_i32_0 = arith.constant 0 : i32
    %c0_i32_1 = arith.constant 0 : i32
    return %arg0, %c0_i32, %c0_i32_0 : i32, i32, i32
  }
  func.func @transform_6(%arg0: i32) -> (i32, i32, i32) {
    %c0_i32 = arith.constant 0 : i32
    %c0_i32_0 = arith.constant 0 : i32
    %c0_i32_1 = arith.constant 0 : i32
    return %arg0, %c0_i32, %c0_i32_0 : i32, i32, i32
  }
}

module attributes {stable_mosaic.version = 11 : i64} {
  func.func @_conv_s1_kernel(%arg0: i32, %arg1: memref<1x30x64xbf16, #tpu.memory_space<vmem>>, %arg2: memref<16x64x128xbf16, #tpu.memory_space<vmem>>, %arg3: memref<1x128xf32, #tpu.memory_space<vmem>>, %arg4: memref<1x10x128xf32, #tpu.memory_space<vmem>>) attributes {dimension_semantics = [#tpu.dimension_semantics<parallel>], iteration_bounds = array<i64: 2>, scalar_prefetch = 0 : i64, scratch_operands = 0 : i64, tpu.core_type = #tpu.core_type<tc>, window_params = [{transform_indices = @transform_0, window_bounds = array<i64: 1, 30, 64>}, {pipeline_mode = #tpu.pipeline_mode<synchronous>, transform_indices = @transform_1, window_bounds = array<i64: 16, 64, 128>}, {pipeline_mode = #tpu.pipeline_mode<synchronous>, transform_indices = @transform_2, window_bounds = array<i64: 1, 128>}, {transform_indices = @transform_3, window_bounds = array<i64: 1, 10, 128>}]} {
    %c0 = arith.constant 0 : index
    %c0_0 = arith.constant 0 : index
    %c0_1 = arith.constant 0 : index
    %0 = vector.load %arg1[%c0, %c0_0, %c0_1] : memref<1x30x64xbf16, #tpu.memory_space<vmem>>, vector<1x10x64xbf16>
    %1 = vector.shape_cast %0 : vector<1x10x64xbf16> to vector<10x64xbf16>
    %c0_2 = arith.constant 0 : index
    %c0_3 = arith.constant 0 : index
    %c0_4 = arith.constant 0 : index
    %2 = vector.load %arg2[%c0_2, %c0_3, %c0_4] : memref<16x64x128xbf16, #tpu.memory_space<vmem>>, vector<1x64x128xbf16>
    %3 = vector.shape_cast %2 : vector<1x64x128xbf16> to vector<64x128xbf16>
    %cst = arith.constant dense<0.000000e+00> : vector<10x128xf32>
    %4 = tpu.matmul %1, %3, %cst {dimension_numbers = #tpu.dot_dimension_numbers<[1], [0], [0], [1], [0, 0, 1, 1], [], []>} : vector<10x64xbf16>, vector<64x128xbf16>, vector<10x128xf32> -> vector<10x128xf32>
    %c0_5 = arith.constant 0 : index
    %c1 = arith.constant 1 : index
    %c0_6 = arith.constant 0 : index
    %5 = vector.load %arg1[%c0_5, %c1, %c0_6] : memref<1x30x64xbf16, #tpu.memory_space<vmem>>, vector<1x10x64xbf16>
    %6 = vector.shape_cast %5 : vector<1x10x64xbf16> to vector<10x64xbf16>
    %c1_7 = arith.constant 1 : index
    %c0_8 = arith.constant 0 : index
    %c0_9 = arith.constant 0 : index
    %7 = vector.load %arg2[%c1_7, %c0_8, %c0_9] : memref<16x64x128xbf16, #tpu.memory_space<vmem>>, vector<1x64x128xbf16>
    %8 = vector.shape_cast %7 : vector<1x64x128xbf16> to vector<64x128xbf16>
    %cst_10 = arith.constant dense<0.000000e+00> : vector<10x128xf32>
    %9 = tpu.matmul %6, %8, %cst_10 {dimension_numbers = #tpu.dot_dimension_numbers<[1], [0], [0], [1], [0, 0, 1, 1], [], []>} : vector<10x64xbf16>, vector<64x128xbf16>, vector<10x128xf32> -> vector<10x128xf32>
    %10 = arith.addf %4, %9 : vector<10x128xf32>
    %c0_11 = arith.constant 0 : index
    %c2 = arith.constant 2 : index
    %c0_12 = arith.constant 0 : index
    %11 = vector.load %arg1[%c0_11, %c2, %c0_12] : memref<1x30x64xbf16, #tpu.memory_space<vmem>>, vector<1x10x64xbf16>
    %12 = vector.shape_cast %11 : vector<1x10x64xbf16> to vector<10x64xbf16>
    %c2_13 = arith.constant 2 : index
    %c0_14 = arith.constant 0 : index
    %c0_15 = arith.constant 0 : index
    %13 = vector.load %arg2[%c2_13, %c0_14, %c0_15] : memref<16x64x128xbf16, #tpu.memory_space<vmem>>, vector<1x64x128xbf16>
    %14 = vector.shape_cast %13 : vector<1x64x128xbf16> to vector<64x128xbf16>
    %cst_16 = arith.constant dense<0.000000e+00> : vector<10x128xf32>
    %15 = tpu.matmul %12, %14, %cst_16 {dimension_numbers = #tpu.dot_dimension_numbers<[1], [0], [0], [1], [0, 0, 1, 1], [], []>} : vector<10x64xbf16>, vector<64x128xbf16>, vector<10x128xf32> -> vector<10x128xf32>
    %16 = arith.addf %10, %15 : vector<10x128xf32>
    %c0_17 = arith.constant 0 : index
    %c3 = arith.constant 3 : index
    %c0_18 = arith.constant 0 : index
    %17 = vector.load %arg1[%c0_17, %c3, %c0_18] : memref<1x30x64xbf16, #tpu.memory_space<vmem>>, vector<1x10x64xbf16>
    %18 = vector.shape_cast %17 : vector<1x10x64xbf16> to vector<10x64xbf16>
    %c3_19 = arith.constant 3 : index
    %c0_20 = arith.constant 0 : index
    %c0_21 = arith.constant 0 : index
    %19 = vector.load %arg2[%c3_19, %c0_20, %c0_21] : memref<16x64x128xbf16, #tpu.memory_space<vmem>>, vector<1x64x128xbf16>
    %20 = vector.shape_cast %19 : vector<1x64x128xbf16> to vector<64x128xbf16>
    %cst_22 = arith.constant dense<0.000000e+00> : vector<10x128xf32>
    %21 = tpu.matmul %18, %20, %cst_22 {dimension_numbers = #tpu.dot_dimension_numbers<[1], [0], [0], [1], [0, 0, 1, 1], [], []>} : vector<10x64xbf16>, vector<64x128xbf16>, vector<10x128xf32> -> vector<10x128xf32>
    %22 = arith.addf %16, %21 : vector<10x128xf32>
    %c0_23 = arith.constant 0 : index
    %c5 = arith.constant 5 : index
    %c0_24 = arith.constant 0 : index
    %23 = vector.load %arg1[%c0_23, %c5, %c0_24] : memref<1x30x64xbf16, #tpu.memory_space<vmem>>, vector<1x10x64xbf16>
    %24 = vector.shape_cast %23 : vector<1x10x64xbf16> to vector<10x64xbf16>
    %c4 = arith.constant 4 : index
    %c0_25 = arith.constant 0 : index
    %c0_26 = arith.constant 0 : index
    %25 = vector.load %arg2[%c4, %c0_25, %c0_26] : memref<16x64x128xbf16, #tpu.memory_space<vmem>>, vector<1x64x128xbf16>
    %26 = vector.shape_cast %25 : vector<1x64x128xbf16> to vector<64x128xbf16>
    %cst_27 = arith.constant dense<0.000000e+00> : vector<10x128xf32>
    %27 = tpu.matmul %24, %26, %cst_27 {dimension_numbers = #tpu.dot_dimension_numbers<[1], [0], [0], [1], [0, 0, 1, 1], [], []>} : vector<10x64xbf16>, vector<64x128xbf16>, vector<10x128xf32> -> vector<10x128xf32>
    %28 = arith.addf %22, %27 : vector<10x128xf32>
    %c0_28 = arith.constant 0 : index
    %c6 = arith.constant 6 : index
    %c0_29 = arith.constant 0 : index
    %29 = vector.load %arg1[%c0_28, %c6, %c0_29] : memref<1x30x64xbf16, #tpu.memory_space<vmem>>, vector<1x10x64xbf16>
    %30 = vector.shape_cast %29 : vector<1x10x64xbf16> to vector<10x64xbf16>
    %c5_30 = arith.constant 5 : index
    %c0_31 = arith.constant 0 : index
    %c0_32 = arith.constant 0 : index
    %31 = vector.load %arg2[%c5_30, %c0_31, %c0_32] : memref<16x64x128xbf16, #tpu.memory_space<vmem>>, vector<1x64x128xbf16>
    %32 = vector.shape_cast %31 : vector<1x64x128xbf16> to vector<64x128xbf16>
    %cst_33 = arith.constant dense<0.000000e+00> : vector<10x128xf32>
    %33 = tpu.matmul %30, %32, %cst_33 {dimension_numbers = #tpu.dot_dimension_numbers<[1], [0], [0], [1], [0, 0, 1, 1], [], []>} : vector<10x64xbf16>, vector<64x128xbf16>, vector<10x128xf32> -> vector<10x128xf32>
    %34 = arith.addf %28, %33 : vector<10x128xf32>
    %c0_34 = arith.constant 0 : index
    %c7 = arith.constant 7 : index
    %c0_35 = arith.constant 0 : index
    %35 = vector.load %arg1[%c0_34, %c7, %c0_35] : memref<1x30x64xbf16, #tpu.memory_space<vmem>>, vector<1x10x64xbf16>
    %36 = vector.shape_cast %35 : vector<1x10x64xbf16> to vector<10x64xbf16>
    %c6_36 = arith.constant 6 : index
    %c0_37 = arith.constant 0 : index
    %c0_38 = arith.constant 0 : index
    %37 = vector.load %arg2[%c6_36, %c0_37, %c0_38] : memref<16x64x128xbf16, #tpu.memory_space<vmem>>, vector<1x64x128xbf16>
    %38 = vector.shape_cast %37 : vector<1x64x128xbf16> to vector<64x128xbf16>
    %cst_39 = arith.constant dense<0.000000e+00> : vector<10x128xf32>
    %39 = tpu.matmul %36, %38, %cst_39 {dimension_numbers = #tpu.dot_dimension_numbers<[1], [0], [0], [1], [0, 0, 1, 1], [], []>} : vector<10x64xbf16>, vector<64x128xbf16>, vector<10x128xf32> -> vector<10x128xf32>
    %40 = arith.addf %34, %39 : vector<10x128xf32>
    %c0_40 = arith.constant 0 : index
    %c8 = arith.constant 8 : index
    %c0_41 = arith.constant 0 : index
    %41 = vector.load %arg1[%c0_40, %c8, %c0_41] : memref<1x30x64xbf16, #tpu.memory_space<vmem>>, vector<1x10x64xbf16>
    %42 = vector.shape_cast %41 : vector<1x10x64xbf16> to vector<10x64xbf16>
    %c7_42 = arith.constant 7 : index
    %c0_43 = arith.constant 0 : index
    %c0_44 = arith.constant 0 : index
    %43 = vector.load %arg2[%c7_42, %c0_43, %c0_44] : memref<16x64x128xbf16, #tpu.memory_space<vmem>>, vector<1x64x128xbf16>
    %44 = vector.shape_cast %43 : vector<1x64x128xbf16> to vector<64x128xbf16>
    %cst_45 = arith.constant dense<0.000000e+00> : vector<10x128xf32>
    %45 = tpu.matmul %42, %44, %cst_45 {dimension_numbers = #tpu.dot_dimension_numbers<[1], [0], [0], [1], [0, 0, 1, 1], [], []>} : vector<10x64xbf16>, vector<64x128xbf16>, vector<10x128xf32> -> vector<10x128xf32>
    %46 = arith.addf %40, %45 : vector<10x128xf32>
    %c0_46 = arith.constant 0 : index
    %c10 = arith.constant 10 : index
    %c0_47 = arith.constant 0 : index
    %47 = vector.load %arg1[%c0_46, %c10, %c0_47] : memref<1x30x64xbf16, #tpu.memory_space<vmem>>, vector<1x10x64xbf16>
    %48 = vector.shape_cast %47 : vector<1x10x64xbf16> to vector<10x64xbf16>
    %c8_48 = arith.constant 8 : index
    %c0_49 = arith.constant 0 : index
    %c0_50 = arith.constant 0 : index
    %49 = vector.load %arg2[%c8_48, %c0_49, %c0_50] : memref<16x64x128xbf16, #tpu.memory_space<vmem>>, vector<1x64x128xbf16>
    %50 = vector.shape_cast %49 : vector<1x64x128xbf16> to vector<64x128xbf16>
    %cst_51 = arith.constant dense<0.000000e+00> : vector<10x128xf32>
    %51 = tpu.matmul %48, %50, %cst_51 {dimension_numbers = #tpu.dot_dimension_numbers<[1], [0], [0], [1], [0, 0, 1, 1], [], []>} : vector<10x64xbf16>, vector<64x128xbf16>, vector<10x128xf32> -> vector<10x128xf32>
    %52 = arith.addf %46, %51 : vector<10x128xf32>
    %c0_52 = arith.constant 0 : index
    %c11 = arith.constant 11 : index
    %c0_53 = arith.constant 0 : index
    %53 = vector.load %arg1[%c0_52, %c11, %c0_53] : memref<1x30x64xbf16, #tpu.memory_space<vmem>>, vector<1x10x64xbf16>
    %54 = vector.shape_cast %53 : vector<1x10x64xbf16> to vector<10x64xbf16>
    %c9 = arith.constant 9 : index
    %c0_54 = arith.constant 0 : index
    %c0_55 = arith.constant 0 : index
    %55 = vector.load %arg2[%c9, %c0_54, %c0_55] : memref<16x64x128xbf16, #tpu.memory_space<vmem>>, vector<1x64x128xbf16>
    %56 = vector.shape_cast %55 : vector<1x64x128xbf16> to vector<64x128xbf16>
    %cst_56 = arith.constant dense<0.000000e+00> : vector<10x128xf32>
    %57 = tpu.matmul %54, %56, %cst_56 {dimension_numbers = #tpu.dot_dimension_numbers<[1], [0], [0], [1], [0, 0, 1, 1], [], []>} : vector<10x64xbf16>, vector<64x128xbf16>, vector<10x128xf32> -> vector<10x128xf32>
    %58 = arith.addf %52, %57 : vector<10x128xf32>
    %c0_57 = arith.constant 0 : index
    %c12 = arith.constant 12 : index
    %c0_58 = arith.constant 0 : index
    %59 = vector.load %arg1[%c0_57, %c12, %c0_58] : memref<1x30x64xbf16, #tpu.memory_space<vmem>>, vector<1x10x64xbf16>
    %60 = vector.shape_cast %59 : vector<1x10x64xbf16> to vector<10x64xbf16>
    %c10_59 = arith.constant 10 : index
    %c0_60 = arith.constant 0 : index
    %c0_61 = arith.constant 0 : index
    %61 = vector.load %arg2[%c10_59, %c0_60, %c0_61] : memref<16x64x128xbf16, #tpu.memory_space<vmem>>, vector<1x64x128xbf16>
    %62 = vector.shape_cast %61 : vector<1x64x128xbf16> to vector<64x128xbf16>
    %cst_62 = arith.constant dense<0.000000e+00> : vector<10x128xf32>
    %63 = tpu.matmul %60, %62, %cst_62 {dimension_numbers = #tpu.dot_dimension_numbers<[1], [0], [0], [1], [0, 0, 1, 1], [], []>} : vector<10x64xbf16>, vector<64x128xbf16>, vector<10x128xf32> -> vector<10x128xf32>
    %64 = arith.addf %58, %63 : vector<10x128xf32>
    %c0_63 = arith.constant 0 : index
    %c13 = arith.constant 13 : index
    %c0_64 = arith.constant 0 : index
    %65 = vector.load %arg1[%c0_63, %c13, %c0_64] : memref<1x30x64xbf16, #tpu.memory_space<vmem>>, vector<1x10x64xbf16>
    %66 = vector.shape_cast %65 : vector<1x10x64xbf16> to vector<10x64xbf16>
    %c11_65 = arith.constant 11 : index
    %c0_66 = arith.constant 0 : index
    %c0_67 = arith.constant 0 : index
    %67 = vector.load %arg2[%c11_65, %c0_66, %c0_67] : memref<16x64x128xbf16, #tpu.memory_space<vmem>>, vector<1x64x128xbf16>
    %68 = vector.shape_cast %67 : vector<1x64x128xbf16> to vector<64x128xbf16>
    %cst_68 = arith.constant dense<0.000000e+00> : vector<10x128xf32>
    %69 = tpu.matmul %66, %68, %cst_68 {dimension_numbers = #tpu.dot_dimension_numbers<[1], [0], [0], [1], [0, 0, 1, 1], [], []>} : vector<10x64xbf16>, vector<64x128xbf16>, vector<10x128xf32> -> vector<10x128xf32>
    %70 = arith.addf %64, %69 : vector<10x128xf32>
    %c0_69 = arith.constant 0 : index
    %c15 = arith.constant 15 : index
    %c0_70 = arith.constant 0 : index
    %71 = vector.load %arg1[%c0_69, %c15, %c0_70] : memref<1x30x64xbf16, #tpu.memory_space<vmem>>, vector<1x10x64xbf16>
    %72 = vector.shape_cast %71 : vector<1x10x64xbf16> to vector<10x64xbf16>
    %c12_71 = arith.constant 12 : index
    %c0_72 = arith.constant 0 : index
    %c0_73 = arith.constant 0 : index
    %73 = vector.load %arg2[%c12_71, %c0_72, %c0_73] : memref<16x64x128xbf16, #tpu.memory_space<vmem>>, vector<1x64x128xbf16>
    %74 = vector.shape_cast %73 : vector<1x64x128xbf16> to vector<64x128xbf16>
    %cst_74 = arith.constant dense<0.000000e+00> : vector<10x128xf32>
    %75 = tpu.matmul %72, %74, %cst_74 {dimension_numbers = #tpu.dot_dimension_numbers<[1], [0], [0], [1], [0, 0, 1, 1], [], []>} : vector<10x64xbf16>, vector<64x128xbf16>, vector<10x128xf32> -> vector<10x128xf32>
    %76 = arith.addf %70, %75 : vector<10x128xf32>
    %c0_75 = arith.constant 0 : index
    %c16 = arith.constant 16 : index
    %c0_76 = arith.constant 0 : index
    %77 = vector.load %arg1[%c0_75, %c16, %c0_76] : memref<1x30x64xbf16, #tpu.memory_space<vmem>>, vector<1x10x64xbf16>
    %78 = vector.shape_cast %77 : vector<1x10x64xbf16> to vector<10x64xbf16>
    %c13_77 = arith.constant 13 : index
    %c0_78 = arith.constant 0 : index
    %c0_79 = arith.constant 0 : index
    %79 = vector.load %arg2[%c13_77, %c0_78, %c0_79] : memref<16x64x128xbf16, #tpu.memory_space<vmem>>, vector<1x64x128xbf16>
    %80 = vector.shape_cast %79 : vector<1x64x128xbf16> to vector<64x128xbf16>
    %cst_80 = arith.constant dense<0.000000e+00> : vector<10x128xf32>
    %81 = tpu.matmul %78, %80, %cst_80 {dimension_numbers = #tpu.dot_dimension_numbers<[1], [0], [0], [1], [0, 0, 1, 1], [], []>} : vector<10x64xbf16>, vector<64x128xbf16>, vector<10x128xf32> -> vector<10x128xf32>
    %82 = arith.addf %76, %81 : vector<10x128xf32>
    %c0_81 = arith.constant 0 : index
    %c17 = arith.constant 17 : index
    %c0_82 = arith.constant 0 : index
    %83 = vector.load %arg1[%c0_81, %c17, %c0_82] : memref<1x30x64xbf16, #tpu.memory_space<vmem>>, vector<1x10x64xbf16>
    %84 = vector.shape_cast %83 : vector<1x10x64xbf16> to vector<10x64xbf16>
    %c14 = arith.constant 14 : index
    %c0_83 = arith.constant 0 : index
    %c0_84 = arith.constant 0 : index
    %85 = vector.load %arg2[%c14, %c0_83, %c0_84] : memref<16x64x128xbf16, #tpu.memory_space<vmem>>, vector<1x64x128xbf16>
    %86 = vector.shape_cast %85 : vector<1x64x128xbf16> to vector<64x128xbf16>
    %cst_85 = arith.constant dense<0.000000e+00> : vector<10x128xf32>
    %87 = tpu.matmul %84, %86, %cst_85 {dimension_numbers = #tpu.dot_dimension_numbers<[1], [0], [0], [1], [0, 0, 1, 1], [], []>} : vector<10x64xbf16>, vector<64x128xbf16>, vector<10x128xf32> -> vector<10x128xf32>
    %88 = arith.addf %82, %87 : vector<10x128xf32>
    %c0_86 = arith.constant 0 : index
    %c18 = arith.constant 18 : index
    %c0_87 = arith.constant 0 : index
    %89 = vector.load %arg1[%c0_86, %c18, %c0_87] : memref<1x30x64xbf16, #tpu.memory_space<vmem>>, vector<1x10x64xbf16>
    %90 = vector.shape_cast %89 : vector<1x10x64xbf16> to vector<10x64xbf16>
    %c15_88 = arith.constant 15 : index
    %c0_89 = arith.constant 0 : index
    %c0_90 = arith.constant 0 : index
    %91 = vector.load %arg2[%c15_88, %c0_89, %c0_90] : memref<16x64x128xbf16, #tpu.memory_space<vmem>>, vector<1x64x128xbf16>
    %92 = vector.shape_cast %91 : vector<1x64x128xbf16> to vector<64x128xbf16>
    %cst_91 = arith.constant dense<0.000000e+00> : vector<10x128xf32>
    %93 = tpu.matmul %90, %92, %cst_91 {dimension_numbers = #tpu.dot_dimension_numbers<[1], [0], [0], [1], [0, 0, 1, 1], [], []>} : vector<10x64xbf16>, vector<64x128xbf16>, vector<10x128xf32> -> vector<10x128xf32>
    %94 = arith.addf %88, %93 : vector<10x128xf32>
    %c0_92 = arith.constant 0 : index
    %c0_93 = arith.constant 0 : index
    %95 = vector.load %arg3[%c0_92, %c0_93] : memref<1x128xf32, #tpu.memory_space<vmem>>, vector<1x128xf32>
    %96 = vector.broadcast %95 : vector<1x128xf32> to vector<10x128xf32>
    %97 = arith.addf %94, %96 : vector<10x128xf32>
    %98 = arith.negf %97 : vector<10x128xf32>
    %99 = math.exp %98 : vector<10x128xf32>
    %cst_94 = arith.constant 1.000000e+00 : f32
    %100 = vector.broadcast %cst_94 : f32 to vector<10x128xf32>
    %101 = arith.addf %100, %99 : vector<10x128xf32>
    %102 = arith.divf %100, %101 : vector<10x128xf32>
    %c0_95 = arith.constant 0 : index
    %c0_96 = arith.constant 0 : index
    %c0_97 = arith.constant 0 : index
    %103 = vector.load %arg4[%c0_95, %c0_96, %c0_97] : memref<1x10x128xf32, #tpu.memory_space<vmem>>, vector<1x10x128xf32>
    %104 = vector.shape_cast %103 : vector<1x10x128xf32> to vector<10x128xf32>
    %105 = vector.shape_cast %102 : vector<10x128xf32> to vector<1x10x128xf32>
    tpu.vector_store %arg4[%c0_95, %c0_96, %c0_97], %105 {strides = array<i32>} : memref<1x10x128xf32, #tpu.memory_space<vmem>>, vector<1x10x128xf32>,
    return
  }
  func.func @transform_0(%arg0: i32) -> (i32, i32, i32) {
    %c0_i32 = arith.constant 0 : i32
    %c0_i32_0 = arith.constant 0 : i32
    %c0_i32_1 = arith.constant 0 : i32
    return %arg0, %c0_i32, %c0_i32_0 : i32, i32, i32
  }
  func.func @transform_1(%arg0: i32) -> (i32, i32, i32) {
    %c0_i32 = arith.constant 0 : i32
    %c0_i32_0 = arith.constant 0 : i32
    %c0_i32_1 = arith.constant 0 : i32
    %c0_i32_2 = arith.constant 0 : i32
    return %c0_i32, %c0_i32_0, %c0_i32_1 : i32, i32, i32
  }
  func.func @transform_2(%arg0: i32) -> (i32, i32) {
    %c0_i32 = arith.constant 0 : i32
    %c0_i32_0 = arith.constant 0 : i32
    %c0_i32_1 = arith.constant 0 : i32
    return %c0_i32, %c0_i32_0 : i32, i32
  }
  func.func @transform_3(%arg0: i32) -> (i32, i32, i32) {
    %c0_i32 = arith.constant 0 : i32
    %c0_i32_0 = arith.constant 0 : i32
    %c0_i32_1 = arith.constant 0 : i32
    return %arg0, %c0_i32, %c0_i32_0 : i32, i32, i32
  }
}

</mosaic_0001>

<llo_original>
// kernel: d_forward.5
$region0: #{d_forward.5}
  #allocation0 [shape = 'u32[]', space=smem, size = 0x4, offset = 0x4, fixed_abs, tag = 'smem constant byte address 0x4 - core index']
  #allocation1 [shape = 'u32[144,128]{1,0:T(1,128)}', space=vmem, size = 0x12000, scoped, tag = 'internal scratch']
  %s0 = inlined_call_operand.vmem [shape: bf16[512,96], index: 0, kind: input, shape index: {}]
  %s1 = inlined_call_operand.vmem [shape: bf16[96,8], index: 1, kind: input, shape index: {}]
  %s2 = inlined_call_operand.vmem [shape: f32[1,8], index: 2, kind: input, shape index: {}]
  %s3 = inlined_call_operand.vmem [shape: bf16[512,8], index: 3, kind: output, shape index: {}]
  %s4 = sld [smem:[#allocation0]]
  $region22: #{d_forward.5} parent=0
    _
  %s6 = ssub.s32 1, %s4
  %s7 = scalar_select 0, %s6, %s4
  // Predicated region
  $region2: #{d_forward.5} parent=0 // pred_check
    _
  $region3: #{d_forward.5} parent=0 // pred_check_branch
    %9 = sbr.rel (0) target = $region5
  $region4: #{d_forward.5} parent=0 // pred_region
    _
  $region5: #{d_forward.5} parent=0 // pred_fallthru
    _
  // Predicated region
  $region6: #{d_forward.5} parent=0 // pred_check
    _
  $region7: #{d_forward.5} parent=0 // pred_check_branch
    %11 = sbr.rel (0) target = $region9
  $region8: #{d_forward.5} parent=0 // pred_region
    _
  $region9: #{d_forward.5} parent=0 // pred_fallthru
    _
  // Predicated region
  $region10: #{d_forward.5} parent=0 // pred_check
    _
  $region11: #{d_forward.5} parent=0 // pred_check_branch
    %13 = sbr.rel (0) target = $region13
  $region12: #{d_forward.5} parent=0 // pred_region
    _
  $region13: #{d_forward.5} parent=0 // pred_fallthru
    _
  %v15 = vld [vmem:[%s0] sm:$0xf]
  %v16 = vld [vmem:[%s0 + $0x4] sm:$0xf]
  %v17 = vld [vmem:[%s0 + $0x8] sm:$0xf]
  %v18 = vld [vmem:[%s0 + $0xc] sm:$0xf]
  %v19 = vld [vmem:[%s0 + $0x10] sm:$0xf]
  %v20 = vld [vmem:[%s0 + $0x14] sm:$0xf]
  %v21 = vld [vmem:[%s0 + $0x18] sm:$0xf]
  %v22 = vld [vmem:[%s0 + $0x1c] sm:$0xf]
  %v23 = vld [vmem:[%s0 + $0x20] sm:$0xf]
  %v24 = vld [vmem:[%s0 + $0x24] sm:$0xf]
  %v25 = vld [vmem:[%s0 + $0x28] sm:$0xf]
  %v26 = vld [vmem:[%s0 + $0x2c] sm:$0xf]
  %v27 = vld [vmem:[%s0 + $0x30] sm:$0xf]
  %v28 = vld [vmem:[%s0 + $0x34] sm:$0xf]
  %v29 = vld [vmem:[%s0 + $0x38] sm:$0xf]
  %v30 = vld [vmem:[%s0 + $0x3c] sm:$0xf]
  %v31 = vld [vmem:[%s0 + $0x40] sm:$0xf]
  %v32 = vld [vmem:[%s0 + $0x44] sm:$0xf]
  %v33 = vld [vmem:[%s0 + $0x48] sm:$0xf]
  %v34 = vld [vmem:[%s0 + $0x4c] sm:$0xf]
  %v35 = vld [vmem:[%s0 + $0x50] sm:$0xf]
  %v36 = vld [vmem:[%s0 + $0x54] sm:$0xf]
  %v37 = vld [vmem:[%s0 + $0x58] sm:$0xf]
  %v38 = vld [vmem:[%s0 + $0x5c] sm:$0xf]
  %v39 = vld [vmem:[%s0 + $0x60] sm:$0xf]
  %v40 = vld [vmem:[%s0 + $0x64] sm:$0xf]
  %v41 = vld [vmem:[%s0 + $0x68] sm:$0xf]
  %v42 = vld [vmem:[%s0 + $0x6c] sm:$0xf]
  %v43 = vld [vmem:[%s0 + $0x70] sm:$0xf]
  %v44 = vld [vmem:[%s0 + $0x74] sm:$0xf]
  %v45 = vld [vmem:[%s0 + $0x78] sm:$0xf]
  %v46 = vld [vmem:[%s0 + $0x7c] sm:$0xf]
  %v47 = vld [vmem:[%s0 + $0x80] sm:$0xf]
  %v48 = vld [vmem:[%s0 + $0x84] sm:$0xf]
  %v49 = vld [vmem:[%s0 + $0x88] sm:$0xf]
  %v50 = vld [vmem:[%s0 + $0x8c] sm:$0xf]
  %v51 = vld [vmem:[%s0 + $0x90] sm:$0xf]
  %v52 = vld [vmem:[%s0 + $0x94] sm:$0xf]
  %v53 = vld [vmem:[%s0 + $0x98] sm:$0xf]
  %v54 = vld [vmem:[%s0 + $0x9c] sm:$0xf]
  %v55 = vld [vmem:[%s0 + $0xa0] sm:$0xf]
  %v56 = vld [vmem:[%s0 + $0xa4] sm:$0xf]
  %v57 = vld [vmem:[%s0 + $0xa8] sm:$0xf]
  %v58 = vld [vmem:[%s0 + $0xac] sm:$0xf]
  %v59 = vld [vmem:[%s0 + $0xb0] sm:$0xf]
  %v60 = vld [vmem:[%s0 + $0xb4] sm:$0xf]
  %v61 = vld [vmem:[%s0 + $0xb8] sm:$0xf]
  %v62 = vld [vmem:[%s0 + $0xbc] sm:$0xf]
  %v63 = vld [vmem:[%s0 + $0xc0] sm:$0xf]
  %v64 = vld [vmem:[%s0 + $0xc4] sm:$0xf]
  %v65 = vld [vmem:[%s0 + $0xc8] sm:$0xf]
  %v66 = vld [vmem:[%s0 + $0xcc] sm:$0xf]
  %v67 = vld [vmem:[%s0 + $0xd0] sm:$0xf]
  %v68 = vld [vmem:[%s0 + $0xd4] sm:$0xf]
  %v69 = vld [vmem:[%s0 + $0xd8] sm:$0xf]
  %v70 = vld [vmem:[%s0 + $0xdc] sm:$0xf]
  %v71 = vld [vmem:[%s0 + $0xe0] sm:$0xf]
  %v72 = vld [vmem:[%s0 + $0xe4] sm:$0xf]
  %v73 = vld [vmem:[%s0 + $0xe8] sm:$0xf]
  %v74 = vld [vmem:[%s0 + $0xec] sm:$0xf]
  %v75 = vld [vmem:[%s0 + $0xf0] sm:$0xf]
  %v76 = vld [vmem:[%s0 + $0xf4] sm:$0xf]
  %v77 = vld [vmem:[%s0 + $0xf8] sm:$0xf]
  %v78 = vld [vmem:[%s0 + $0xfc] sm:$0xf]
  %v79 = vld [vmem:[%s1] sm:$0xf]
  %v80 = vld [vmem:[%s1 + $0x4] sm:$0xf]
  %v81 = vld [vmem:[%s1 + $0x8] sm:$0xf]
  %v82 = vld [vmem:[%s1 + $0xc] sm:$0xf]
  %v83 = vld [vmem:[%s1 + $0x10] sm:$0xf]
  %v84 = vld [vmem:[%s1 + $0x14] sm:$0xf]
  %v85 = vld [vmem:[%s1 + $0x18] sm:$0xf]
  %v86 = vld [vmem:[%s1 + $0x1c] sm:$0xf]
  %v87 = vld [vmem:[%s1 + $0x20] sm:$0xf]
  %v88 = vld [vmem:[%s1 + $0x24] sm:$0xf]
  %v89 = vld [vmem:[%s1 + $0x28] sm:$0xf]
  %v90 = vld [vmem:[%s1 + $0x2c] sm:$0xf]
  %v91 = vld [vmem:[%s2] sm:$0x1]
  %v93 = vlaneseq
  %v94 = vshrl.u32 %v93, 7
  %v95 = vsub.s32 0, %v94
  %v96 = vrot.slane %v91, %v95
  %v162 = vunpack.c.l.b16 %v15
  %v163 = vunpack.c.l.b16 %v16
  %v164 = vunpack.c.l.b16 %v17
  %v165 = vunpack.c.l.b16 %v18
  %v166 = vunpack.c.l.b16 %v19
  %v167 = vunpack.c.l.b16 %v20
  %v168 = vunpack.c.l.b16 %v21
  %v169 = vunpack.c.l.b16 %v22
  %v170 = vunpack.c.l.b16 %v23
  %v171 = vunpack.c.l.b16 %v24
  %v172 = vunpack.c.l.b16 %v25
  %v173 = vunpack.c.l.b16 %v26
  %v174 = vunpack.c.l.b16 %v27
  %v175 = vunpack.c.l.b16 %v28
  %v176 = vunpack.c.l.b16 %v29
  %v177 = vunpack.c.l.b16 %v30
  %v178 = vunpack.c.l.b16 %v31
  %v179 = vunpack.c.l.b16 %v32
  %v180 = vunpack.c.l.b16 %v33
  %v181 = vunpack.c.l.b16 %v34
  %v182 = vunpack.c.l.b16 %v35
  %v183 = vunpack.c.l.b16 %v36
  %v184 = vunpack.c.l.b16 %v37
  %v185 = vunpack.c.l.b16 %v38
  %v186 = vunpack.c.l.b16 %v39
  %v187 = vunpack.c.l.b16 %v40
  %v188 = vunpack.c.l.b16 %v41
  %v189 = vunpack.c.l.b16 %v42
  %v190 = vunpack.c.l.b16 %v43
  %v191 = vunpack.c.l.b16 %v44
  %v192 = vunpack.c.l.b16 %v45
  %v193 = vunpack.c.l.b16 %v46
  %v194 = vunpack.c.l.b16 %v47
  %v195 = vunpack.c.l.b16 %v48
  %v196 = vunpack.c.l.b16 %v49
  %v197 = vunpack.c.l.b16 %v50
  %v198 = vunpack.c.l.b16 %v51
  %v199 = vunpack.c.l.b16 %v52
  %v200 = vunpack.c.l.b16 %v53
  %v201 = vunpack.c.l.b16 %v54
  %v202 = vunpack.c.l.b16 %v55
  %v203 = vunpack.c.l.b16 %v56
  %v204 = vunpack.c.l.b16 %v57
  %v205 = vunpack.c.l.b16 %v58
  %v206 = vunpack.c.l.b16 %v59
  %v207 = vunpack.c.l.b16 %v60
  %v208 = vunpack.c.l.b16 %v61
  %v209 = vunpack.c.l.b16 %v62
  %v210 = vunpack.c.l.b16 %v63
  %v211 = vunpack.c.l.b16 %v64
  %v212 = vunpack.c.l.b16 %v65
  %v213 = vunpack.c.l.b16 %v66
  %v214 = vunpack.c.l.b16 %v67
  %v215 = vunpack.c.l.b16 %v68
  %v216 = vunpack.c.l.b16 %v69
  %v217 = vunpack.c.l.b16 %v70
  %v218 = vunpack.c.l.b16 %v71
  %v219 = vunpack.c.l.b16 %v72
  %v220 = vunpack.c.l.b16 %v73
  %v221 = vunpack.c.l.b16 %v74
  %v222 = vunpack.c.l.b16 %v75
  %v223 = vunpack.c.l.b16 %v76
  %v224 = vunpack.c.l.b16 %v77
  %v225 = vunpack.c.l.b16 %v78
  %v226 = vpack.c.b16 %v163, %v162
  %v227 = vpack.c.b16 %v165, %v164
  %v228 = vpack.c.b16 %v167, %v166
  %v229 = vpack.c.b16 %v169, %v168
  %v230 = vpack.c.b16 %v171, %v170
  %v231 = vpack.c.b16 %v173, %v172
  %v232 = vpack.c.b16 %v175, %v174
  %v233 = vpack.c.b16 %v177, %v176
  %v234 = vpack.c.b16 %v179, %v178
  %v235 = vpack.c.b16 %v181, %v180
  %v236 = vpack.c.b16 %v183, %v182
  %v237 = vpack.c.b16 %v185, %v184
  %v238 = vpack.c.b16 %v187, %v186
  %v239 = vpack.c.b16 %v189, %v188
  %v240 = vpack.c.b16 %v191, %v190
  %v241 = vpack.c.b16 %v193, %v192
  %v242 = vpack.c.b16 %v195, %v194
  %v243 = vpack.c.b16 %v197, %v196
  %v244 = vpack.c.b16 %v199, %v198
  %v245 = vpack.c.b16 %v201, %v200
  %v246 = vpack.c.b16 %v203, %v202
  %v247 = vpack.c.b16 %v205, %v204
  %v248 = vpack.c.b16 %v207, %v206
  %v249 = vpack.c.b16 %v209, %v208
  %v250 = vpack.c.b16 %v211, %v210
  %v251 = vpack.c.b16 %v213, %v212
  %v252 = vpack.c.b16 %v215, %v214
  %v253 = vpack.c.b16 %v217, %v216
  %v254 = vpack.c.b16 %v219, %v218
  %v255 = vpack.c.b16 %v221, %v220
  %v256 = vpack.c.b16 %v223, %v222
  %v257 = vpack.c.b16 %v225, %v224
  %v270 = vunpack.c.l.b16 %v79
  %v271 = vunpack.c.l.b16 %v80
  %v272 = vunpack.c.l.b16 %v81
  %v273 = vunpack.c.l.b16 %v82
  %v274 = vunpack.c.l.b16 %v83
  %v275 = vunpack.c.l.b16 %v84
  %v276 = vunpack.c.l.b16 %v85
  %v277 = vunpack.c.l.b16 %v86
  %v278 = vunpack.c.l.b16 %v87
  %v279 = vunpack.c.l.b16 %v88
  %v280 = vunpack.c.l.b16 %v89
  %v281 = vunpack.c.l.b16 %v90
  %v282 = vpack.c.b16 %v271, %v270
  %v283 = vpack.c.b16 %v273, %v272
  %v284 = vpack.c.b16 %v275, %v274
  %v285 = vpack.c.b16 %v277, %v276
  %v286 = vpack.c.b16 %v279, %v278
  %v287 = vpack.c.b16 %v281, %v280
  %vm294 = vcmask 785408
  %v296 = vsel %vm294, %v226, 0
  %v299 = vsel %vm294, %v227, 0
  %v302 = vsel %vm294, %v228, 0
  %v305 = vsel %vm294, %v229, 0
  %v308 = vsel %vm294, %v230, 0
  %v311 = vsel %vm294, %v231, 0
  %v314 = vsel %vm294, %v232, 0
  %v317 = vsel %vm294, %v233, 0
  %v320 = vsel %vm294, %v234, 0
  %v323 = vsel %vm294, %v235, 0
  %v326 = vsel %vm294, %v236, 0
  %v329 = vsel %vm294, %v237, 0
  %v332 = vsel %vm294, %v238, 0
  %v335 = vsel %vm294, %v239, 0
  %v338 = vsel %vm294, %v240, 0
  %v341 = vsel %vm294, %v241, 0
  %v344 = vsel %vm294, %v242, 0
  %v347 = vsel %vm294, %v243, 0
  %v350 = vsel %vm294, %v244, 0
  %v353 = vsel %vm294, %v245, 0
  %v356 = vsel %vm294, %v246, 0
  %v359 = vsel %vm294, %v247, 0
  %v362 = vsel %vm294, %v248, 0
  %v365 = vsel %vm294, %v249, 0
  %v368 = vsel %vm294, %v250, 0
  %v371 = vsel %vm294, %v251, 0
  %v374 = vsel %vm294, %v252, 0
  %v377 = vsel %vm294, %v253, 0
  %v380 = vsel %vm294, %v254, 0
  %v383 = vsel %vm294, %v255, 0
  %v386 = vsel %vm294, %v256, 0
  %v389 = vsel %vm294, %v257, 0
  %391 = vmatprep.subr.bf16.mxu0 0
  %392 = vmatpush1.bf16.msra.mxu0 %v282
  %393 = vmatprep.subr.bf16.mxu0 0
  %394 = vmatpush1.bf16.msra.mxu0 %v283
  %395 = vmatprep.subr.bf16.mxu0 0
  %396 = vmatpush1.bf16.msra.mxu0 %v284
  %397 = vmatprep.subr.bf16.mxu0 0
  %398 = vmatpush1.bf16.msra.mxu0 %v285
  %399 = vmatprep.subr.bf16.mxu0 0
  %400 = vmatpush1.bf16.msra.mxu0 %v286
  %401 = vmatprep.subr.bf16.mxu0 0
  %402 = vmatpush1.bf16.msra.mxu0 %v287
  %403 = vmatprep.subr.bf16.mxu0 0
  %404 = vmatpush1.bf16.msra.mxu0 0
  %405 = vmatprep.subr.bf16.mxu0 0
  %406 = vmatpush1.bf16.msra.mxu0 0
  %407 = vmatprep.subr.bf16.mxu0 0
  %408 = vmatpush1.bf16.msra.mxu0 0
  %409 = vmatprep.subr.bf16.mxu0 0
  %410 = vmatpush1.bf16.msra.mxu0 0
  %411 = vmatprep.subr.bf16.mxu0 0
  %412 = vmatpush1.bf16.msra.mxu0 0
  %413 = vmatprep.subr.bf16.mxu0 0
  %414 = vmatpush1.bf16.msra.mxu0 0
  %415 = vmatprep.subr.bf16.mxu0 0
  %416 = vmatpush1.bf16.msra.mxu0 0
  %417 = vmatprep.subr.bf16.mxu0 0
  %418 = vmatpush1.bf16.msra.mxu0 0
  %419 = vmatprep.subr.bf16.mxu0 0
  %420 = vmatpush1.bf16.msra.mxu0 0
  %421 = vmatprep.subr.bf16.mxu0 0
  %422 = vmatpush1.bf16.msra.mxu0 0
  %423 = vmatprep.mubr.bf16.mxu0 0
  %424 = vmatmul.mubr.bf16.gmra.mrb[0].mxu0 %v296
  %v425 = vpop.f32.mrb[0].mxu0
  %v426 = vadd.f32 %v96, %v425
  %v427 = vpop.f32.mrb[0].mxu0
  %v428 = vpop.f32.mrb[0].mxu0
  %v429 = vadd.f32 %v96, %v428
  %v430 = vpop.f32.mrb[0].mxu0
  %431 = vmatprep.mubr.bf16.mxu0 0
  %432 = vmatmul.mubr.bf16.gmra.mrb[0].mxu0 %v299
  %v433 = vpop.f32.mrb[0].mxu0
  %v434 = vadd.f32 %v96, %v433
  %v435 = vpop.f32.mrb[0].mxu0
  %v436 = vpop.f32.mrb[0].mxu0
  %v437 = vadd.f32 %v96, %v436
  %v438 = vpop.f32.mrb[0].mxu0
  %439 = vmatprep.mubr.bf16.mxu0 0
  %440 = vmatmul.mubr.bf16.gmra.mrb[0].mxu0 %v302
  %v441 = vpop.f32.mrb[0].mxu0
  %v442 = vadd.f32 %v96, %v441
  %v443 = vpop.f32.mrb[0].mxu0
  %v444 = vpop.f32.mrb[0].mxu0
  %v445 = vadd.f32 %v96, %v444
  %v446 = vpop.f32.mrb[0].mxu0
  %447 = vmatprep.mubr.bf16.mxu0 0
  %448 = vmatmul.mubr.bf16.gmra.mrb[0].mxu0 %v305
  %v449 = vpop.f32.mrb[0].mxu0
  %v450 = vadd.f32 %v96, %v449
  %v451 = vpop.f32.mrb[0].mxu0
  %v452 = vpop.f32.mrb[0].mxu0
  %v453 = vadd.f32 %v96, %v452
  %v454 = vpop.f32.mrb[0].mxu0
  %455 = vmatprep.mubr.bf16.mxu0 0
  %456 = vmatmul.mubr.bf16.gmra.mrb[0].mxu0 %v308
  %v457 = vpop.f32.mrb[0].mxu0
  %v458 = vadd.f32 %v96, %v457
  %v459 = vpop.f32.mrb[0].mxu0
  %v460 = vpop.f32.mrb[0].mxu0
  %v461 = vadd.f32 %v96, %v460
  %v462 = vpop.f32.mrb[0].mxu0
  %463 = vmatprep.mubr.bf16.mxu0 0
  %464 = vmatmul.mubr.bf16.gmra.mrb[0].mxu0 %v311
  %v465 = vpop.f32.mrb[0].mxu0
  %v466 = vadd.f32 %v96, %v465
  %v467 = vpop.f32.mrb[0].mxu0
  %v468 = vpop.f32.mrb[0].mxu0
  %v469 = vadd.f32 %v96, %v468
  %v470 = vpop.f32.mrb[0].mxu0
  %471 = vmatprep.mubr.bf16.mxu0 0
  %472 = vmatmul.mubr.bf16.gmra.mrb[0].mxu0 %v314
  %v473 = vpop.f32.mrb[0].mxu0
  %v474 = vadd.f32 %v96, %v473
  %v475 = vpop.f32.mrb[0].mxu0
  %v476 = vpop.f32.mrb[0].mxu0
  %v477 = vadd.f32 %v96, %v476
  %v478 = vpop.f32.mrb[0].mxu0
  %479 = vmatprep.mubr.bf16.mxu0 0
  %480 = vmatmul.mubr.bf16.gmra.mrb[0].mxu0 %v317
  %v481 = vpop.f32.mrb[0].mxu0
  %v482 = vadd.f32 %v96, %v481
  %v483 = vpop.f32.mrb[0].mxu0
  %v484 = vpop.f32.mrb[0].mxu0
  %v485 = vadd.f32 %v96, %v484
  %v486 = vpop.f32.mrb[0].mxu0
  %487 = vmatprep.mubr.bf16.mxu0 0
  %488 = vmatmul.mubr.bf16.gmra.mrb[0].mxu0 %v320
  %v489 = vpop.f32.mrb[0].mxu0
  %v490 = vadd.f32 %v96, %v489
  %v491 = vpop.f32.mrb[0].mxu0
  %v492 = vpop.f32.mrb[0].mxu0
  %v493 = vadd.f32 %v96, %v492
  %v494 = vpop.f32.mrb[0].mxu0
  %495 = vmatprep.mubr.bf16.mxu0 0
  %496 = vmatmul.mubr.bf16.gmra.mrb[0].mxu0 %v323
  %v497 = vpop.f32.mrb[0].mxu0
  %v498 = vadd.f32 %v96, %v497
  %v499 = vpop.f32.mrb[0].mxu0
  %v500 = vpop.f32.mrb[0].mxu0
  %v501 = vadd.f32 %v96, %v500
  %v502 = vpop.f32.mrb[0].mxu0
  %503 = vmatprep.mubr.bf16.mxu0 0
  %504 = vmatmul.mubr.bf16.gmra.mrb[0].mxu0 %v326
  %v505 = vpop.f32.mrb[0].mxu0
  %v506 = vadd.f32 %v96, %v505
  %v507 = vpop.f32.mrb[0].mxu0
  %v508 = vpop.f32.mrb[0].mxu0
  %v509 = vadd.f32 %v96, %v508
  %v510 = vpop.f32.mrb[0].mxu0
  %511 = vmatprep.mubr.bf16.mxu0 0
  %512 = vmatmul.mubr.bf16.gmra.mrb[0].mxu0 %v329
  %v513 = vpop.f32.mrb[0].mxu0
  %v514 = vadd.f32 %v96, %v513
  %v515 = vpop.f32.mrb[0].mxu0
  %v516 = vpop.f32.mrb[0].mxu0
  %v517 = vadd.f32 %v96, %v516
  %v518 = vpop.f32.mrb[0].mxu0
  %519 = vmatprep.mubr.bf16.mxu0 0
  %520 = vmatmul.mubr.bf16.gmra.mrb[0].mxu0 %v332
  %v521 = vpop.f32.mrb[0].mxu0
  %v522 = vadd.f32 %v96, %v521
  %v523 = vpop.f32.mrb[0].mxu0
  %v524 = vpop.f32.mrb[0].mxu0
  %v525 = vadd.f32 %v96, %v524
  %v526 = vpop.f32.mrb[0].mxu0
  %527 = vmatprep.mubr.bf16.mxu0 0
  %528 = vmatmul.mubr.bf16.gmra.mrb[0].mxu0 %v335
  %v529 = vpop.f32.mrb[0].mxu0
  %v530 = vadd.f32 %v96, %v529
  %v531 = vpop.f32.mrb[0].mxu0
  %v532 = vpop.f32.mrb[0].mxu0
  %v533 = vadd.f32 %v96, %v532
  %v534 = vpop.f32.mrb[0].mxu0
  %535 = vmatprep.mubr.bf16.mxu0 0
  %536 = vmatmul.mubr.bf16.gmra.mrb[0].mxu0 %v338
  %v537 = vpop.f32.mrb[0].mxu0
  %v538 = vadd.f32 %v96, %v537
  %v539 = vpop.f32.mrb[0].mxu0
  %v540 = vpop.f32.mrb[0].mxu0
  %v541 = vadd.f32 %v96, %v540
  %v542 = vpop.f32.mrb[0].mxu0
  %543 = vmatprep.mubr.bf16.mxu0 0
  %544 = vmatmul.mubr.bf16.gmra.mrb[0].mxu0 %v341
  %v545 = vpop.f32.mrb[0].mxu0
  %v546 = vadd.f32 %v96, %v545
  %v547 = vpop.f32.mrb[0].mxu0
  %v548 = vpop.f32.mrb[0].mxu0
  %v549 = vadd.f32 %v96, %v548
  %v550 = vpop.f32.mrb[0].mxu0
  %551 = vmatprep.mubr.bf16.mxu0 0
  %552 = vmatmul.mubr.bf16.gmra.mrb[0].mxu0 %v344
  %v553 = vpop.f32.mrb[0].mxu0
  %v554 = vadd.f32 %v96, %v553
  %v555 = vpop.f32.mrb[0].mxu0
  %v556 = vpop.f32.mrb[0].mxu0
  %v557 = vadd.f32 %v96, %v556
  %v558 = vpop.f32.mrb[0].mxu0
  %559 = vmatprep.mubr.bf16.mxu0 0
  %560 = vmatmul.mubr.bf16.gmra.mrb[0].mxu0 %v347
  %v561 = vpop.f32.mrb[0].mxu0
  %v562 = vadd.f32 %v96, %v561
  %v563 = vpop.f32.mrb[0].mxu0
  %v564 = vpop.f32.mrb[0].mxu0
  %v565 = vadd.f32 %v96, %v564
  %v566 = vpop.f32.mrb[0].mxu0
  %567 = vmatprep.mubr.bf16.mxu0 0
  %568 = vmatmul.mubr.bf16.gmra.mrb[0].mxu0 %v350
  %v569 = vpop.f32.mrb[0].mxu0
  %v570 = vadd.f32 %v96, %v569
  %v571 = vpop.f32.mrb[0].mxu0
  %v572 = vpop.f32.mrb[0].mxu0
  %v573 = vadd.f32 %v96, %v572
  %v574 = vpop.f32.mrb[0].mxu0
  %575 = vmatprep.mubr.bf16.mxu0 0
  %576 = vmatmul.mubr.bf16.gmra.mrb[0].mxu0 %v353
  %v577 = vpop.f32.mrb[0].mxu0
  %v578 = vadd.f32 %v96, %v577
  %v579 = vpop.f32.mrb[0].mxu0
  %v580 = vpop.f32.mrb[0].mxu0
  %v581 = vadd.f32 %v96, %v580
  %v582 = vpop.f32.mrb[0].mxu0
  %583 = vmatprep.mubr.bf16.mxu0 0
  %584 = vmatmul.mubr.bf16.gmra.mrb[0].mxu0 %v356
  %v585 = vpop.f32.mrb[0].mxu0
  %v586 = vadd.f32 %v96, %v585
  %v587 = vpop.f32.mrb[0].mxu0
  %v588 = vpop.f32.mrb[0].mxu0
  %v589 = vadd.f32 %v96, %v588
  %v590 = vpop.f32.mrb[0].mxu0
  %591 = vmatprep.mubr.bf16.mxu0 0
  %592 = vmatmul.mubr.bf16.gmra.mrb[0].mxu0 %v359
  %v593 = vpop.f32.mrb[0].mxu0
  %v594 = vadd.f32 %v96, %v593
  %v595 = vpop.f32.mrb[0].mxu0
  %v596 = vpop.f32.mrb[0].mxu0
  %v597 = vadd.f32 %v96, %v596
  %v598 = vpop.f32.mrb[0].mxu0
  %599 = vmatprep.mubr.bf16.mxu0 0
  %600 = vmatmul.mubr.bf16.gmra.mrb[0].mxu0 %v362
  %v601 = vpop.f32.mrb[0].mxu0
  %v602 = vadd.f32 %v96, %v601
  %v603 = vpop.f32.mrb[0].mxu0
  %v604 = vpop.f32.mrb[0].mxu0
  %v605 = vadd.f32 %v96, %v604
  %v606 = vpop.f32.mrb[0].mxu0
  %607 = vmatprep.mubr.bf16.mxu0 0
  %608 = vmatmul.mubr.bf16.gmra.mrb[0].mxu0 %v365
  %v609 = vpop.f32.mrb[0].mxu0
  %v610 = vadd.f32 %v96, %v609
  %v611 = vpop.f32.mrb[0].mxu0
  %v612 = vpop.f32.mrb[0].mxu0
  %v613 = vadd.f32 %v96, %v612
  %v614 = vpop.f32.mrb[0].mxu0
  %615 = vmatprep.mubr.bf16.mxu0 0
  %616 = vmatmul.mubr.bf16.gmra.mrb[0].mxu0 %v368
  %v617 = vpop.f32.mrb[0].mxu0
  %v618 = vadd.f32 %v96, %v617
  %v619 = vpop.f32.mrb[0].mxu0
  %v620 = vpop.f32.mrb[0].mxu0
  %v621 = vadd.f32 %v96, %v620
  %v622 = vpop.f32.mrb[0].mxu0
  %623 = vmatprep.mubr.bf16.mxu0 0
  %624 = vmatmul.mubr.bf16.gmra.mrb[0].mxu0 %v371
  %v625 = vpop.f32.mrb[0].mxu0
  %v626 = vadd.f32 %v96, %v625
  %v627 = vpop.f32.mrb[0].mxu0
  %v628 = vpop.f32.mrb[0].mxu0
  %v629 = vadd.f32 %v96, %v628
  %v630 = vpop.f32.mrb[0].mxu0
  %631 = vmatprep.mubr.bf16.mxu0 0
  %632 = vmatmul.mubr.bf16.gmra.mrb[0].mxu0 %v374
  %v633 = vpop.f32.mrb[0].mxu0
  %v634 = vadd.f32 %v96, %v633
  %v635 = vpop.f32.mrb[0].mxu0
  %v636 = vpop.f32.mrb[0].mxu0
  %v637 = vadd.f32 %v96, %v636
  %v638 = vpop.f32.mrb[0].mxu0
  %639 = vmatprep.mubr.bf16.mxu0 0
  %640 = vmatmul.mubr.bf16.gmra.mrb[0].mxu0 %v377
  %v641 = vpop.f32.mrb[0].mxu0
  %v642 = vadd.f32 %v96, %v641
  %v643 = vpop.f32.mrb[0].mxu0
  %v644 = vpop.f32.mrb[0].mxu0
  %v645 = vadd.f32 %v96, %v644
  %v646 = vpop.f32.mrb[0].mxu0
  %647 = vmatprep.mubr.bf16.mxu0 0
  %648 = vmatmul.mubr.bf16.gmra.mrb[0].mxu0 %v380
  %v649 = vpop.f32.mrb[0].mxu0
  %v650 = vadd.f32 %v96, %v649
  %v651 = vpop.f32.mrb[0].mxu0
  %v652 = vpop.f32.mrb[0].mxu0
  %v653 = vadd.f32 %v96, %v652
  %v654 = vpop.f32.mrb[0].mxu0
  %655 = vmatprep.mubr.bf16.mxu0 0
  %656 = vmatmul.mubr.bf16.gmra.mrb[0].mxu0 %v383
  %v657 = vpop.f32.mrb[0].mxu0
  %v658 = vadd.f32 %v96, %v657
  %v659 = vpop.f32.mrb[0].mxu0
  %v660 = vpop.f32.mrb[0].mxu0
  %v661 = vadd.f32 %v96, %v660
  %v662 = vpop.f32.mrb[0].mxu0
  %663 = vmatprep.mubr.bf16.mxu0 0
  %664 = vmatmul.mubr.bf16.gmra.mrb[0].mxu0 %v386
  %v665 = vpop.f32.mrb[0].mxu0
  %v666 = vadd.f32 %v96, %v665
  %v667 = vpop.f32.mrb[0].mxu0
  %v668 = vpop.f32.mrb[0].mxu0
  %v669 = vadd.f32 %v96, %v668
  %v670 = vpop.f32.mrb[0].mxu0
  %671 = vmatprep.mubr.bf16.mxu0 0
  %672 = vmatmul.mubr.bf16.gmra.mrb[0].mxu0 %v389
  %v673 = vpop.f32.mrb[0].mxu0
  %v674 = vadd.f32 %v96, %v673
  %v675 = vpop.f32.mrb[0].mxu0
  %v676 = vpop.f32.mrb[0].mxu0
  %v677 = vadd.f32 %v96, %v676
  %v678 = vpop.f32.mrb[0].mxu0
  %679 = vdwg.mxu0
  %vm680 = vcmp.ge.f32.partialorder %v426, 0.0
  %vm681 = vcmp.ge.f32.partialorder %v429, 0.0
  %vm682 = vcmp.ge.f32.partialorder %v434, 0.0
  %vm683 = vcmp.ge.f32.partialorder %v437, 0.0
  %vm684 = vcmp.ge.f32.partialorder %v442, 0.0
  %vm685 = vcmp.ge.f32.partialorder %v445, 0.0
  %vm686 = vcmp.ge.f32.partialorder %v450, 0.0
  %vm687 = vcmp.ge.f32.partialorder %v453, 0.0
  %vm688 = vcmp.ge.f32.partialorder %v458, 0.0
  %vm689 = vcmp.ge.f32.partialorder %v461, 0.0
  %vm690 = vcmp.ge.f32.partialorder %v466, 0.0
  %vm691 = vcmp.ge.f32.partialorder %v469, 0.0
  %vm692 = vcmp.ge.f32.partialorder %v474, 0.0
  %vm693 = vcmp.ge.f32.partialorder %v477, 0.0
  %vm694 = vcmp.ge.f32.partialorder %v482, 0.0
  %vm695 = vcmp.ge.f32.partialorder %v485, 0.0
  %vm696 = vcmp.ge.f32.partialorder %v490, 0.0
  %vm697 = vcmp.ge.f32.partialorder %v493, 0.0
  %vm698 = vcmp.ge.f32.partialorder %v498, 0.0
  %vm699 = vcmp.ge.f32.partialorder %v501, 0.0
  %vm700 = vcmp.ge.f32.partialorder %v506, 0.0
  %vm701 = vcmp.ge.f32.partialorder %v509, 0.0
  %vm702 = vcmp.ge.f32.partialorder %v514, 0.0
  %vm703 = vcmp.ge.f32.partialorder %v517, 0.0
  %vm704 = vcmp.ge.f32.partialorder %v522, 0.0
  %vm705 = vcmp.ge.f32.partialorder %v525, 0.0
  %vm706 = vcmp.ge.f32.partialorder %v530, 0.0
  %vm707 = vcmp.ge.f32.partialorder %v533, 0.0
  %vm708 = vcmp.ge.f32.partialorder %v538, 0.0
  %vm709 = vcmp.ge.f32.partialorder %v541, 0.0
  %vm710 = vcmp.ge.f32.partialorder %v546, 0.0
  %vm711 = vcmp.ge.f32.partialorder %v549, 0.0
  %vm712 = vcmp.ge.f32.partialorder %v554, 0.0
  %vm713 = vcmp.ge.f32.partialorder %v557, 0.0
  %vm714 = vcmp.ge.f32.partialorder %v562, 0.0
  %vm715 = vcmp.ge.f32.partialorder %v565, 0.0
  %vm716 = vcmp.ge.f32.partialorder %v570, 0.0
  %vm717 = vcmp.ge.f32.partialorder %v573, 0.0
  %vm718 = vcmp.ge.f32.partialorder %v578, 0.0
  %vm719 = vcmp.ge.f32.partialorder %v581, 0.0
  %vm720 = vcmp.ge.f32.partialorder %v586, 0.0
  %vm721 = vcmp.ge.f32.partialorder %v589, 0.0
  %vm722 = vcmp.ge.f32.partialorder %v594, 0.0
  %vm723 = vcmp.ge.f32.partialorder %v597, 0.0
  %vm724 = vcmp.ge.f32.partialorder %v602, 0.0
  %vm725 = vcmp.ge.f32.partialorder %v605, 0.0
  %vm726 = vcmp.ge.f32.partialorder %v610, 0.0
  %vm727 = vcmp.ge.f32.partialorder %v613, 0.0
  %vm728 = vcmp.ge.f32.partialorder %v618, 0.0
  %vm729 = vcmp.ge.f32.partialorder %v621, 0.0
  %vm730 = vcmp.ge.f32.partialorder %v626, 0.0
  %vm731 = vcmp.ge.f32.partialorder %v629, 0.0
  %vm732 = vcmp.ge.f32.partialorder %v634, 0.0
  %vm733 = vcmp.ge.f32.partialorder %v637, 0.0
  %vm734 = vcmp.ge.f32.partialorder %v642, 0.0
  %vm735 = vcmp.ge.f32.partialorder %v645, 0.0
  %vm736 = vcmp.ge.f32.partialorder %v650, 0.0
  %vm737 = vcmp.ge.f32.partialorder %v653, 0.0
  %vm738 = vcmp.ge.f32.partialorder %v658, 0.0
  %vm739 = vcmp.ge.f32.partialorder %v661, 0.0
  %vm740 = vcmp.ge.f32.partialorder %v666, 0.0
  %vm741 = vcmp.ge.f32.partialorder %v669, 0.0
  %vm742 = vcmp.ge.f32.partialorder %v674, 0.0
  %vm743 = vcmp.ge.f32.partialorder %v677, 0.0
  %v744 = vmul.f32 %v426, 0.2
  %v745 = vmul.f32 %v429, 0.2
  %v746 = vmul.f32 %v434, 0.2
  %v747 = vmul.f32 %v437, 0.2
  %v748 = vmul.f32 %v442, 0.2
  %v749 = vmul.f32 %v445, 0.2
  %v750 = vmul.f32 %v450, 0.2
  %v751 = vmul.f32 %v453, 0.2
  %v752 = vmul.f32 %v458, 0.2
  %v753 = vmul.f32 %v461, 0.2
  %v754 = vmul.f32 %v466, 0.2
  %v755 = vmul.f32 %v469, 0.2
  %v756 = vmul.f32 %v474, 0.2
  %v757 = vmul.f32 %v477, 0.2
  %v758 = vmul.f32 %v482, 0.2
  %v759 = vmul.f32 %v485, 0.2
  %v760 = vmul.f32 %v490, 0.2
  %v761 = vmul.f32 %v493, 0.2
  %v762 = vmul.f32 %v498, 0.2
  %v763 = vmul.f32 %v501, 0.2
  %v764 = vmul.f32 %v506, 0.2
  %v765 = vmul.f32 %v509, 0.2
  %v766 = vmul.f32 %v514, 0.2
  %v767 = vmul.f32 %v517, 0.2
  %v768 = vmul.f32 %v522, 0.2
  %v769 = vmul.f32 %v525, 0.2
  %v770 = vmul.f32 %v530, 0.2
  %v771 = vmul.f32 %v533, 0.2
  %v772 = vmul.f32 %v538, 0.2
  %v773 = vmul.f32 %v541, 0.2
  %v774 = vmul.f32 %v546, 0.2
  %v775 = vmul.f32 %v549, 0.2
  %v776 = vmul.f32 %v554, 0.2
  %v777 = vmul.f32 %v557, 0.2
  %v778 = vmul.f32 %v562, 0.2
  %v779 = vmul.f32 %v565, 0.2
  %v780 = vmul.f32 %v570, 0.2
  %v781 = vmul.f32 %v573, 0.2
  %v782 = vmul.f32 %v578, 0.2
  %v783 = vmul.f32 %v581, 0.2
  %v784 = vmul.f32 %v586, 0.2
  %v785 = vmul.f32 %v589, 0.2
  %v786 = vmul.f32 %v594, 0.2
  %v787 = vmul.f32 %v597, 0.2
  %v788 = vmul.f32 %v602, 0.2
  %v789 = vmul.f32 %v605, 0.2
  %v790 = vmul.f32 %v610, 0.2
  %v791 = vmul.f32 %v613, 0.2
  %v792 = vmul.f32 %v618, 0.2
  %v793 = vmul.f32 %v621, 0.2
  %v794 = vmul.f32 %v626, 0.2
  %v795 = vmul.f32 %v629, 0.2
  %v796 = vmul.f32 %v634, 0.2
  %v797 = vmul.f32 %v637, 0.2
  %v798 = vmul.f32 %v642, 0.2
  %v799 = vmul.f32 %v645, 0.2
  %v800 = vmul.f32 %v650, 0.2
  %v801 = vmul.f32 %v653, 0.2
  %v802 = vmul.f32 %v658, 0.2
  %v803 = vmul.f32 %v661, 0.2
  %v804 = vmul.f32 %v666, 0.2
  %v805 = vmul.f32 %v669, 0.2
  %v806 = vmul.f32 %v674, 0.2
  %v807 = vmul.f32 %v677, 0.2
  %v808 = vsel %vm680, %v426, %v744
  %v809 = vsel %vm681, %v429, %v745
  %v810 = vsel %vm682, %v434, %v746
  %v811 = vsel %vm683, %v437, %v747
  %v812 = vsel %vm684, %v442, %v748
  %v813 = vsel %vm685, %v445, %v749
  %v814 = vsel %vm686, %v450, %v750
  %v815 = vsel %vm687, %v453, %v751
  %v816 = vsel %vm688, %v458, %v752
  %v817 = vsel %vm689, %v461, %v753
  %v818 = vsel %vm690, %v466, %v754
  %v819 = vsel %vm691, %v469, %v755
  %v820 = vsel %vm692, %v474, %v756
  %v821 = vsel %vm693, %v477, %v757
  %v822 = vsel %vm694, %v482, %v758
  %v823 = vsel %vm695, %v485, %v759
  %v824 = vsel %vm696, %v490, %v760
  %v825 = vsel %vm697, %v493, %v761
  %v826 = vsel %vm698, %v498, %v762
  %v827 = vsel %vm699, %v501, %v763
  %v828 = vsel %vm700, %v506, %v764
  %v829 = vsel %vm701, %v509, %v765
  %v830 = vsel %vm702, %v514, %v766
  %v831 = vsel %vm703, %v517, %v767
  %v832 = vsel %vm704, %v522, %v768
  %v833 = vsel %vm705, %v525, %v769
  %v834 = vsel %vm706, %v530, %v770
  %v835 = vsel %vm707, %v533, %v771
  %v836 = vsel %vm708, %v538, %v772
  %v837 = vsel %vm709, %v541, %v773
  %v838 = vsel %vm710, %v546, %v774
  %v839 = vsel %vm711, %v549, %v775
  %v840 = vsel %vm712, %v554, %v776
  %v841 = vsel %vm713, %v557, %v777
  %v842 = vsel %vm714, %v562, %v778
  %v843 = vsel %vm715, %v565, %v779
  %v844 = vsel %vm716, %v570, %v780
  %v845 = vsel %vm717, %v573, %v781
  %v846 = vsel %vm718, %v578, %v782
  %v847 = vsel %vm719, %v581, %v783
  %v848 = vsel %vm720, %v586, %v784
  %v849 = vsel %vm721, %v589, %v785
  %v850 = vsel %vm722, %v594, %v786
  %v851 = vsel %vm723, %v597, %v787
  %v852 = vsel %vm724, %v602, %v788
  %v853 = vsel %vm725, %v605, %v789
  %v854 = vsel %vm726, %v610, %v790
  %v855 = vsel %vm727, %v613, %v791
  %v856 = vsel %vm728, %v618, %v792
  %v857 = vsel %vm729, %v621, %v793
  %v858 = vsel %vm730, %v626, %v794
  %v859 = vsel %vm731, %v629, %v795
  %v860 = vsel %vm732, %v634, %v796
  %v861 = vsel %vm733, %v637, %v797
  %v862 = vsel %vm734, %v642, %v798
  %v863 = vsel %vm735, %v645, %v799
  %v864 = vsel %vm736, %v650, %v800
  %v865 = vsel %vm737, %v653, %v801
  %v866 = vsel %vm738, %v658, %v802
  %v867 = vsel %vm739, %v661, %v803
  %v868 = vsel %vm740, %v666, %v804
  %v869 = vsel %vm741, %v669, %v805
  %v870 = vsel %vm742, %v674, %v806
  %v871 = vsel %vm743, %v677, %v807
  %v872 = vpack.c.bf16 %v809, %v808
  %v873 = vpack.c.bf16 %v811, %v810
  %v874 = vpack.c.bf16 %v813, %v812
  %v875 = vpack.c.bf16 %v815, %v814
  %v876 = vpack.c.bf16 %v817, %v816
  %v877 = vpack.c.bf16 %v819, %v818
  %v878 = vpack.c.bf16 %v821, %v820
  %v879 = vpack.c.bf16 %v823, %v822
  %v880 = vpack.c.bf16 %v825, %v824
  %v881 = vpack.c.bf16 %v827, %v826
  %v882 = vpack.c.bf16 %v829, %v828
  %v883 = vpack.c.bf16 %v831, %v830
  %v884 = vpack.c.bf16 %v833, %v832
  %v885 = vpack.c.bf16 %v835, %v834
  %v886 = vpack.c.bf16 %v837, %v836
  %v887 = vpack.c.bf16 %v839, %v838
  %v888 = vpack.c.bf16 %v841, %v840
  %v889 = vpack.c.bf16 %v843, %v842
  %v890 = vpack.c.bf16 %v845, %v844
  %v891 = vpack.c.bf16 %v847, %v846
  %v892 = vpack.c.bf16 %v849, %v848
  %v893 = vpack.c.bf16 %v851, %v850
  %v894 = vpack.c.bf16 %v853, %v852
  %v895 = vpack.c.bf16 %v855, %v854
  %v896 = vpack.c.bf16 %v857, %v856
  %v897 = vpack.c.bf16 %v859, %v858
  %v898 = vpack.c.bf16 %v861, %v860
  %v899 = vpack.c.bf16 %v863, %v862
  %v900 = vpack.c.bf16 %v865, %v864
  %v901 = vpack.c.bf16 %v867, %v866
  %v902 = vpack.c.bf16 %v869, %v868
  %v903 = vpack.c.bf16 %v871, %v870
  %v936 = vunpack.c.l.b16 %v872
  %v937 = vunpack.c.h.b16 %v872
  %v938 = vunpack.c.l.b16 %v873
  %v939 = vunpack.c.h.b16 %v873
  %v940 = vunpack.c.l.b16 %v874
  %v941 = vunpack.c.h.b16 %v874
  %v942 = vunpack.c.l.b16 %v875
  %v943 = vunpack.c.h.b16 %v875
  %v944 = vunpack.c.l.b16 %v876
  %v945 = vunpack.c.h.b16 %v876
  %v946 = vunpack.c.l.b16 %v877
  %v947 = vunpack.c.h.b16 %v877
  %v948 = vunpack.c.l.b16 %v878
  %v949 = vunpack.c.h.b16 %v878
  %v950 = vunpack.c.l.b16 %v879
  %v951 = vunpack.c.h.b16 %v879
  %v952 = vunpack.c.l.b16 %v880
  %v953 = vunpack.c.h.b16 %v880
  %v954 = vunpack.c.l.b16 %v881
  %v955 = vunpack.c.h.b16 %v881
  %v956 = vunpack.c.l.b16 %v882
  %v957 = vunpack.c.h.b16 %v882
  %v958 = vunpack.c.l.b16 %v883
  %v959 = vunpack.c.h.b16 %v883
  %v960 = vunpack.c.l.b16 %v884
  %v961 = vunpack.c.h.b16 %v884
  %v962 = vunpack.c.l.b16 %v885
  %v963 = vunpack.c.h.b16 %v885
  %v964 = vunpack.c.l.b16 %v886
  %v965 = vunpack.c.h.b16 %v886
  %v966 = vunpack.c.l.b16 %v887
  %v967 = vunpack.c.h.b16 %v887
  %v968 = vunpack.c.l.b16 %v888
  %v969 = vunpack.c.h.b16 %v888
  %v970 = vunpack.c.l.b16 %v889
  %v971 = vunpack.c.h.b16 %v889
  %v972 = vunpack.c.l.b16 %v890
  %v973 = vunpack.c.h.b16 %v890
  %v974 = vunpack.c.l.b16 %v891
  %v975 = vunpack.c.h.b16 %v891
  %v976 = vunpack.c.l.b16 %v892
  %v977 = vunpack.c.h.b16 %v892
  %v978 = vunpack.c.l.b16 %v893
  %v979 = vunpack.c.h.b16 %v893
  %v980 = vunpack.c.l.b16 %v894
  %v981 = vunpack.c.h.b16 %v894
  %v982 = vunpack.c.l.b16 %v895
  %v983 = vunpack.c.h.b16 %v895
  %v984 = vunpack.c.l.b16 %v896
  %v985 = vunpack.c.h.b16 %v896
  %v986 = vunpack.c.l.b16 %v897
  %v987 = vunpack.c.h.b16 %v897
  %v988 = vunpack.c.l.b16 %v898
  %v989 = vunpack.c.h.b16 %v898
  %v990 = vunpack.c.l.b16 %v899
  %v991 = vunpack.c.h.b16 %v899
  %v992 = vunpack.c.l.b16 %v900
  %v993 = vunpack.c.h.b16 %v900
  %v994 = vunpack.c.l.b16 %v901
  %v995 = vunpack.c.h.b16 %v901
  %v996 = vunpack.c.l.b16 %v902
  %v997 = vunpack.c.h.b16 %v902
  %v998 = vunpack.c.l.b16 %v903
  %v999 = vunpack.c.h.b16 %v903
  %v1000 = vpack.c.b16 %v936, %v936
  %v1001 = vpack.c.b16 %v937, %v937
  %v1002 = vpack.c.b16 %v938, %v938
  %v1003 = vpack.c.b16 %v939, %v939
  %v1004 = vpack.c.b16 %v940, %v940
  %v1005 = vpack.c.b16 %v941, %v941
  %v1006 = vpack.c.b16 %v942, %v942
  %v1007 = vpack.c.b16 %v943, %v943
  %v1008 = vpack.c.b16 %v944, %v944
  %v1009 = vpack.c.b16 %v945, %v945
  %v1010 = vpack.c.b16 %v946, %v946
  %v1011 = vpack.c.b16 %v947, %v947
  %v1012 = vpack.c.b16 %v948, %v948
  %v1013 = vpack.c.b16 %v949, %v949
  %v1014 = vpack.c.b16 %v950, %v950
  %v1015 = vpack.c.b16 %v951, %v951
  %v1016 = vpack.c.b16 %v952, %v952
  %v1017 = vpack.c.b16 %v953, %v953
  %v1018 = vpack.c.b16 %v954, %v954
  %v1019 = vpack.c.b16 %v955, %v955
  %v1020 = vpack.c.b16 %v956, %v956
  %v1021 = vpack.c.b16 %v957, %v957
  %v1022 = vpack.c.b16 %v958, %v958
  %v1023 = vpack.c.b16 %v959, %v959
  %v1024 = vpack.c.b16 %v960, %v960
  %v1025 = vpack.c.b16 %v961, %v961
  %v1026 = vpack.c.b16 %v962, %v962
  %v1027 = vpack.c.b16 %v963, %v963
  %v1028 = vpack.c.b16 %v964, %v964
  %v1029 = vpack.c.b16 %v965, %v965
  %v1030 = vpack.c.b16 %v966, %v966
  %v1031 = vpack.c.b16 %v967, %v967
  %v1032 = vpack.c.b16 %v968, %v968
  %v1033 = vpack.c.b16 %v969, %v969
  %v1034 = vpack.c.b16 %v970, %v970
  %v1035 = vpack.c.b16 %v971, %v971
  %v1036 = vpack.c.b16 %v972, %v972
  %v1037 = vpack.c.b16 %v973, %v973
  %v1038 = vpack.c.b16 %v974, %v974
  %v1039 = vpack.c.b16 %v975, %v975
  %v1040 = vpack.c.b16 %v976, %v976
  %v1041 = vpack.c.b16 %v977, %v977
  %v1042 = vpack.c.b16 %v978, %v978
  %v1043 = vpack.c.b16 %v979, %v979
  %v1044 = vpack.c.b16 %v980, %v980
  %v1045 = vpack.c.b16 %v981, %v981
  %v1046 = vpack.c.b16 %v982, %v982
  %v1047 = vpack.c.b16 %v983, %v983
  %v1048 = vpack.c.b16 %v984, %v984
  %v1049 = vpack.c.b16 %v985, %v985
  %v1050 = vpack.c.b16 %v986, %v986
  %v1051 = vpack.c.b16 %v987, %v987
  %v1052 = vpack.c.b16 %v988, %v988
  %v1053 = vpack.c.b16 %v989, %v989
  %v1054 = vpack.c.b16 %v990, %v990
  %v1055 = vpack.c.b16 %v991, %v991
  %v1056 = vpack.c.b16 %v992, %v992
  %v1057 = vpack.c.b16 %v993, %v993
  %v1058 = vpack.c.b16 %v994, %v994
  %v1059 = vpack.c.b16 %v995, %v995
  %v1060 = vpack.c.b16 %v996, %v996
  %v1061 = vpack.c.b16 %v997, %v997
  %v1062 = vpack.c.b16 %v998, %v998
  %v1063 = vpack.c.b16 %v999, %v999
  %vm1128 = vcmask 60416
  %1129 = vst.msk [vmem:[%s3] sm:$0xf] %vm1128, %v1000
  %1130 = vst.msk [vmem:[%s3 + $0x4] sm:$0xf] %vm1128, %v1001
  %1131 = vst.msk [vmem:[%s3 + $0x8] sm:$0xf] %vm1128, %v1002
  %1132 = vst.msk [vmem:[%s3 + $0xc] sm:$0xf] %vm1128, %v1003
  %1133 = vst.msk [vmem:[%s3 + $0x10] sm:$0xf] %vm1128, %v1004
  %1134 = vst.msk [vmem:[%s3 + $0x14] sm:$0xf] %vm1128, %v1005
  %1135 = vst.msk [vmem:[%s3 + $0x18] sm:$0xf] %vm1128, %v1006
  %1136 = vst.msk [vmem:[%s3 + $0x1c] sm:$0xf] %vm1128, %v1007
  %1137 = vst.msk [vmem:[%s3 + $0x20] sm:$0xf] %vm1128, %v1008
  %1138 = vst.msk [vmem:[%s3 + $0x24] sm:$0xf] %vm1128, %v1009
  %1139 = vst.msk [vmem:[%s3 + $0x28] sm:$0xf] %vm1128, %v1010
  %1140 = vst.msk [vmem:[%s3 + $0x2c] sm:$0xf] %vm1128, %v1011
  %1141 = vst.msk [vmem:[%s3 + $0x30] sm:$0xf] %vm1128, %v1012
  %1142 = vst.msk [vmem:[%s3 + $0x34] sm:$0xf] %vm1128, %v1013
  %1143 = vst.msk [vmem:[%s3 + $0x38] sm:$0xf] %vm1128, %v1014
  %1144 = vst.msk [vmem:[%s3 + $0x3c] sm:$0xf] %vm1128, %v1015
  %1145 = vst.msk [vmem:[%s3 + $0x40] sm:$0xf] %vm1128, %v1016
  %1146 = vst.msk [vmem:[%s3 + $0x44] sm:$0xf] %vm1128, %v1017
  %1147 = vst.msk [vmem:[%s3 + $0x48] sm:$0xf] %vm1128, %v1018
  %1148 = vst.msk [vmem:[%s3 + $0x4c] sm:$0xf] %vm1128, %v1019
  %1149 = vst.msk [vmem:[%s3 + $0x50] sm:$0xf] %vm1128, %v1020
  %1150 = vst.msk [vmem:[%s3 + $0x54] sm:$0xf] %vm1128, %v1021
  %1151 = vst.msk [vmem:[%s3 + $0x58] sm:$0xf] %vm1128, %v1022
  %1152 = vst.msk [vmem:[%s3 + $0x5c] sm:$0xf] %vm1128, %v1023
  %1153 = vst.msk [vmem:[%s3 + $0x60] sm:$0xf] %vm1128, %v1024
  %1154 = vst.msk [vmem:[%s3 + $0x64] sm:$0xf] %vm1128, %v1025
  %1155 = vst.msk [vmem:[%s3 + $0x68] sm:$0xf] %vm1128, %v1026
  %1156 = vst.msk [vmem:[%s3 + $0x6c] sm:$0xf] %vm1128, %v1027
  %1157 = vst.msk [vmem:[%s3 + $0x70] sm:$0xf] %vm1128, %v1028
  %1158 = vst.msk [vmem:[%s3 + $0x74] sm:$0xf] %vm1128, %v1029
  %1159 = vst.msk [vmem:[%s3 + $0x78] sm:$0xf] %vm1128, %v1030
  %1160 = vst.msk [vmem:[%s3 + $0x7c] sm:$0xf] %vm1128, %v1031
  %1161 = vst.msk [vmem:[%s3 + $0x80] sm:$0xf] %vm1128, %v1032
  %1162 = vst.msk [vmem:[%s3 + $0x84] sm:$0xf] %vm1128, %v1033
  %1163 = vst.msk [vmem:[%s3 + $0x88] sm:$0xf] %vm1128, %v1034
  %1164 = vst.msk [vmem:[%s3 + $0x8c] sm:$0xf] %vm1128, %v1035
  %1165 = vst.msk [vmem:[%s3 + $0x90] sm:$0xf] %vm1128, %v1036
  %1166 = vst.msk [vmem:[%s3 + $0x94] sm:$0xf] %vm1128, %v1037
  %1167 = vst.msk [vmem:[%s3 + $0x98] sm:$0xf] %vm1128, %v1038
  %1168 = vst.msk [vmem:[%s3 + $0x9c] sm:$0xf] %vm1128, %v1039
  %1169 = vst.msk [vmem:[%s3 + $0xa0] sm:$0xf] %vm1128, %v1040
  %1170 = vst.msk [vmem:[%s3 + $0xa4] sm:$0xf] %vm1128, %v1041
  %1171 = vst.msk [vmem:[%s3 + $0xa8] sm:$0xf] %vm1128, %v1042
  %1172 = vst.msk [vmem:[%s3 + $0xac] sm:$0xf] %vm1128, %v1043
  %1173 = vst.msk [vmem:[%s3 + $0xb0] sm:$0xf] %vm1128, %v1044
  %1174 = vst.msk [vmem:[%s3 + $0xb4] sm:$0xf] %vm1128, %v1045
  %1175 = vst.msk [vmem:[%s3 + $0xb8] sm:$0xf] %vm1128, %v1046
  %1176 = vst.msk [vmem:[%s3 + $0xbc] sm:$0xf] %vm1128, %v1047
  %1177 = vst.msk [vmem:[%s3 + $0xc0] sm:$0xf] %vm1128, %v1048
  %1178 = vst.msk [vmem:[%s3 + $0xc4] sm:$0xf] %vm1128, %v1049
  %1179 = vst.msk [vmem:[%s3 + $0xc8] sm:$0xf] %vm1128, %v1050
  %1180 = vst.msk [vmem:[%s3 + $0xcc] sm:$0xf] %vm1128, %v1051
  %1181 = vst.msk [vmem:[%s3 + $0xd0] sm:$0xf] %vm1128, %v1052
  %1182 = vst.msk [vmem:[%s3 + $0xd4] sm:$0xf] %vm1128, %v1053
  %1183 = vst.msk [vmem:[%s3 + $0xd8] sm:$0xf] %vm1128, %v1054
  %1184 = vst.msk [vmem:[%s3 + $0xdc] sm:$0xf] %vm1128, %v1055
  %1185 = vst.msk [vmem:[%s3 + $0xe0] sm:$0xf] %vm1128, %v1056
  %1186 = vst.msk [vmem:[%s3 + $0xe4] sm:$0xf] %vm1128, %v1057
  %1187 = vst.msk [vmem:[%s3 + $0xe8] sm:$0xf] %vm1128, %v1058
  %1188 = vst.msk [vmem:[%s3 + $0xec] sm:$0xf] %vm1128, %v1059
  %1189 = vst.msk [vmem:[%s3 + $0xf0] sm:$0xf] %vm1128, %v1060
  %1190 = vst.msk [vmem:[%s3 + $0xf4] sm:$0xf] %vm1128, %v1061
  %1191 = vst.msk [vmem:[%s3 + $0xf8] sm:$0xf] %vm1128, %v1062
  %1192 = vst.msk [vmem:[%s3 + $0xfc] sm:$0xf] %vm1128, %v1063
  // Predicated region
  $region14: #{d_forward.5} parent=0 // pred_check
    _
  $region15: #{d_forward.5} parent=0 // pred_check_branch
    %1194 = sbr.rel (0) target = $region17
  $region16: #{d_forward.5} parent=0 // pred_region
    _
  $region17: #{d_forward.5} parent=0 // pred_fallthru
    _
  // Predicated region
  $region18: #{d_forward.5} parent=0 // pred_check
    _
  $region19: #{d_forward.5} parent=0 // pred_check_branch
    %1196 = sbr.rel (0) target = $region21
  $region20: #{d_forward.5} parent=0 // pred_region
    _
  $region21: #{d_forward.5} parent=0 // pred_fallthru
    _

// kernel: d_forward.6
$region0: #{d_forward.6}
  #allocation0 [shape = 'u32[]', space=smem, size = 0x4, offset = 0x4, fixed_abs, tag = 'smem constant byte address 0x4 - core index']
  #allocation1 [shape = 'u32[144,128]{1,0:T(1,128)}', space=vmem, size = 0x12000, scoped, tag = 'internal scratch']
  %s0 = inlined_call_operand.vmem [shape: bf16[128,128], index: 0, kind: input, shape index: {}]
  %s1 = inlined_call_operand.vmem [shape: bf16[128,16], index: 1, kind: input, shape index: {}]
  %s2 = inlined_call_operand.vmem [shape: f32[1,16], index: 2, kind: input, shape index: {}]
  %s3 = inlined_call_operand.vmem [shape: bf16[128,16], index: 3, kind: output, shape index: {0}]
  %s4 = inlined_call_operand.vmem [shape: f32[1,1,16], index: 4, kind: output, shape index: {1}]
  %s5 = inlined_call_operand.vmem [shape: f32[1,1,16], index: 5, kind: output, shape index: {2}]
  %6 = xla_tuple %s3, %s4, %s5
  %s7 = sld [smem:[#allocation0]]
  $region38: #{d_forward.6} parent=0
    _
  %s9 = ssub.s32 1, %s7
  %s10 = scalar_select 0, %s9, %s7
  // Predicated region
  $region2: #{d_forward.6} parent=0 // pred_check
    _
  $region3: #{d_forward.6} parent=0 // pred_check_branch
    %12 = sbr.rel (0) target = $region5
  $region4: #{d_forward.6} parent=0 // pred_region
    _
  $region5: #{d_forward.6} parent=0 // pred_fallthru
    _
  // Predicated region
  $region6: #{d_forward.6} parent=0 // pred_check
    _
  $region7: #{d_forward.6} parent=0 // pred_check_branch
    %14 = sbr.rel (0) target = $region9
  $region8: #{d_forward.6} parent=0 // pred_region
    _
  $region9: #{d_forward.6} parent=0 // pred_fallthru
    _
  // Predicated region
  $region10: #{d_forward.6} parent=0 // pred_check
    _
  $region11: #{d_forward.6} parent=0 // pred_check_branch
    %16 = sbr.rel (0) target = $region13
  $region12: #{d_forward.6} parent=0 // pred_region
    _
  $region13: #{d_forward.6} parent=0 // pred_fallthru
    _
  %v18 = vld [vmem:[%s0] sm:$0xf]
  %v19 = vld [vmem:[%s0 + $0x4] sm:$0xf]
  %v20 = vld [vmem:[%s0 + $0x8] sm:$0xf]
  %v21 = vld [vmem:[%s0 + $0xc] sm:$0xf]
  %v22 = vld [vmem:[%s0 + $0x10] sm:$0xf]
  %v23 = vld [vmem:[%s0 + $0x14] sm:$0xf]
  %v24 = vld [vmem:[%s0 + $0x18] sm:$0xf]
  %v25 = vld [vmem:[%s0 + $0x1c] sm:$0xf]
  %v26 = vld [vmem:[%s0 + $0x20] sm:$0xf]
  %v27 = vld [vmem:[%s0 + $0x24] sm:$0xf]
  %v28 = vld [vmem:[%s0 + $0x28] sm:$0xf]
  %v29 = vld [vmem:[%s0 + $0x2c] sm:$0xf]
  %v30 = vld [vmem:[%s0 + $0x30] sm:$0xf]
  %v31 = vld [vmem:[%s0 + $0x34] sm:$0xf]
  %v32 = vld [vmem:[%s0 + $0x38] sm:$0xf]
  %v33 = vld [vmem:[%s0 + $0x3c] sm:$0xf]
  %v34 = vld [vmem:[%s1] sm:$0xf]
  %v35 = vld [vmem:[%s1 + $0x4] sm:$0xf]
  %v36 = vld [vmem:[%s1 + $0x8] sm:$0xf]
  %v37 = vld [vmem:[%s1 + $0xc] sm:$0xf]
  %v38 = vld [vmem:[%s1 + $0x10] sm:$0xf]
  %v39 = vld [vmem:[%s1 + $0x14] sm:$0xf]
  %v40 = vld [vmem:[%s1 + $0x18] sm:$0xf]
  %v41 = vld [vmem:[%s1 + $0x1c] sm:$0xf]
  %v42 = vld [vmem:[%s1 + $0x20] sm:$0xf]
  %v43 = vld [vmem:[%s1 + $0x24] sm:$0xf]
  %v44 = vld [vmem:[%s1 + $0x28] sm:$0xf]
  %v45 = vld [vmem:[%s1 + $0x2c] sm:$0xf]
  %v46 = vld [vmem:[%s1 + $0x30] sm:$0xf]
  %v47 = vld [vmem:[%s1 + $0x34] sm:$0xf]
  %v48 = vld [vmem:[%s1 + $0x38] sm:$0xf]
  %v49 = vld [vmem:[%s1 + $0x3c] sm:$0xf]
  %v66 = vunpack.c.l.b16 %v18
  %v67 = vunpack.c.l.b16 %v19
  %v68 = vunpack.c.l.b16 %v20
  %v69 = vunpack.c.l.b16 %v21
  %v70 = vunpack.c.l.b16 %v22
  %v71 = vunpack.c.l.b16 %v23
  %v72 = vunpack.c.l.b16 %v24
  %v73 = vunpack.c.l.b16 %v25
  %v74 = vunpack.c.l.b16 %v26
  %v75 = vunpack.c.l.b16 %v27
  %v76 = vunpack.c.l.b16 %v28
  %v77 = vunpack.c.l.b16 %v29
  %v78 = vunpack.c.l.b16 %v30
  %v79 = vunpack.c.l.b16 %v31
  %v80 = vunpack.c.l.b16 %v32
  %v81 = vunpack.c.l.b16 %v33
  %v82 = vpack.c.b16 %v67, %v66
  %v83 = vpack.c.b16 %v69, %v68
  %v84 = vpack.c.b16 %v71, %v70
  %v85 = vpack.c.b16 %v73, %v72
  %v86 = vpack.c.b16 %v75, %v74
  %v87 = vpack.c.b16 %v77, %v76
  %v88 = vpack.c.b16 %v79, %v78
  %v89 = vpack.c.b16 %v81, %v80
  %v114 = vunpack.c.l.b16 %v34
  %v115 = vunpack.c.l.b16 %v35
  %v116 = vunpack.c.l.b16 %v36
  %v117 = vunpack.c.l.b16 %v37
  %v118 = vunpack.c.l.b16 %v38
  %v119 = vunpack.c.l.b16 %v39
  %v120 = vunpack.c.l.b16 %v40
  %v121 = vunpack.c.l.b16 %v41
  %v122 = vunpack.c.l.b16 %v42
  %v123 = vunpack.c.l.b16 %v43
  %v124 = vunpack.c.l.b16 %v44
  %v125 = vunpack.c.l.b16 %v45
  %v126 = vunpack.c.l.b16 %v46
  %v127 = vunpack.c.l.b16 %v47
  %v128 = vunpack.c.l.b16 %v48
  %v129 = vunpack.c.l.b16 %v49
  %v130 = vpack.c.b16 %v115, %v114
  %v131 = vpack.c.b16 %v117, %v116
  %v132 = vpack.c.b16 %v119, %v118
  %v133 = vpack.c.b16 %v121, %v120
  %v134 = vpack.c.b16 %v123, %v122
  %v135 = vpack.c.b16 %v125, %v124
  %v136 = vpack.c.b16 %v127, %v126
  %v137 = vpack.c.b16 %v129, %v128
  %146 = vmatprep.subr.bf16.mxu0 0
  %147 = vmatpush1.bf16.msra.mxu0 %v130
  %148 = vmatprep.subr.bf16.mxu0 0
  %149 = vmatpush1.bf16.msra.mxu0 %v131
  %150 = vmatprep.subr.bf16.mxu0 0
  %151 = vmatpush1.bf16.msra.mxu0 %v132
  %152 = vmatprep.subr.bf16.mxu0 0
  %153 = vmatpush1.bf16.msra.mxu0 %v133
  %154 = vmatprep.subr.bf16.mxu0 0
  %155 = vmatpush1.bf16.msra.mxu0 %v134
  %156 = vmatprep.subr.bf16.mxu0 0
  %157 = vmatpush1.bf16.msra.mxu0 %v135
  %158 = vmatprep.subr.bf16.mxu0 0
  %159 = vmatpush1.bf16.msra.mxu0 %v136
  %160 = vmatprep.subr.bf16.mxu0 0
  %161 = vmatpush1.bf16.msra.mxu0 %v137
  %162 = vmatprep.subr.bf16.mxu0 0
  %163 = vmatpush1.bf16.msra.mxu0 0
  %164 = vmatprep.subr.bf16.mxu0 0
  %165 = vmatpush1.bf16.msra.mxu0 0
  %166 = vmatprep.subr.bf16.mxu0 0
  %167 = vmatpush1.bf16.msra.mxu0 0
  %168 = vmatprep.subr.bf16.mxu0 0
  %169 = vmatpush1.bf16.msra.mxu0 0
  %170 = vmatprep.subr.bf16.mxu0 0
  %171 = vmatpush1.bf16.msra.mxu0 0
  %172 = vmatprep.subr.bf16.mxu0 0
  %173 = vmatpush1.bf16.msra.mxu0 0
  %174 = vmatprep.subr.bf16.mxu0 0
  %175 = vmatpush1.bf16.msra.mxu0 0
  %176 = vmatprep.subr.bf16.mxu0 0
  %177 = vmatpush1.bf16.msra.mxu0 0
  %178 = vmatprep.mubr.bf16.mxu0 0
  %179 = vmatmul.mubr.bf16.gmra.mrb[0].mxu0 %v82
  %v180 = vpop.f32.mrb[0].mxu0
  %v181 = vadd.f32 0.0, %v180
  %v182 = vpop.f32.mrb[0].mxu0
  %v183 = vpop.f32.mrb[0].mxu0
  %v184 = vadd.f32 0.0, %v183
  %v185 = vpop.f32.mrb[0].mxu0
  %186 = vmatprep.mubr.bf16.mxu0 0
  %187 = vmatmul.mubr.bf16.gmra.mrb[0].mxu0 %v83
  %v188 = vpop.f32.mrb[0].mxu0
  %v189 = vadd.f32 0.0, %v188
  %v190 = vpop.f32.mrb[0].mxu0
  %v191 = vpop.f32.mrb[0].mxu0
  %v192 = vadd.f32 0.0, %v191
  %v193 = vpop.f32.mrb[0].mxu0
  %194 = vmatprep.mubr.bf16.mxu0 0
  %195 = vmatmul.mubr.bf16.gmra.mrb[0].mxu0 %v84
  %v196 = vpop.f32.mrb[0].mxu0
  %v197 = vadd.f32 0.0, %v196
  %v198 = vpop.f32.mrb[0].mxu0
  %v199 = vpop.f32.mrb[0].mxu0
  %v200 = vadd.f32 0.0, %v199
  %v201 = vpop.f32.mrb[0].mxu0
  %202 = vmatprep.mubr.bf16.mxu0 0
  %203 = vmatmul.mubr.bf16.gmra.mrb[0].mxu0 %v85
  %v204 = vpop.f32.mrb[0].mxu0
  %v205 = vadd.f32 0.0, %v204
  %v206 = vpop.f32.mrb[0].mxu0
  %v207 = vpop.f32.mrb[0].mxu0
  %v208 = vadd.f32 0.0, %v207
  %v209 = vpop.f32.mrb[0].mxu0
  %210 = vmatprep.mubr.bf16.mxu0 0
  %211 = vmatmul.mubr.bf16.gmra.mrb[0].mxu0 %v86
  %v212 = vpop.f32.mrb[0].mxu0
  %v213 = vadd.f32 0.0, %v212
  %v214 = vpop.f32.mrb[0].mxu0
  %v215 = vpop.f32.mrb[0].mxu0
  %v216 = vadd.f32 0.0, %v215
  %v217 = vpop.f32.mrb[0].mxu0
  %218 = vmatprep.mubr.bf16.mxu0 0
  %219 = vmatmul.mubr.bf16.gmra.mrb[0].mxu0 %v87
  %v220 = vpop.f32.mrb[0].mxu0
  %v221 = vadd.f32 0.0, %v220
  %v222 = vpop.f32.mrb[0].mxu0
  %v223 = vpop.f32.mrb[0].mxu0
  %v224 = vadd.f32 0.0, %v223
  %v225 = vpop.f32.mrb[0].mxu0
  %226 = vmatprep.mubr.bf16.mxu0 0
  %227 = vmatmul.mubr.bf16.gmra.mrb[0].mxu0 %v88
  %v228 = vpop.f32.mrb[0].mxu0
  %v229 = vadd.f32 0.0, %v228
  %v230 = vpop.f32.mrb[0].mxu0
  %v231 = vpop.f32.mrb[0].mxu0
  %v232 = vadd.f32 0.0, %v231
  %v233 = vpop.f32.mrb[0].mxu0
  %234 = vmatprep.mubr.bf16.mxu0 0
  %235 = vmatmul.mubr.bf16.gmra.mrb[0].mxu0 %v89
  %v236 = vpop.f32.mrb[0].mxu0
  %v237 = vadd.f32 0.0, %v236
  %v238 = vpop.f32.mrb[0].mxu0
  %v239 = vpop.f32.mrb[0].mxu0
  %v240 = vadd.f32 0.0, %v239
  %v241 = vpop.f32.mrb[0].mxu0
  %242 = vdwg.mxu0
  %vm243 = vcmask 130048
  %v244 = vsel %vm243, %v181, 0.0
  %v245 = vsel %vm243, %v184, 0.0
  %v246 = vadd.f32 %v244, %v245
  %v247 = vsel %vm243, %v189, 0.0
  %v248 = vadd.f32 %v246, %v247
  %v249 = vsel %vm243, %v192, 0.0
  %v250 = vadd.f32 %v248, %v249
  %v251 = vsel %vm243, %v197, 0.0
  %v252 = vadd.f32 %v250, %v251
  %v253 = vsel %vm243, %v200, 0.0
  %v254 = vadd.f32 %v252, %v253
  %v255 = vsel %vm243, %v205, 0.0
  %v256 = vadd.f32 %v254, %v255
  %v257 = vsel %vm243, %v208, 0.0
  %v258 = vadd.f32 %v256, %v257
  %v259 = vsel %vm243, %v213, 0.0
  %v260 = vadd.f32 %v258, %v259
  %v261 = vsel %vm243, %v216, 0.0
  %v262 = vadd.f32 %v260, %v261
  %v263 = vsel %vm243, %v221, 0.0
  %v264 = vadd.f32 %v262, %v263
  %v265 = vsel %vm243, %v224, 0.0
  %v266 = vadd.f32 %v264, %v265
  %v267 = vsel %vm243, %v229, 0.0
  %v268 = vadd.f32 %v266, %v267
  %v269 = vsel %vm243, %v232, 0.0
  %v270 = vadd.f32 %v268, %v269
  %v271 = vsel %vm243, %v237, 0.0
  %v272 = vadd.f32 %v270, %v271
  %v273 = vsel %vm243, %v240, 0.0
  %v274 = vadd.f32 %v272, %v273
  %v275 = vrot.slane %v274, 4
  %v276 = vadd.f32 %v274, %v275
  %v277 = vrot.slane %v276, 2
  %v278 = vadd.f32 %v276, %v277
  %v279 = vrot.slane %v278, 1
  %v280 = vadd.f32 %v278, %v279
  %vm281 = vcmask 122880
  %282 = vst.msk [vmem:[%s4] sm:$0x1] %vm281, %v280
  %v283 = vmul.f32 %v181, %v181
  %v284 = vmul.f32 %v184, %v184
  %v285 = vmul.f32 %v189, %v189
  %v286 = vmul.f32 %v192, %v192
  %v287 = vmul.f32 %v197, %v197
  %v288 = vmul.f32 %v200, %v200
  %v289 = vmul.f32 %v205, %v205
  %v290 = vmul.f32 %v208, %v208
  %v291 = vmul.f32 %v213, %v213
  %v292 = vmul.f32 %v216, %v216
  %v293 = vmul.f32 %v221, %v221
  %v294 = vmul.f32 %v224, %v224
  %v295 = vmul.f32 %v229, %v229
  %v296 = vmul.f32 %v232, %v232
  %v297 = vmul.f32 %v237, %v237
  %v298 = vmul.f32 %v240, %v240
  %v299 = vsel %vm243, %v283, 0.0
  %v300 = vsel %vm243, %v284, 0.0
  %v301 = vadd.f32 %v299, %v300
  %v302 = vsel %vm243, %v285, 0.0
  %v303 = vadd.f32 %v301, %v302
  %v304 = vsel %vm243, %v286, 0.0
  %v305 = vadd.f32 %v303, %v304
  %v306 = vsel %vm243, %v287, 0.0
  %v307 = vadd.f32 %v305, %v306
  %v308 = vsel %vm243, %v288, 0.0
  %v309 = vadd.f32 %v307, %v308
  %v310 = vsel %vm243, %v289, 0.0
  %v311 = vadd.f32 %v309, %v310
  %v312 = vsel %vm243, %v290, 0.0
  %v313 = vadd.f32 %v311, %v312
  %v314 = vsel %vm243, %v291, 0.0
  %v315 = vadd.f32 %v313, %v314
  %v316 = vsel %vm243, %v292, 0.0
  %v317 = vadd.f32 %v315, %v316
  %v318 = vsel %vm243, %v293, 0.0
  %v319 = vadd.f32 %v317, %v318
  %v320 = vsel %vm243, %v294, 0.0
  %v321 = vadd.f32 %v319, %v320
  %v322 = vsel %vm243, %v295, 0.0
  %v323 = vadd.f32 %v321, %v322
  %v324 = vsel %vm243, %v296, 0.0
  %v325 = vadd.f32 %v323, %v324
  %v326 = vsel %vm243, %v297, 0.0
  %v327 = vadd.f32 %v325, %v326
  %v328 = vsel %vm243, %v298, 0.0
  %v329 = vadd.f32 %v327, %v328
  %v330 = vrot.slane %v329, 4
  %v331 = vadd.f32 %v329, %v330
  %v332 = vrot.slane %v331, 2
  %v333 = vadd.f32 %v331, %v332
  %v334 = vrot.slane %v333, 1
  %v335 = vadd.f32 %v333, %v334
  %336 = vst.msk [vmem:[%s5] sm:$0x1] %vm281, %v335
  %v337 = vld [vmem:[%s2] sm:$0x1]
  %v339 = vlaneseq
  %v340 = vshrl.u32 %v339, 7
  %v341 = vsub.s32 0, %v340
  %v342 = vrot.slane %v337, %v341
  %v344 = vadd.f32 %v181, %v342
  %v345 = vadd.f32 %v184, %v342
  %v346 = vadd.f32 %v189, %v342
  %v347 = vadd.f32 %v192, %v342
  %v348 = vadd.f32 %v197, %v342
  %v349 = vadd.f32 %v200, %v342
  %v350 = vadd.f32 %v205, %v342
  %v351 = vadd.f32 %v208, %v342
  %v352 = vadd.f32 %v213, %v342
  %v353 = vadd.f32 %v216, %v342
  %v354 = vadd.f32 %v221, %v342
  %v355 = vadd.f32 %v224, %v342
  %v356 = vadd.f32 %v229, %v342
  %v357 = vadd.f32 %v232, %v342
  %v358 = vadd.f32 %v237, %v342
  %v359 = vadd.f32 %v240, %v342
  %v360 = vpack.c.bf16 %v345, %v344
  %v361 = vpack.c.bf16 %v347, %v346
  %v362 = vpack.c.bf16 %v349, %v348
  %v363 = vpack.c.bf16 %v351, %v350
  %v364 = vpack.c.bf16 %v353, %v352
  %v365 = vpack.c.bf16 %v355, %v354
  %v366 = vpack.c.bf16 %v357, %v356
  %v367 = vpack.c.bf16 %v359, %v358
  %v376 = vunpack.c.l.b16 %v360
  %v377 = vunpack.c.h.b16 %v360
  %v378 = vunpack.c.l.b16 %v361
  %v379 = vunpack.c.h.b16 %v361
  %v380 = vunpack.c.l.b16 %v362
  %v381 = vunpack.c.h.b16 %v362
  %v382 = vunpack.c.l.b16 %v363
  %v383 = vunpack.c.h.b16 %v363
  %v384 = vunpack.c.l.b16 %v364
  %v385 = vunpack.c.h.b16 %v364
  %v386 = vunpack.c.l.b16 %v365
  %v387 = vunpack.c.h.b16 %v365
  %v388 = vunpack.c.l.b16 %v366
  %v389 = vunpack.c.h.b16 %v366
  %v390 = vunpack.c.l.b16 %v367
  %v391 = vunpack.c.h.b16 %v367
  %v392 = vpack.c.b16 %v376, %v376
  %v393 = vpack.c.b16 %v377, %v377
  %v394 = vpack.c.b16 %v378, %v378
  %v395 = vpack.c.b16 %v379, %v379
  %v396 = vpack.c.b16 %v380, %v380
  %v397 = vpack.c.b16 %v381, %v381
  %v398 = vpack.c.b16 %v382, %v382
  %v399 = vpack.c.b16 %v383, %v383
  %v400 = vpack.c.b16 %v384, %v384
  %v401 = vpack.c.b16 %v385, %v385
  %v402 = vpack.c.b16 %v386, %v386
  %v403 = vpack.c.b16 %v387, %v387
  %v404 = vpack.c.b16 %v388, %v388
  %v405 = vpack.c.b16 %v389, %v389
  %v406 = vpack.c.b16 %v390, %v390
  %v407 = vpack.c.b16 %v391, %v391
  %vm424 = vcmask 125952
  %425 = vst.msk [vmem:[%s3] sm:$0xf] %vm424, %v392
  %426 = vst.msk [vmem:[%s3 + $0x4] sm:$0xf] %vm424, %v393
  %427 = vst.msk [vmem:[%s3 + $0x8] sm:$0xf] %vm424, %v394
  %428 = vst.msk [vmem:[%s3 + $0xc] sm:$0xf] %vm424, %v395
  %429 = vst.msk [vmem:[%s3 + $0x10] sm:$0xf] %vm424, %v396
  %430 = vst.msk [vmem:[%s3 + $0x14] sm:$0xf] %vm424, %v397
  %431 = vst.msk [vmem:[%s3 + $0x18] sm:$0xf] %vm424, %v398
  %432 = vst.msk [vmem:[%s3 + $0x1c] sm:$0xf] %vm424, %v399
  %433 = vst.msk [vmem:[%s3 + $0x20] sm:$0xf] %vm424, %v400
  %434 = vst.msk [vmem:[%s3 + $0x24] sm:$0xf] %vm424, %v401
  %435 = vst.msk [vmem:[%s3 + $0x28] sm:$0xf] %vm424, %v402
  %436 = vst.msk [vmem:[%s3 + $0x2c] sm:$0xf] %vm424, %v403
  %437 = vst.msk [vmem:[%s3 + $0x30] sm:$0xf] %vm424, %v404
  %438 = vst.msk [vmem:[%s3 + $0x34] sm:$0xf] %vm424, %v405
  %439 = vst.msk [vmem:[%s3 + $0x38] sm:$0xf] %vm424, %v406
  %440 = vst.msk [vmem:[%s3 + $0x3c] sm:$0xf] %vm424, %v407
  // Predicated region
  $region14: #{d_forward.6} parent=0 // pred_check
    _
  $region15: #{d_forward.6} parent=0 // pred_check_branch
    %442 = sbr.rel (0) target = $region17
  $region16: #{d_forward.6} parent=0 // pred_region
    _
  $region17: #{d_forward.6} parent=0 // pred_fallthru
    _
  // Predicated region
  $region18: #{d_forward.6} parent=0 // pred_check
    _
  $region19: #{d_forward.6} parent=0 // pred_check_branch
    %444 = sbr.rel (0) target = $region21
  $region20: #{d_forward.6} parent=0 // pred_region
    _
  $region21: #{d_forward.6} parent=0 // pred_fallthru
    _
  // Predicated region
  $region22: #{d_forward.6} parent=0 // pred_check
    _
  $region23: #{d_forward.6} parent=0 // pred_check_branch
    %446 = sbr.rel (0) target = $region25
  $region24: #{d_forward.6} parent=0 // pred_region
    _
  $region25: #{d_forward.6} parent=0 // pred_fallthru
    _
  // Predicated region
  $region26: #{d_forward.6} parent=0 // pred_check
    _
  $region27: #{d_forward.6} parent=0 // pred_check_branch
    %448 = sbr.rel (0) target = $region29
  $region28: #{d_forward.6} parent=0 // pred_region
    _
  $region29: #{d_forward.6} parent=0 // pred_fallthru
    _
  // Predicated region
  $region30: #{d_forward.6} parent=0 // pred_check
    _
  $region31: #{d_forward.6} parent=0 // pred_check_branch
    %450 = sbr.rel (0) target = $region33
  $region32: #{d_forward.6} parent=0 // pred_region
    _
  $region33: #{d_forward.6} parent=0 // pred_fallthru
    _
  // Predicated region
  $region34: #{d_forward.6} parent=0 // pred_check
    _
  $region35: #{d_forward.6} parent=0 // pred_check_branch
    %452 = sbr.rel (0) target = $region37
  $region36: #{d_forward.6} parent=0 // pred_region
    _
  $region37: #{d_forward.6} parent=0 // pred_fallthru
    _

// kernel: d_forward.7
$region0: #{d_forward.7}
  #allocation0 [shape = 'u32[]', space=smem, size = 0x4, offset = 0x4, fixed_abs, tag = 'smem constant byte address 0x4 - core index']
  #allocation1 [shape = 'u32[144,128]{1,0:T(1,128)}', space=vmem, size = 0x12000, scoped, tag = 'internal scratch']
  %s0 = inlined_call_operand.vmem [shape: bf16[32,256], index: 0, kind: input, shape index: {}]
  %s1 = inlined_call_operand.vmem [shape: bf16[256,32], index: 1, kind: input, shape index: {}]
  %s2 = inlined_call_operand.vmem [shape: f32[1,32], index: 2, kind: input, shape index: {}]
  %s3 = inlined_call_operand.vmem [shape: bf16[32,32], index: 3, kind: output, shape index: {0}]
  %s4 = inlined_call_operand.vmem [shape: f32[1,1,32], index: 4, kind: output, shape index: {1}]
  %s5 = inlined_call_operand.vmem [shape: f32[1,1,32], index: 5, kind: output, shape index: {2}]
  %6 = xla_tuple %s3, %s4, %s5
  %s7 = sld [smem:[#allocation0]]
  $region38: #{d_forward.7} parent=0
    _
  %s9 = ssub.s32 1, %s7
  %s10 = scalar_select 0, %s9, %s7
  // Predicated region
  $region2: #{d_forward.7} parent=0 // pred_check
    _
  $region3: #{d_forward.7} parent=0 // pred_check_branch
    %12 = sbr.rel (0) target = $region5
  $region4: #{d_forward.7} parent=0 // pred_region
    _
  $region5: #{d_forward.7} parent=0 // pred_fallthru
    _
  // Predicated region
  $region6: #{d_forward.7} parent=0 // pred_check
    _
  $region7: #{d_forward.7} parent=0 // pred_check_branch
    %14 = sbr.rel (0) target = $region9
  $region8: #{d_forward.7} parent=0 // pred_region
    _
  $region9: #{d_forward.7} parent=0 // pred_fallthru
    _
  // Predicated region
  $region10: #{d_forward.7} parent=0 // pred_check
    _
  $region11: #{d_forward.7} parent=0 // pred_check_branch
    %16 = sbr.rel (0) target = $region13
  $region12: #{d_forward.7} parent=0 // pred_region
    _
  $region13: #{d_forward.7} parent=0 // pred_fallthru
    _
  %v18 = vld [vmem:[%s0] sm:$0xff]
  %v19 = vld [vmem:[%s0 + $0x8] sm:$0xff]
  %v20 = vld [vmem:[%s0 + $0x10] sm:$0xff]
  %v21 = vld [vmem:[%s0 + $0x18] sm:$0xff]
  %v22 = vld [vmem:[%s1] sm:$0xf]
  %v23 = vld [vmem:[%s1 + $0x4] sm:$0xf]
  %v24 = vld [vmem:[%s1 + $0x8] sm:$0xf]
  %v25 = vld [vmem:[%s1 + $0xc] sm:$0xf]
  %v26 = vld [vmem:[%s1 + $0x10] sm:$0xf]
  %v27 = vld [vmem:[%s1 + $0x14] sm:$0xf]
  %v28 = vld [vmem:[%s1 + $0x18] sm:$0xf]
  %v29 = vld [vmem:[%s1 + $0x1c] sm:$0xf]
  %v30 = vld [vmem:[%s1 + $0x20] sm:$0xf]
  %v31 = vld [vmem:[%s1 + $0x24] sm:$0xf]
  %v32 = vld [vmem:[%s1 + $0x28] sm:$0xf]
  %v33 = vld [vmem:[%s1 + $0x2c] sm:$0xf]
  %v34 = vld [vmem:[%s1 + $0x30] sm:$0xf]
  %v35 = vld [vmem:[%s1 + $0x34] sm:$0xf]
  %v36 = vld [vmem:[%s1 + $0x38] sm:$0xf]
  %v37 = vld [vmem:[%s1 + $0x3c] sm:$0xf]
  %v38 = vld [vmem:[%s1 + $0x40] sm:$0xf]
  %v39 = vld [vmem:[%s1 + $0x44] sm:$0xf]
  %v40 = vld [vmem:[%s1 + $0x48] sm:$0xf]
  %v41 = vld [vmem:[%s1 + $0x4c] sm:$0xf]
  %v42 = vld [vmem:[%s1 + $0x50] sm:$0xf]
  %v43 = vld [vmem:[%s1 + $0x54] sm:$0xf]
  %v44 = vld [vmem:[%s1 + $0x58] sm:$0xf]
  %v45 = vld [vmem:[%s1 + $0x5c] sm:$0xf]
  %v46 = vld [vmem:[%s1 + $0x60] sm:$0xf]
  %v47 = vld [vmem:[%s1 + $0x64] sm:$0xf]
  %v48 = vld [vmem:[%s1 + $0x68] sm:$0xf]
  %v49 = vld [vmem:[%s1 + $0x6c] sm:$0xf]
  %v50 = vld [vmem:[%s1 + $0x70] sm:$0xf]
  %v51 = vld [vmem:[%s1 + $0x74] sm:$0xf]
  %v52 = vld [vmem:[%s1 + $0x78] sm:$0xf]
  %v53 = vld [vmem:[%s1 + $0x7c] sm:$0xf]
  %v58 = vunpack.c.l.b16 %v18
  %v59 = vunpack.c.h.b16 %v18
  %v60 = vunpack.c.l.b16 %v19
  %v61 = vunpack.c.h.b16 %v19
  %v62 = vunpack.c.l.b16 %v20
  %v63 = vunpack.c.h.b16 %v20
  %v64 = vunpack.c.l.b16 %v21
  %v65 = vunpack.c.h.b16 %v21
  %v66 = vpack.c.b16 %v60, %v58
  %v67 = vpack.c.b16 %v61, %v59
  %v68 = vpack.c.b16 %v64, %v62
  %v69 = vpack.c.b16 %v65, %v63
  %v106 = vunpack.c.l.b16 %v22
  %v107 = vunpack.c.l.b16 %v23
  %v108 = vunpack.c.l.b16 %v24
  %v109 = vunpack.c.l.b16 %v25
  %v110 = vunpack.c.l.b16 %v26
  %v111 = vunpack.c.l.b16 %v27
  %v112 = vunpack.c.l.b16 %v28
  %v113 = vunpack.c.l.b16 %v29
  %v114 = vunpack.c.l.b16 %v30
  %v115 = vunpack.c.l.b16 %v31
  %v116 = vunpack.c.l.b16 %v32
  %v117 = vunpack.c.l.b16 %v33
  %v118 = vunpack.c.l.b16 %v34
  %v119 = vunpack.c.l.b16 %v35
  %v120 = vunpack.c.l.b16 %v36
  %v121 = vunpack.c.l.b16 %v37
  %v122 = vunpack.c.l.b16 %v38
  %v123 = vunpack.c.l.b16 %v39
  %v124 = vunpack.c.l.b16 %v40
  %v125 = vunpack.c.l.b16 %v41
  %v126 = vunpack.c.l.b16 %v42
  %v127 = vunpack.c.l.b16 %v43
  %v128 = vunpack.c.l.b16 %v44
  %v129 = vunpack.c.l.b16 %v45
  %v130 = vunpack.c.l.b16 %v46
  %v131 = vunpack.c.l.b16 %v47
  %v132 = vunpack.c.l.b16 %v48
  %v133 = vunpack.c.l.b16 %v49
  %v134 = vunpack.c.l.b16 %v50
  %v135 = vunpack.c.l.b16 %v51
  %v136 = vunpack.c.l.b16 %v52
  %v137 = vunpack.c.l.b16 %v53
  %v138 = vpack.c.b16 %v107, %v106
  %v139 = vpack.c.b16 %v109, %v108
  %v140 = vpack.c.b16 %v111, %v110
  %v141 = vpack.c.b16 %v113, %v112
  %v142 = vpack.c.b16 %v115, %v114
  %v143 = vpack.c.b16 %v117, %v116
  %v144 = vpack.c.b16 %v119, %v118
  %v145 = vpack.c.b16 %v121, %v120
  %v146 = vpack.c.b16 %v123, %v122
  %v147 = vpack.c.b16 %v125, %v124
  %v148 = vpack.c.b16 %v127, %v126
  %v149 = vpack.c.b16 %v129, %v128
  %v150 = vpack.c.b16 %v131, %v130
  %v151 = vpack.c.b16 %v133, %v132
  %v152 = vpack.c.b16 %v135, %v134
  %v153 = vpack.c.b16 %v137, %v136
  %170 = vmatprep.subr.bf16.mxu0 0
  %171 = vmatpush1.bf16.msra.mxu0 %v138
  %172 = vmatprep.subr.bf16.mxu0 0
  %173 = vmatpush1.bf16.msra.mxu0 %v139
  %174 = vmatprep.subr.bf16.mxu0 0
  %175 = vmatpush1.bf16.msra.mxu0 %v140
  %176 = vmatprep.subr.bf16.mxu0 0
  %177 = vmatpush1.bf16.msra.mxu0 %v141
  %178 = vmatprep.subr.bf16.mxu0 0
  %179 = vmatpush1.bf16.msra.mxu0 %v142
  %180 = vmatprep.subr.bf16.mxu0 0
  %181 = vmatpush1.bf16.msra.mxu0 %v143
  %182 = vmatprep.subr.bf16.mxu0 0
  %183 = vmatpush1.bf16.msra.mxu0 %v144
  %184 = vmatprep.subr.bf16.mxu0 0
  %185 = vmatpush1.bf16.msra.mxu0 %v145
  %186 = vmatprep.subr.bf16.mxu0 0
  %187 = vmatpush1.bf16.msra.mxu0 %v146
  %188 = vmatprep.subr.bf16.mxu0 0
  %189 = vmatpush1.bf16.msra.mxu0 %v147
  %190 = vmatprep.subr.bf16.mxu0 0
  %191 = vmatpush1.bf16.msra.mxu0 %v148
  %192 = vmatprep.subr.bf16.mxu0 0
  %193 = vmatpush1.bf16.msra.mxu0 %v149
  %194 = vmatprep.subr.bf16.mxu0 0
  %195 = vmatpush1.bf16.msra.mxu0 %v150
  %196 = vmatprep.subr.bf16.mxu0 0
  %197 = vmatpush1.bf16.msra.mxu0 %v151
  %198 = vmatprep.subr.bf16.mxu0 0
  %199 = vmatpush1.bf16.msra.mxu0 %v152
  %200 = vmatprep.subr.bf16.mxu0 0
  %201 = vmatpush1.bf16.msra.mxu0 %v153
  %202 = vmatprep.mubr.bf16.mxu0 %v67
  %203 = vmatmul.mubr.bf16.gmra.mrb[0].mxu0 %v66
  %v204 = vpop.f32.mrb[0].mxu0
  %v205 = vadd.f32 0.0, %v204
  %v206 = vpop.f32.mrb[0].mxu0
  %v207 = vpop.f32.mrb[0].mxu0
  %v208 = vadd.f32 0.0, %v207
  %v209 = vpop.f32.mrb[0].mxu0
  %210 = vmatprep.mubr.bf16.mxu0 %v69
  %211 = vmatmul.mubr.bf16.gmra.mrb[0].mxu0 %v68
  %v212 = vpop.f32.mrb[0].mxu0
  %v213 = vadd.f32 0.0, %v212
  %v214 = vpop.f32.mrb[0].mxu0
  %v215 = vpop.f32.mrb[0].mxu0
  %v216 = vadd.f32 0.0, %v215
  %v217 = vpop.f32.mrb[0].mxu0
  %218 = vdwg.mxu0
  %vm219 = vcmask 261120
  %v220 = vsel %vm219, %v205, 0.0
  %v221 = vsel %vm219, %v208, 0.0
  %v222 = vadd.f32 %v220, %v221
  %v223 = vsel %vm219, %v213, 0.0
  %v224 = vadd.f32 %v222, %v223
  %v225 = vsel %vm219, %v216, 0.0
  %v226 = vadd.f32 %v224, %v225
  %v227 = vrot.slane %v226, 4
  %v228 = vadd.f32 %v226, %v227
  %v229 = vrot.slane %v228, 2
  %v230 = vadd.f32 %v228, %v229
  %v231 = vrot.slane %v230, 1
  %v232 = vadd.f32 %v230, %v231
  %vm233 = vcmask 253952
  %234 = vst.msk [vmem:[%s4] sm:$0x1] %vm233, %v232
  %v235 = vmul.f32 %v205, %v205
  %v236 = vmul.f32 %v208, %v208
  %v237 = vmul.f32 %v213, %v213
  %v238 = vmul.f32 %v216, %v216
  %v239 = vsel %vm219, %v235, 0.0
  %v240 = vsel %vm219, %v236, 0.0
  %v241 = vadd.f32 %v239, %v240
  %v242 = vsel %vm219, %v237, 0.0
  %v243 = vadd.f32 %v241, %v242
  %v244 = vsel %vm219, %v238, 0.0
  %v245 = vadd.f32 %v243, %v244
  %v246 = vrot.slane %v245, 4
  %v247 = vadd.f32 %v245, %v246
  %v248 = vrot.slane %v247, 2
  %v249 = vadd.f32 %v247, %v248
  %v250 = vrot.slane %v249, 1
  %v251 = vadd.f32 %v249, %v250
  %252 = vst.msk [vmem:[%s5] sm:$0x1] %vm233, %v251
  %v253 = vld [vmem:[%s2] sm:$0x1]
  %v255 = vlaneseq
  %v256 = vshrl.u32 %v255, 7
  %v257 = vsub.s32 0, %v256
  %v258 = vrot.slane %v253, %v257
  %v260 = vadd.f32 %v205, %v258
  %v261 = vadd.f32 %v208, %v258
  %v262 = vadd.f32 %v213, %v258
  %v263 = vadd.f32 %v216, %v258
  %v264 = vpack.c.bf16 %v261, %v260
  %v265 = vpack.c.bf16 %v263, %v262
  %v268 = vunpack.c.l.b16 %v264
  %v269 = vunpack.c.h.b16 %v264
  %v270 = vunpack.c.l.b16 %v265
  %v271 = vunpack.c.h.b16 %v265
  %v272 = vpack.c.b16 %v268, %v268
  %v273 = vpack.c.b16 %v269, %v269
  %v274 = vpack.c.b16 %v270, %v270
  %v275 = vpack.c.b16 %v271, %v271
  %vm280 = vcmask 257024
  %281 = vst.msk [vmem:[%s3] sm:$0xf] %vm280, %v272
  %282 = vst.msk [vmem:[%s3 + $0x4] sm:$0xf] %vm280, %v273
  %283 = vst.msk [vmem:[%s3 + $0x8] sm:$0xf] %vm280, %v274
  %284 = vst.msk [vmem:[%s3 + $0xc] sm:$0xf] %vm280, %v275
  // Predicated region
  $region14: #{d_forward.7} parent=0 // pred_check
    _
  $region15: #{d_forward.7} parent=0 // pred_check_branch
    %286 = sbr.rel (0) target = $region17
  $region16: #{d_forward.7} parent=0 // pred_region
    _
  $region17: #{d_forward.7} parent=0 // pred_fallthru
    _
  // Predicated region
  $region18: #{d_forward.7} parent=0 // pred_check
    _
  $region19: #{d_forward.7} parent=0 // pred_check_branch
    %288 = sbr.rel (0) target = $region21
  $region20: #{d_forward.7} parent=0 // pred_region
    _
  $region21: #{d_forward.7} parent=0 // pred_fallthru
    _
  // Predicated region
  $region22: #{d_forward.7} parent=0 // pred_check
    _
  $region23: #{d_forward.7} parent=0 // pred_check_branch
    %290 = sbr.rel (0) target = $region25
  $region24: #{d_forward.7} parent=0 // pred_region
    _
  $region25: #{d_forward.7} parent=0 // pred_fallthru
    _
  // Predicated region
  $region26: #{d_forward.7} parent=0 // pred_check
    _
  $region27: #{d_forward.7} parent=0 // pred_check_branch
    %292 = sbr.rel (0) target = $region29
  $region28: #{d_forward.7} parent=0 // pred_region
    _
  $region29: #{d_forward.7} parent=0 // pred_fallthru
    _
  // Predicated region
  $region30: #{d_forward.7} parent=0 // pred_check
    _
  $region31: #{d_forward.7} parent=0 // pred_check_branch
    %294 = sbr.rel (0) target = $region33
  $region32: #{d_forward.7} parent=0 // pred_region
    _
  $region33: #{d_forward.7} parent=0 // pred_fallthru
    _
  // Predicated region
  $region34: #{d_forward.7} parent=0 // pred_check
    _
  $region35: #{d_forward.7} parent=0 // pred_check_branch
    %296 = sbr.rel (0) target = $region37
  $region36: #{d_forward.7} parent=0 // pred_region
    _
  $region37: #{d_forward.7} parent=0 // pred_fallthru
    _

// kernel: d_forward.8
$region0: #{d_forward.8}
  #allocation0 [shape = 'u32[]', space=smem, size = 0x4, offset = 0x4, fixed_abs, tag = 'smem constant byte address 0x4 - core index']
  #allocation1 [shape = 'u32[144,128]{1,0:T(1,128)}', space=vmem, size = 0x12000, scoped, tag = 'internal scratch']
  %s0 = inlined_call_operand.vmem [shape: bf16[2,42,32], index: 0, kind: input, shape index: {}]
  %s1 = inlined_call_operand.vmem [shape: bf16[16,32,64], index: 1, kind: input, shape index: {}]
  %s2 = inlined_call_operand.vmem [shape: f32[1,64], index: 2, kind: input, shape index: {}]
  %s3 = inlined_call_operand.vmem [shape: f32[18,1], index: 3, kind: input, shape index: {}]
  %s4 = inlined_call_operand.vmem [shape: bf16[2,18,64], index: 4, kind: output, shape index: {0}]
  %s5 = inlined_call_operand.vmem [shape: f32[2,1,64], index: 5, kind: output, shape index: {1}]
  %s6 = inlined_call_operand.vmem [shape: f32[2,1,64], index: 6, kind: output, shape index: {2}]
  %7 = xla_tuple %s4, %s5, %s6
  %s8 = sld [smem:[#allocation0]]
  $region65: #{d_forward.8} parent=0
    _
  %s10 = ssub.s32 1, %s8
  %s11 = scalar_select 0, %s10, %s8
  loop: start=0, step=1, limit=4
  $region2: #{d_forward.8} parent=0 // loop_pre_header
    _
  $region3: #{d_forward.8} parent=0 // loop_header
    %s13 = sphi 0, %s17
    %p14 = scmp.ge.s32.totalorder %s13, 4
    %s23 = sphi 0, %s25
    %s26 = sphi 0, %s23
    %s27 = sphi 0, %s26
    %s43 = sphi 0, %s27
    %s47 = sphi 0, %s47
    %s49 = sphi 0, %s47
    %s50 = sphi 0, %s49
    %s64 = sphi 0, %s50
    %s68 = sphi 0, %s68
    %s70 = sphi 0, %s68
    %s71 = sphi 0, %s70
    %s85 = sphi 0, %s71
    %s89 = sphi 0, %s89
    %s91 = sphi 0, %s89
    %s92 = sphi 0, %s91
    %s106 = sphi 0, %s92
    %s112 = sphi 0, %s114
    %s115 = sphi 0, %s112
    %s116 = sphi 0, %s115
    %s132 = sphi 0, %s116
    %s138 = sphi 0, %s140
    %s141 = sphi 0, %s138
    %s142 = sphi 0, %s141
    %s158 = sphi 0, %s142
    %s164 = sphi 0, %s166
    %s167 = sphi 0, %s164
    %s168 = sphi 0, %s167
    %s184 = sphi 0, %s168
  $region4: #{d_forward.8} parent=0 // loop_header_branch
    %16 = sbr.rel (%p14) target = $region8
  $region5: #{d_forward.8} parent=0 // loop_body
    %s18 = ssub.s32 %s13, 1
    %s19 = ssub.s32 %s13, 2
    %s20 = sadd.s32 %s13, 1
    %s21 = ssub.s32 %s13, %s20
    %p22 = scmp.eq.s32.totalorder %s21, 0
    %s24 = sadd.s32 %s23, 1
    %s25 = scalar_select %p22, %s23, %s24
    %p28 = pneg %p22
    %p29 = scmp.eq.s32.totalorder %s13, 1
    %p30 = por %p28, %p29
    %p31 = scmp.ne.s32.totalorder %s23, %s26
    %p32 = scmp.eq.s32.totalorder %s13, 0
    %p33 = por %p31, %p32
    %p34 = scmp.ne.s32.totalorder %s23, %s26
    %p35 = scmp.eq.s32.totalorder %s18, 1
    %p36 = por %p34, %p35
    %p37 = scmp.ne.s32.totalorder %s26, %s27
    %p38 = scmp.eq.s32.totalorder %s18, 0
    %p39 = por %p37, %p38
    %p40 = scmp.ne.s32.totalorder %s26, %s27
    %p41 = scmp.eq.s32.totalorder %s19, 1
    %p42 = por %p40, %p41
    %p44 = scmp.ne.s32.totalorder %s27, %s43
    %p45 = scmp.eq.s32.totalorder %s19, 0
    %p46 = por %p44, %p45
    %s48 = sadd.s32 %s47, 1
    %p51 = scmp.eq.s32.totalorder %s13, 1
    %p52 = scmp.ne.s32.totalorder %s47, %s49
    %p53 = scmp.eq.s32.totalorder %s13, 0
    %p54 = por %p52, %p53
    %p55 = scmp.ne.s32.totalorder %s47, %s49
    %p56 = scmp.eq.s32.totalorder %s18, 1
    %p57 = por %p55, %p56
    %p58 = scmp.ne.s32.totalorder %s49, %s50
    %p59 = scmp.eq.s32.totalorder %s18, 0
    %p60 = por %p58, %p59
    %p61 = scmp.ne.s32.totalorder %s49, %s50
    %p62 = scmp.eq.s32.totalorder %s19, 1
    %p63 = por %p61, %p62
    %p65 = scmp.ne.s32.totalorder %s50, %s64
    %p66 = scmp.eq.s32.totalorder %s19, 0
    %p67 = por %p65, %p66
    %s69 = sadd.s32 %s68, 1
    %p72 = scmp.eq.s32.totalorder %s13, 1
    %p73 = scmp.ne.s32.totalorder %s68, %s70
    %p74 = scmp.eq.s32.totalorder %s13, 0
    %p75 = por %p73, %p74
    %p76 = scmp.ne.s32.totalorder %s68, %s70
    %p77 = scmp.eq.s32.totalorder %s18, 1
    %p78 = por %p76, %p77
    %p79 = scmp.ne.s32.totalorder %s70, %s71
    %p80 = scmp.eq.s32.totalorder %s18, 0
    %p81 = por %p79, %p80
    %p82 = scmp.ne.s32.totalorder %s70, %s71
    %p83 = scmp.eq.s32.totalorder %s19, 1
    %p84 = por %p82, %p83
    %p86 = scmp.ne.s32.totalorder %s71, %s85
    %p87 = scmp.eq.s32.totalorder %s19, 0
    %p88 = por %p86, %p87
    %s90 = sadd.s32 %s89, 1
    %p93 = scmp.eq.s32.totalorder %s13, 1
    %p94 = scmp.ne.s32.totalorder %s89, %s91
    %p95 = scmp.eq.s32.totalorder %s13, 0
    %p96 = por %p94, %p95
    %p97 = scmp.ne.s32.totalorder %s89, %s91
    %p98 = scmp.eq.s32.totalorder %s18, 1
    %p99 = por %p97, %p98
    %p100 = scmp.ne.s32.totalorder %s91, %s92
    %p101 = scmp.eq.s32.totalorder %s18, 0
    %p102 = por %p100, %p101
    %p103 = scmp.ne.s32.totalorder %s91, %s92
    %p104 = scmp.eq.s32.totalorder %s19, 1
    %p105 = por %p103, %p104
    %p107 = scmp.ne.s32.totalorder %s92, %s106
    %p108 = scmp.eq.s32.totalorder %s19, 0
    %p109 = por %p107, %p108
    %s110 = ssub.s32 %s13, %s20
    %p111 = scmp.eq.s32.totalorder %s110, 0
    %s113 = sadd.s32 %s112, 1
    %s114 = scalar_select %p111, %s112, %s113
    %p117 = pneg %p111
    %p118 = scmp.eq.s32.totalorder %s13, 1
    %p119 = por %p117, %p118
    %p120 = scmp.ne.s32.totalorder %s112, %s115
    %p121 = scmp.eq.s32.totalorder %s13, 0
    %p122 = por %p120, %p121
    %p123 = scmp.ne.s32.totalorder %s112, %s115
    %p124 = scmp.eq.s32.totalorder %s18, 1
    %p125 = por %p123, %p124
    %p126 = scmp.ne.s32.totalorder %s115, %s116
    %p127 = scmp.eq.s32.totalorder %s18, 0
    %p128 = por %p126, %p127
    %p129 = scmp.ne.s32.totalorder %s115, %s116
    %p130 = scmp.eq.s32.totalorder %s19, 1
    %p131 = por %p129, %p130
    %p133 = scmp.ne.s32.totalorder %s116, %s132
    %p134 = scmp.eq.s32.totalorder %s19, 0
    %p135 = por %p133, %p134
    %s136 = ssub.s32 %s13, %s20
    %p137 = scmp.eq.s32.totalorder %s136, 0
    %s139 = sadd.s32 %s138, 1
    %s140 = scalar_select %p137, %s138, %s139
    %p143 = pneg %p137
    %p144 = scmp.eq.s32.totalorder %s13, 1
    %p145 = por %p143, %p144
    %p146 = scmp.ne.s32.totalorder %s138, %s141
    %p147 = scmp.eq.s32.totalorder %s13, 0
    %p148 = por %p146, %p147
    %p149 = scmp.ne.s32.totalorder %s138, %s141
    %p150 = scmp.eq.s32.totalorder %s18, 1
    %p151 = por %p149, %p150
    %p152 = scmp.ne.s32.totalorder %s141, %s142
    %p153 = scmp.eq.s32.totalorder %s18, 0
    %p154 = por %p152, %p153
    %p155 = scmp.ne.s32.totalorder %s141, %s142
    %p156 = scmp.eq.s32.totalorder %s19, 1
    %p157 = por %p155, %p156
    %p159 = scmp.ne.s32.totalorder %s142, %s158
    %p160 = scmp.eq.s32.totalorder %s19, 0
    %p161 = por %p159, %p160
    %s162 = ssub.s32 %s13, %s20
    %p163 = scmp.eq.s32.totalorder %s162, 0
    %s165 = sadd.s32 %s164, 1
    %s166 = scalar_select %p163, %s164, %s165
    %p169 = pneg %p163
    %p170 = scmp.eq.s32.totalorder %s13, 1
    %p171 = por %p169, %p170
    %p172 = scmp.ne.s32.totalorder %s164, %s167
    %p173 = scmp.eq.s32.totalorder %s13, 0
    %p174 = por %p172, %p173
    %p175 = scmp.ne.s32.totalorder %s164, %s167
    %p176 = scmp.eq.s32.totalorder %s18, 1
    %p177 = por %p175, %p176
    %p178 = scmp.ne.s32.totalorder %s167, %s168
    %p179 = scmp.eq.s32.totalorder %s18, 0
    %p180 = por %p178, %p179
    %p181 = scmp.ne.s32.totalorder %s167, %s168
    %p182 = scmp.eq.s32.totalorder %s19, 1
    %p183 = por %p181, %p182
    %p185 = scmp.ne.s32.totalorder %s168, %s184
    %p186 = scmp.eq.s32.totalorder %s19, 0
    %p187 = por %p185, %p186
    %p188 = scmp.le.s32.totalorder 1, %s13
    %p189 = scmp.lt.s32.totalorder %s13, 3
    %p190 = pnand %p188, %p189
    %p191 = pneg %p190
    // Predicated region
    $region9: #{d_forward.8} parent=5 // pred_check
      _
    $region10: #{d_forward.8} parent=5 // pred_check_branch
      %193 = sbr.rel (%p190) target = $region12
    $region11: #{d_forward.8} parent=5 // pred_region
      %s194 = ssub.s32 %s13, 1
      // Predicated region
      $region13: #{d_forward.8} parent=11 // pred_check
        %p195 = pneg %p60
      $region14: #{d_forward.8} parent=11 // pred_check_branch
        %197 = sbr.rel (%p195) target = $region16
      $region15: #{d_forward.8} parent=11 // pred_region
        _
      $region16: #{d_forward.8} parent=11 // pred_fallthru
        _
      // Predicated region
      $region17: #{d_forward.8} parent=11 // pred_check
        %p198 = pneg %p81
      $region18: #{d_forward.8} parent=11 // pred_check_branch
        %200 = sbr.rel (%p198) target = $region20
      $region19: #{d_forward.8} parent=11 // pred_region
        _
      $region20: #{d_forward.8} parent=11 // pred_fallthru
        _
      // Predicated region
      $region21: #{d_forward.8} parent=11 // pred_check
        %p201 = pneg %p102
      $region22: #{d_forward.8} parent=11 // pred_check_branch
        %203 = sbr.rel (%p201) target = $region24
      $region23: #{d_forward.8} parent=11 // pred_region
        _
      $region24: #{d_forward.8} parent=11 // pred_fallthru
        _
    $region12: #{d_forward.8} parent=5 // pred_fallthru
      _
    %p204 = scmp.lt.s32.totalorder %s13, 2
    // Predicated region
    $region25: #{d_forward.8} parent=5 // pred_check
      %p205 = pneg %p204
    $region26: #{d_forward.8} parent=5 // pred_check_branch
      %207 = sbr.rel (%p205) target = $region28
    $region27: #{d_forward.8} parent=5 // pred_region
      // Predicated region
      $region29: #{d_forward.8} parent=27 // pred_check
        %p208 = pneg %p33
      $region30: #{d_forward.8} parent=27 // pred_check_branch
        %210 = sbr.rel (%p208) target = $region32
      $region31: #{d_forward.8} parent=27 // pred_region
        %p211 = scmp.lt.s32.totalorder %s13, 1
        %s212 = scalar_select %p211, %s13, 1
        %s213 = smul.addr %s212, 6
        %s214 = smul.addr %s213, 4
        %s215 = scalar_lea.vmem %s0, %s214
      $region32: #{d_forward.8} parent=27 // pred_fallthru
        _
    $region28: #{d_forward.8} parent=5 // pred_fallthru
      _
    %p216 = scmp.le.s32.totalorder 1, %s13
    %p217 = scmp.lt.s32.totalorder %s13, 3
    %p218 = pnand %p216, %p217
    %p219 = pneg %p218
    // Predicated region
    $region33: #{d_forward.8} parent=5 // pred_check
      _
    $region34: #{d_forward.8} parent=5 // pred_check_branch
      %221 = sbr.rel (%p218) target = $region36
    $region35: #{d_forward.8} parent=5 // pred_region
      %s222 = ssub.s32 %s13, 1
      %p223 = scmp.lt.s32.totalorder %s18, 1
      %s224 = scalar_select %p223, %s18, 1
      %s225 = smul.addr %s224, 6
      %s226 = smul.addr %s225, 4
      %s227 = scalar_lea.vmem %s0, %s226
      %p228 = pneg %p39
      %p229 = pneg %p36
      %p230 = pneg %p60
      %p231 = pneg %p57
      %p232 = pneg %p81
      %p233 = pneg %p78
      %p234 = pneg %p102
      %p235 = pneg %p99
      %p236 = pneg %p128
      %p237 = pneg %p125
      %p238 = scmp.lt.s32.totalorder %s18, 1
      %s239 = scalar_select %p238, %s18, 1
      %s240 = smul.addr %s239, 3
      %s241 = smul.addr %s240, 4
      %s242 = scalar_lea.vmem %s4, %s241
      %p243 = pneg %p154
      %p244 = pneg %p151
      %p245 = scmp.lt.s32.totalorder %s18, 1
      %s246 = scalar_select %p245, %s18, 1
      %s247 = scalar_lea.vmem %s5, %s246
      %p248 = pneg %p180
      %p249 = pneg %p177
      %p250 = scmp.lt.s32.totalorder %s18, 1
      %s251 = scalar_select %p250, %s18, 1
      %s252 = scalar_lea.vmem %s6, %s251
      %p253 = scmp.lt.s32.totalorder %s18, 1
      %s254 = scalar_select %p253, %s18, 1
      %s255 = smul.addr %s254, 6
      %s256 = smul.addr %s255, 4
      %s257 = scalar_lea.vmem %s0, %s256
      %p258 = scmp.lt.s32.totalorder %s18, 1
      %s259 = scalar_select %p258, %s18, 1
      %s260 = smul.addr %s259, 3
      %s261 = smul.addr %s260, 4
      %s262 = scalar_lea.vmem %s4, %s261
      %p263 = scmp.lt.s32.totalorder %s18, 1
      %s264 = scalar_select %p263, %s18, 1
      %s265 = scalar_lea.vmem %s5, %s264
      %p266 = scmp.lt.s32.totalorder %s18, 1
      %s267 = scalar_select %p266, %s18, 1
      %s268 = scalar_lea.vmem %s6, %s267
      %v270 = vld [vmem:[%s257] sm:$0xf]
      %v271 = vld [vmem:[%s257 + $0x4] sm:$0xf]
      %v272 = vld [vmem:[%s257 + $0x8] sm:$0x1]
      %v273 = vld [vmem:[%s1] sm:$0xf]
      %v274 = vld [vmem:[%s1 + $0x4] sm:$0xf]
      %v275 = vld [vmem:[%s1 + $0x8] sm:$0xf]
      %v276 = vld [vmem:[%s1 + $0xc] sm:$0xf]
      %v277 = vld [vmem:[%s257 + $0x8] sm:$0x3]
      %s278 = scalar_lea.vmem %s1, 16
      %v279 = vld [vmem:[%s278] sm:$0xf]
      %v280 = vld [vmem:[%s278 + $0x4] sm:$0xf]
      %v281 = vld [vmem:[%s278 + $0x8] sm:$0xf]
      %v282 = vld [vmem:[%s278 + $0xc] sm:$0xf]
      %v286 = vunpack.c.l.b16 %v270
      %v287 = vunpack.c.l.b16 %v271
      %v288 = vunpack.c.l.b16 %v277
      %v289 = vpack.c.b16 %v287, %v286
      %v290 = vpack.c.b16 %v288, %v288
      %vm291 = vsmask.f32 7424
      %v293 = vshrl.u32 %v289, 16
      %v295 = vshll.u32 %v289, 16
      %v297 = vrot.slane %v295, 1
      %v298 = vor.u32 %v293, %v297
      %v300 = vshll.u32 %v290, 16
      %v302 = vrot.slane %v300, 1
      %v303 = vsel %vm291, %v298, %v302
      %v304 = vshrl.u32 %v290, 16
      %v306 = vor.u32 %v304, %v302
      %v311 = vunpack.c.l.b16 %v279
      %v312 = vunpack.c.l.b16 %v280
      %v313 = vunpack.c.l.b16 %v281
      %v314 = vunpack.c.l.b16 %v282
      %v315 = vpack.c.b16 %v312, %v311
      %v316 = vpack.c.b16 %v314, %v313
      %vm319 = vcmask 261120
      %v321 = vsel %vm319, %v303, 0
      %v324 = vsel %vm319, %v306, 0
      %326 = vmatprep.subr.bf16.mxu0 0
      %327 = vmatpush1.bf16.msra.mxu0 %v315
      %328 = vmatprep.subr.bf16.mxu0 0
      %329 = vmatpush1.bf16.msra.mxu0 %v316
      %330 = vmatprep.subr.bf16.mxu0 0
      %331 = vmatpush1.bf16.msra.mxu0 0
      %332 = vmatprep.subr.bf16.mxu0 0
      %333 = vmatpush1.bf16.msra.mxu0 0
      %334 = vmatprep.subr.bf16.mxu0 0
      %335 = vmatpush1.bf16.msra.mxu0 0
      %336 = vmatprep.subr.bf16.mxu0 0
      %337 = vmatpush1.bf16.msra.mxu0 0
      %338 = vmatprep.subr.bf16.mxu0 0
      %339 = vmatpush1.bf16.msra.mxu0 0
      %340 = vmatprep.subr.bf16.mxu0 0
      %341 = vmatpush1.bf16.msra.mxu0 0
      %342 = vmatprep.subr.bf16.mxu0 0
      %343 = vmatpush1.bf16.msra.mxu0 0
      %344 = vmatprep.subr.bf16.mxu0 0
      %345 = vmatpush1.bf16.msra.mxu0 0
      %346 = vmatprep.subr.bf16.mxu0 0
      %347 = vmatpush1.bf16.msra.mxu0 0
      %348 = vmatprep.subr.bf16.mxu0 0
      %349 = vmatpush1.bf16.msra.mxu0 0
      %350 = vmatprep.subr.bf16.mxu0 0
      %351 = vmatpush1.bf16.msra.mxu0 0
      %352 = vmatprep.subr.bf16.mxu0 0
      %353 = vmatpush1.bf16.msra.mxu0 0
      %354 = vmatprep.subr.bf16.mxu0 0
      %355 = vmatpush1.bf16.msra.mxu0 0
      %356 = vmatprep.subr.bf16.mxu0 0
      %357 = vmatpush1.bf16.msra.mxu0 0
      %358 = vmatprep.mubr.bf16.mxu0 0
      %359 = vmatmul.mubr.bf16.gmra.mrb[0].mxu0 %v321
      %v360 = vpop.f32.mrb[0].mxu0
      %v361 = vadd.f32 0.0, %v360
      %v362 = vpop.f32.mrb[0].mxu0
      %v363 = vpop.f32.mrb[0].mxu0
      %v364 = vadd.f32 0.0, %v363
      %v365 = vpop.f32.mrb[0].mxu0
      %366 = vmatprep.mubr.bf16.mxu0 0
      %367 = vmatmul.mubr.bf16.gmra.mrb[0].mxu0 %v324
      %v368 = vpop.f32.mrb[0].mxu0
      %v369 = vadd.f32 0.0, %v368
      %v370 = vpop.f32.mrb[0].mxu0
      %v371 = vpop.f32.mrb[0].mxu0
      %v372 = vpop.f32.mrb[0].mxu0
      %373 = vdwg.mxu0
      %v375 = vunpack.c.l.b16 %v272
      %v376 = vpack.c.b16 %v375, %v375
      %v381 = vunpack.c.l.b16 %v273
      %v382 = vunpack.c.l.b16 %v274
      %v383 = vunpack.c.l.b16 %v275
      %v384 = vunpack.c.l.b16 %v276
      %v385 = vpack.c.b16 %v382, %v381
      %v386 = vpack.c.b16 %v384, %v383
      %v389 = vsel %vm319, %v289, 0
      %v392 = vsel %vm319, %v376, 0
      %394 = vmatprep.subr.bf16.mxu0 0
      %395 = vmatpush1.bf16.msra.mxu0 %v385
      %396 = vmatprep.subr.bf16.mxu0 0
      %397 = vmatpush1.bf16.msra.mxu0 %v386
      %398 = vmatprep.subr.bf16.mxu0 0
      %399 = vmatpush1.bf16.msra.mxu0 0
      %400 = vmatprep.subr.bf16.mxu0 0
      %401 = vmatpush1.bf16.msra.mxu0 0
      %402 = vmatprep.subr.bf16.mxu0 0
      %403 = vmatpush1.bf16.msra.mxu0 0
      %404 = vmatprep.subr.bf16.mxu0 0
      %405 = vmatpush1.bf16.msra.mxu0 0
      %406 = vmatprep.subr.bf16.mxu0 0
      %407 = vmatpush1.bf16.msra.mxu0 0
      %408 = vmatprep.subr.bf16.mxu0 0
      %409 = vmatpush1.bf16.msra.mxu0 0
      %410 = vmatprep.subr.bf16.mxu0 0
      %411 = vmatpush1.bf16.msra.mxu0 0
      %412 = vmatprep.subr.bf16.mxu0 0
      %413 = vmatpush1.bf16.msra.mxu0 0
      %414 = vmatprep.subr.bf16.mxu0 0
      %415 = vmatpush1.bf16.msra.mxu0 0
      %416 = vmatprep.subr.bf16.mxu0 0
      %417 = vmatpush1.bf16.msra.mxu0 0
      %418 = vmatprep.subr.bf16.mxu0 0
      %419 = vmatpush1.bf16.msra.mxu0 0
      %420 = vmatprep.subr.bf16.mxu0 0
      %421 = vmatpush1.bf16.msra.mxu0 0
      %422 = vmatprep.subr.bf16.mxu0 0
      %423 = vmatpush1.bf16.msra.mxu0 0
      %424 = vmatprep.subr.bf16.mxu0 0
      %425 = vmatpush1.bf16.msra.mxu0 0
      %426 = vmatprep.mubr.bf16.mxu0 0
      %427 = vmatmul.mubr.bf16.gmra.mrb[0].mxu0 %v389
      %v428 = vpop.f32.mrb[0].mxu0
      %v429 = vadd.f32 %v361, %v428
      %v430 = vpop.f32.mrb[0].mxu0
      %v431 = vpop.f32.mrb[0].mxu0
      %v432 = vadd.f32 %v364, %v431
      %v433 = vpop.f32.mrb[0].mxu0
      %434 = vmatprep.mubr.bf16.mxu0 0
      %435 = vmatmul.mubr.bf16.gmra.mrb[0].mxu0 %v392
      %v436 = vpop.f32.mrb[0].mxu0
      %v437 = vadd.f32 %v369, %v436
      %v438 = vpop.f32.mrb[0].mxu0
      %v439 = vpop.f32.mrb[0].mxu0
      %v440 = vpop.f32.mrb[0].mxu0
      %441 = vdwg.mxu0
      %v442 = vld [vmem:[%s257] sm:$0xe]
      %s443 = scalar_lea.vmem %s1, 32
      %v444 = vld [vmem:[%s443] sm:$0xf]
      %v445 = vld [vmem:[%s443 + $0x4] sm:$0xf]
      %v446 = vld [vmem:[%s443 + $0x8] sm:$0xf]
      %v447 = vld [vmem:[%s443 + $0xc] sm:$0xf]
      %v449 = vunpack.c.l.b16 %v442
      %v450 = vpack.c.b16 %v287, %v449
      %vm451 = vcmask 1046528
      %v452 = vrot.slane %v450, 1
      %v453 = vrot.slane %v290, 1
      %v454 = vsel %vm451, %v452, %v453
      %v459 = vunpack.c.l.b16 %v444
      %v460 = vunpack.c.l.b16 %v445
      %v461 = vunpack.c.l.b16 %v446
      %v462 = vunpack.c.l.b16 %v447
      %v463 = vpack.c.b16 %v460, %v459
      %v464 = vpack.c.b16 %v462, %v461
      %v468 = vsel %vm319, %v454, 0
      %v471 = vsel %vm319, %v453, 0
      %473 = vmatprep.subr.bf16.mxu0 0
      %474 = vmatpush1.bf16.msra.mxu0 %v463
      %475 = vmatprep.subr.bf16.mxu0 0
      %476 = vmatpush1.bf16.msra.mxu0 %v464
      %477 = vmatprep.subr.bf16.mxu0 0
      %478 = vmatpush1.bf16.msra.mxu0 0
      %479 = vmatprep.subr.bf16.mxu0 0
      %480 = vmatpush1.bf16.msra.mxu0 0
      %481 = vmatprep.subr.bf16.mxu0 0
      %482 = vmatpush1.bf16.msra.mxu0 0
      %483 = vmatprep.subr.bf16.mxu0 0
      %484 = vmatpush1.bf16.msra.mxu0 0
      %485 = vmatprep.subr.bf16.mxu0 0
      %486 = vmatpush1.bf16.msra.mxu0 0
      %487 = vmatprep.subr.bf16.mxu0 0
      %488 = vmatpush1.bf16.msra.mxu0 0
      %489 = vmatprep.subr.bf16.mxu0 0
      %490 = vmatpush1.bf16.msra.mxu0 0
      %491 = vmatprep.subr.bf16.mxu0 0
      %492 = vmatpush1.bf16.msra.mxu0 0
      %493 = vmatprep.subr.bf16.mxu0 0
      %494 = vmatpush1.bf16.msra.mxu0 0
      %495 = vmatprep.subr.bf16.mxu0 0
      %496 = vmatpush1.bf16.msra.mxu0 0
      %497 = vmatprep.subr.bf16.mxu0 0
      %498 = vmatpush1.bf16.msra.mxu0 0
      %499 = vmatprep.subr.bf16.mxu0 0
      %500 = vmatpush1.bf16.msra.mxu0 0
      %501 = vmatprep.subr.bf16.mxu0 0
      %502 = vmatpush1.bf16.msra.mxu0 0
      %503 = vmatprep.subr.bf16.mxu0 0
      %504 = vmatpush1.bf16.msra.mxu0 0
      %505 = vmatprep.mubr.bf16.mxu0 0
      %506 = vmatmul.mubr.bf16.gmra.mrb[0].mxu0 %v468
      %v507 = vpop.f32.mrb[0].mxu0
      %v508 = vadd.f32 0.0, %v507
      %v509 = vpop.f32.mrb[0].mxu0
      %v510 = vpop.f32.mrb[0].mxu0
      %v511 = vadd.f32 0.0, %v510
      %v512 = vpop.f32.mrb[0].mxu0
      %513 = vmatprep.mubr.bf16.mxu0 0
      %514 = vmatmul.mubr.bf16.gmra.mrb[0].mxu0 %v471
      %v515 = vpop.f32.mrb[0].mxu0
      %v516 = vadd.f32 0.0, %v515
      %v517 = vpop.f32.mrb[0].mxu0
      %v518 = vpop.f32.mrb[0].mxu0
      %v519 = vpop.f32.mrb[0].mxu0
      %520 = vdwg.mxu0
      %v521 = vadd.f32 %v429, %v508
      %v522 = vadd.f32 %v432, %v511
      %v523 = vadd.f32 %v437, %v516
      %v524 = vld [vmem:[%s257 + $0x8] sm:$0x7]
      %s525 = scalar_lea.vmem %s1, 48
      %v526 = vld [vmem:[%s525] sm:$0xf]
      %v527 = vld [vmem:[%s525 + $0x4] sm:$0xf]
      %v528 = vld [vmem:[%s525 + $0x8] sm:$0xf]
      %v529 = vld [vmem:[%s525 + $0xc] sm:$0xf]
      %v531 = vunpack.c.l.b16 %v524
      %v532 = vpack.c.b16 %v531, %v531
      %vm533 = vsmask.f32 6400
      %v535 = vshrl.u32 %v450, 16
      %v537 = vrot.slane %v535, 1
      %v538 = vshll.u32 %v450, 16
      %v540 = vrot.slane %v538, 2
      %v541 = vor.u32 %v537, %v540
      %v543 = vshrl.u32 %v532, 16
      %v545 = vrot.slane %v543, 1
      %v546 = vshll.u32 %v532, 16
      %v548 = vrot.slane %v546, 2
      %v549 = vor.u32 %v545, %v548
      %v550 = vsel %vm533, %v541, %v549
      %v555 = vunpack.c.l.b16 %v526
      %v556 = vunpack.c.l.b16 %v527
      %v557 = vunpack.c.l.b16 %v528
      %v558 = vunpack.c.l.b16 %v529
      %v559 = vpack.c.b16 %v556, %v555
      %v560 = vpack.c.b16 %v558, %v557
      %v564 = vsel %vm319, %v550, 0
      %v567 = vsel %vm319, %v549, 0
      %569 = vmatprep.subr.bf16.mxu0 0
      %570 = vmatpush1.bf16.msra.mxu0 %v559
      %571 = vmatprep.subr.bf16.mxu0 0
      %572 = vmatpush1.bf16.msra.mxu0 %v560
      %573 = vmatprep.subr.bf16.mxu0 0
      %574 = vmatpush1.bf16.msra.mxu0 0
      %575 = vmatprep.subr.bf16.mxu0 0
      %576 = vmatpush1.bf16.msra.mxu0 0
      %577 = vmatprep.subr.bf16.mxu0 0
      %578 = vmatpush1.bf16.msra.mxu0 0
      %579 = vmatprep.subr.bf16.mxu0 0
      %580 = vmatpush1.bf16.msra.mxu0 0
      %581 = vmatprep.subr.bf16.mxu0 0
      %582 = vmatpush1.bf16.msra.mxu0 0
      %583 = vmatprep.subr.bf16.mxu0 0
      %584 = vmatpush1.bf16.msra.mxu0 0
      %585 = vmatprep.subr.bf16.mxu0 0
      %586 = vmatpush1.bf16.msra.mxu0 0
      %587 = vmatprep.subr.bf16.mxu0 0
      %588 = vmatpush1.bf16.msra.mxu0 0
      %589 = vmatprep.subr.bf16.mxu0 0
      %590 = vmatpush1.bf16.msra.mxu0 0
      %591 = vmatprep.subr.bf16.mxu0 0
      %592 = vmatpush1.bf16.msra.mxu0 0
      %593 = vmatprep.subr.bf16.mxu0 0
      %594 = vmatpush1.bf16.msra.mxu0 0
      %595 = vmatprep.subr.bf16.mxu0 0
      %596 = vmatpush1.bf16.msra.mxu0 0
      %597 = vmatprep.subr.bf16.mxu0 0
      %598 = vmatpush1.bf16.msra.mxu0 0
      %599 = vmatprep.subr.bf16.mxu0 0
      %600 = vmatpush1.bf16.msra.mxu0 0
      %601 = vmatprep.mubr.bf16.mxu0 0
      %602 = vmatmul.mubr.bf16.gmra.mrb[0].mxu0 %v564
      %v603 = vpop.f32.mrb[0].mxu0
      %v604 = vadd.f32 0.0, %v603
      %v605 = vpop.f32.mrb[0].mxu0
      %v606 = vpop.f32.mrb[0].mxu0
      %v607 = vadd.f32 0.0, %v606
      %v608 = vpop.f32.mrb[0].mxu0
      %609 = vmatprep.mubr.bf16.mxu0 0
      %610 = vmatmul.mubr.bf16.gmra.mrb[0].mxu0 %v567
      %v611 = vpop.f32.mrb[0].mxu0
      %v612 = vadd.f32 0.0, %v611
      %v613 = vpop.f32.mrb[0].mxu0
      %v614 = vpop.f32.mrb[0].mxu0
      %v615 = vpop.f32.mrb[0].mxu0
      %616 = vdwg.mxu0
      %v617 = vadd.f32 %v521, %v604
      %v618 = vadd.f32 %v522, %v607
      %v619 = vadd.f32 %v523, %v612
      %v620 = vld [vmem:[%s257] sm:$0x8]
      %v621 = vld [vmem:[%s257 + $0x8] sm:$0xf]
      %s622 = scalar_lea.vmem %s1, 64
      %v623 = vld [vmem:[%s622] sm:$0xf]
      %v624 = vld [vmem:[%s622 + $0x4] sm:$0xf]
      %v625 = vld [vmem:[%s622 + $0x8] sm:$0xf]
      %v626 = vld [vmem:[%s622 + $0xc] sm:$0xf]
      %v629 = vunpack.c.l.b16 %v620
      %v630 = vunpack.c.l.b16 %v621
      %v631 = vpack.c.b16 %v287, %v629
      %v632 = vpack.c.b16 %v630, %v630
      %vm633 = vcmask 1044480
      %v634 = vrot.slane %v631, 3
      %v635 = vrot.slane %v632, 3
      %v636 = vsel %vm633, %v634, %v635
      %v641 = vunpack.c.l.b16 %v623
      %v642 = vunpack.c.l.b16 %v624
      %v643 = vunpack.c.l.b16 %v625
      %v644 = vunpack.c.l.b16 %v626
      %v645 = vpack.c.b16 %v642, %v641
      %v646 = vpack.c.b16 %v644, %v643
      %v650 = vsel %vm319, %v636, 0
      %v653 = vsel %vm319, %v635, 0
      %655 = vmatprep.subr.bf16.mxu0 0
      %656 = vmatpush1.bf16.msra.mxu0 %v645
      %657 = vmatprep.subr.bf16.mxu0 0
      %658 = vmatpush1.bf16.msra.mxu0 %v646
      %659 = vmatprep.subr.bf16.mxu0 0
      %660 = vmatpush1.bf16.msra.mxu0 0
      %661 = vmatprep.subr.bf16.mxu0 0
      %662 = vmatpush1.bf16.msra.mxu0 0
      %663 = vmatprep.subr.bf16.mxu0 0
      %664 = vmatpush1.bf16.msra.mxu0 0
      %665 = vmatprep.subr.bf16.mxu0 0
      %666 = vmatpush1.bf16.msra.mxu0 0
      %667 = vmatprep.subr.bf16.mxu0 0
      %668 = vmatpush1.bf16.msra.mxu0 0
      %669 = vmatprep.subr.bf16.mxu0 0
      %670 = vmatpush1.bf16.msra.mxu0 0
      %671 = vmatprep.subr.bf16.mxu0 0
      %672 = vmatpush1.bf16.msra.mxu0 0
      %673 = vmatprep.subr.bf16.mxu0 0
      %674 = vmatpush1.bf16.msra.mxu0 0
      %675 = vmatprep.subr.bf16.mxu0 0
      %676 = vmatpush1.bf16.msra.mxu0 0
      %677 = vmatprep.subr.bf16.mxu0 0
      %678 = vmatpush1.bf16.msra.mxu0 0
      %679 = vmatprep.subr.bf16.mxu0 0
      %680 = vmatpush1.bf16.msra.mxu0 0
      %681 = vmatprep.subr.bf16.mxu0 0
      %682 = vmatpush1.bf16.msra.mxu0 0
      %683 = vmatprep.subr.bf16.mxu0 0
      %684 = vmatpush1.bf16.msra.mxu0 0
      %685 = vmatprep.subr.bf16.mxu0 0
      %686 = vmatpush1.bf16.msra.mxu0 0
      %687 = vmatprep.mubr.bf16.mxu0 0
      %688 = vmatmul.mubr.bf16.gmra.mrb[0].mxu0 %v650
      %v689 = vpop.f32.mrb[0].mxu0
      %v690 = vadd.f32 0.0, %v689
      %v691 = vpop.f32.mrb[0].mxu0
      %v692 = vpop.f32.mrb[0].mxu0
      %v693 = vadd.f32 0.0, %v692
      %v694 = vpop.f32.mrb[0].mxu0
      %695 = vmatprep.mubr.bf16.mxu0 0
      %696 = vmatmul.mubr.bf16.gmra.mrb[0].mxu0 %v653
      %v697 = vpop.f32.mrb[0].mxu0
      %v698 = vadd.f32 0.0, %v697
      %v699 = vpop.f32.mrb[0].mxu0
      %v700 = vpop.f32.mrb[0].mxu0
      %v701 = vpop.f32.mrb[0].mxu0
      %702 = vdwg.mxu0
      %v703 = vadd.f32 %v617, %v690
      %v704 = vadd.f32 %v618, %v693
      %v705 = vadd.f32 %v619, %v698
      %v706 = vld [vmem:[%s257] sm:$0x8]
      %v707 = vld [vmem:[%s257 + $0x4] sm:$0xf]
      %v708 = vld [vmem:[%s257 + $0x8] sm:$0xf]
      %v709 = vld [vmem:[%s257 + $0xc] sm:$0x1]
      %s710 = scalar_lea.vmem %s1, 80
      %v711 = vld [vmem:[%s710] sm:$0xf]
      %v712 = vld [vmem:[%s710 + $0x4] sm:$0xf]
      %v713 = vld [vmem:[%s710 + $0x8] sm:$0xf]
      %v714 = vld [vmem:[%s710 + $0xc] sm:$0xf]
      %v719 = vunpack.c.l.b16 %v706
      %v720 = vunpack.c.l.b16 %v707
      %v721 = vunpack.c.l.b16 %v708
      %v722 = vunpack.c.l.b16 %v709
      %v723 = vpack.c.b16 %v720, %v719
      %v724 = vpack.c.b16 %v722, %v721
      %vm725 = vsmask.f32 4352
      %v727 = vshrl.u32 %v723, 16
      %v729 = vrot.slane %v727, 3
      %v730 = vshll.u32 %v723, 16
      %v732 = vrot.slane %v730, 4
      %v733 = vor.u32 %v729, %v732
      %v735 = vshrl.u32 %v724, 16
      %v737 = vrot.slane %v735, 3
      %v738 = vshll.u32 %v724, 16
      %v740 = vrot.slane %v738, 4
      %v741 = vor.u32 %v737, %v740
      %v742 = vsel %vm725, %v733, %v741
      %v747 = vunpack.c.l.b16 %v711
      %v748 = vunpack.c.l.b16 %v712
      %v749 = vunpack.c.l.b16 %v713
      %v750 = vunpack.c.l.b16 %v714
      %v751 = vpack.c.b16 %v748, %v747
      %v752 = vpack.c.b16 %v750, %v749
      %v756 = vsel %vm319, %v742, 0
      %v759 = vsel %vm319, %v741, 0
      %761 = vmatprep.subr.bf16.mxu0 0
      %762 = vmatpush1.bf16.msra.mxu0 %v751
      %763 = vmatprep.subr.bf16.mxu0 0
      %764 = vmatpush1.bf16.msra.mxu0 %v752
      %765 = vmatprep.subr.bf16.mxu0 0
      %766 = vmatpush1.bf16.msra.mxu0 0
      %767 = vmatprep.subr.bf16.mxu0 0
      %768 = vmatpush1.bf16.msra.mxu0 0
      %769 = vmatprep.subr.bf16.mxu0 0
      %770 = vmatpush1.bf16.msra.mxu0 0
      %771 = vmatprep.subr.bf16.mxu0 0
      %772 = vmatpush1.bf16.msra.mxu0 0
      %773 = vmatprep.subr.bf16.mxu0 0
      %774 = vmatpush1.bf16.msra.mxu0 0
      %775 = vmatprep.subr.bf16.mxu0 0
      %776 = vmatpush1.bf16.msra.mxu0 0
      %777 = vmatprep.subr.bf16.mxu0 0
      %778 = vmatpush1.bf16.msra.mxu0 0
      %779 = vmatprep.subr.bf16.mxu0 0
      %780 = vmatpush1.bf16.msra.mxu0 0
      %781 = vmatprep.subr.bf16.mxu0 0
      %782 = vmatpush1.bf16.msra.mxu0 0
      %783 = vmatprep.subr.bf16.mxu0 0
      %784 = vmatpush1.bf16.msra.mxu0 0
      %785 = vmatprep.subr.bf16.mxu0 0
      %786 = vmatpush1.bf16.msra.mxu0 0
      %787 = vmatprep.subr.bf16.mxu0 0
      %788 = vmatpush1.bf16.msra.mxu0 0
      %789 = vmatprep.subr.bf16.mxu0 0
      %790 = vmatpush1.bf16.msra.mxu0 0
      %791 = vmatprep.subr.bf16.mxu0 0
      %792 = vmatpush1.bf16.msra.mxu0 0
      %793 = vmatprep.mubr.bf16.mxu0 0
      %794 = vmatmul.mubr.bf16.gmra.mrb[0].mxu0 %v756
      %v795 = vpop.f32.mrb[0].mxu0
      %v796 = vadd.f32 0.0, %v795
      %v797 = vpop.f32.mrb[0].mxu0
      %v798 = vpop.f32.mrb[0].mxu0
      %v799 = vadd.f32 0.0, %v798
      %v800 = vpop.f32.mrb[0].mxu0
      %801 = vmatprep.mubr.bf16.mxu0 0
      %802 = vmatmul.mubr.bf16.gmra.mrb[0].mxu0 %v759
      %v803 = vpop.f32.mrb[0].mxu0
      %v804 = vadd.f32 0.0, %v803
      %v805 = vpop.f32.mrb[0].mxu0
      %v806 = vpop.f32.mrb[0].mxu0
      %v807 = vpop.f32.mrb[0].mxu0
      %808 = vdwg.mxu0
      %v809 = vadd.f32 %v703, %v796
      %v810 = vadd.f32 %v704, %v799
      %v811 = vadd.f32 %v705, %v804
      %s812 = scalar_lea.vmem %s1, 96
      %v813 = vld [vmem:[%s812] sm:$0xf]
      %v814 = vld [vmem:[%s812 + $0x4] sm:$0xf]
      %v815 = vld [vmem:[%s812 + $0x8] sm:$0xf]
      %v816 = vld [vmem:[%s812 + $0xc] sm:$0xf]
      %v817 = vpack.c.b16 %v721, %v720
      %v818 = vpack.c.b16 %v722, %v722
      %v823 = vunpack.c.l.b16 %v813
      %v824 = vunpack.c.l.b16 %v814
      %v825 = vunpack.c.l.b16 %v815
      %v826 = vunpack.c.l.b16 %v816
      %v827 = vpack.c.b16 %v824, %v823
      %v828 = vpack.c.b16 %v826, %v825
      %v832 = vsel %vm319, %v817, 0
      %v835 = vsel %vm319, %v818, 0
      %837 = vmatprep.subr.bf16.mxu0 0
      %838 = vmatpush1.bf16.msra.mxu0 %v827
      %839 = vmatprep.subr.bf16.mxu0 0
      %840 = vmatpush1.bf16.msra.mxu0 %v828
      %841 = vmatprep.subr.bf16.mxu0 0
      %842 = vmatpush1.bf16.msra.mxu0 0
      %843 = vmatprep.subr.bf16.mxu0 0
      %844 = vmatpush1.bf16.msra.mxu0 0
      %845 = vmatprep.subr.bf16.mxu0 0
      %846 = vmatpush1.bf16.msra.mxu0 0
      %847 = vmatprep.subr.bf16.mxu0 0
      %848 = vmatpush1.bf16.msra.mxu0 0
      %849 = vmatprep.subr.bf16.mxu0 0
      %850 = vmatpush1.bf16.msra.mxu0 0
      %851 = vmatprep.subr.bf16.mxu0 0
      %852 = vmatpush1.bf16.msra.mxu0 0
      %853 = vmatprep.subr.bf16.mxu0 0
      %854 = vmatpush1.bf16.msra.mxu0 0
      %855 = vmatprep.subr.bf16.mxu0 0
      %856 = vmatpush1.bf16.msra.mxu0 0
      %857 = vmatprep.subr.bf16.mxu0 0
      %858 = vmatpush1.bf16.msra.mxu0 0
      %859 = vmatprep.subr.bf16.mxu0 0
      %860 = vmatpush1.bf16.msra.mxu0 0
      %861 = vmatprep.subr.bf16.mxu0 0
      %862 = vmatpush1.bf16.msra.mxu0 0
      %863 = vmatprep.subr.bf16.mxu0 0
      %864 = vmatpush1.bf16.msra.mxu0 0
      %865 = vmatprep.subr.bf16.mxu0 0
      %866 = vmatpush1.bf16.msra.mxu0 0
      %867 = vmatprep.subr.bf16.mxu0 0
      %868 = vmatpush1.bf16.msra.mxu0 0
      %869 = vmatprep.mubr.bf16.mxu0 0
      %870 = vmatmul.mubr.bf16.gmra.mrb[0].mxu0 %v832
      %v871 = vpop.f32.mrb[0].mxu0
      %v872 = vadd.f32 0.0, %v871
      %v873 = vpop.f32.mrb[0].mxu0
      %v874 = vpop.f32.mrb[0].mxu0
      %v875 = vadd.f32 0.0, %v874
      %v876 = vpop.f32.mrb[0].mxu0
      %877 = vmatprep.mubr.bf16.mxu0 0
      %878 = vmatmul.mubr.bf16.gmra.mrb[0].mxu0 %v835
      %v879 = vpop.f32.mrb[0].mxu0
      %v880 = vadd.f32 0.0, %v879
      %v881 = vpop.f32.mrb[0].mxu0
      %v882 = vpop.f32.mrb[0].mxu0
      %v883 = vpop.f32.mrb[0].mxu0
      %884 = vdwg.mxu0
      %v885 = vadd.f32 %v809, %v872
      %v886 = vadd.f32 %v810, %v875
      %v887 = vadd.f32 %v811, %v880
      %v888 = vld [vmem:[%s257 + $0xc] sm:$0x3]
      %s889 = scalar_lea.vmem %s1, 112
      %v890 = vld [vmem:[%s889] sm:$0xf]
      %v891 = vld [vmem:[%s889 + $0x4] sm:$0xf]
      %v892 = vld [vmem:[%s889 + $0x8] sm:$0xf]
      %v893 = vld [vmem:[%s889 + $0xc] sm:$0xf]
      %v895 = vunpack.c.l.b16 %v888
      %v896 = vpack.c.b16 %v895, %v895
      %v897 = vshrl.u32 %v817, 16
      %v899 = vshll.u32 %v817, 16
      %v901 = vrot.slane %v899, 1
      %v902 = vor.u32 %v897, %v901
      %v904 = vshll.u32 %v896, 16
      %v906 = vrot.slane %v904, 1
      %v907 = vsel %vm291, %v902, %v906
      %v908 = vshrl.u32 %v896, 16
      %v910 = vor.u32 %v908, %v906
      %v915 = vunpack.c.l.b16 %v890
      %v916 = vunpack.c.l.b16 %v891
      %v917 = vunpack.c.l.b16 %v892
      %v918 = vunpack.c.l.b16 %v893
      %v919 = vpack.c.b16 %v916, %v915
      %v920 = vpack.c.b16 %v918, %v917
      %v924 = vsel %vm319, %v907, 0
      %v927 = vsel %vm319, %v910, 0
      %929 = vmatprep.subr.bf16.mxu0 0
      %930 = vmatpush1.bf16.msra.mxu0 %v919
      %931 = vmatprep.subr.bf16.mxu0 0
      %932 = vmatpush1.bf16.msra.mxu0 %v920
      %933 = vmatprep.subr.bf16.mxu0 0
      %934 = vmatpush1.bf16.msra.mxu0 0
      %935 = vmatprep.subr.bf16.mxu0 0
      %936 = vmatpush1.bf16.msra.mxu0 0
      %937 = vmatprep.subr.bf16.mxu0 0
      %938 = vmatpush1.bf16.msra.mxu0 0
      %939 = vmatprep.subr.bf16.mxu0 0
      %940 = vmatpush1.bf16.msra.mxu0 0
      %941 = vmatprep.subr.bf16.mxu0 0
      %942 = vmatpush1.bf16.msra.mxu0 0
      %943 = vmatprep.subr.bf16.mxu0 0
      %944 = vmatpush1.bf16.msra.mxu0 0
      %945 = vmatprep.subr.bf16.mxu0 0
      %946 = vmatpush1.bf16.msra.mxu0 0
      %947 = vmatprep.subr.bf16.mxu0 0
      %948 = vmatpush1.bf16.msra.mxu0 0
      %949 = vmatprep.subr.bf16.mxu0 0
      %950 = vmatpush1.bf16.msra.mxu0 0
      %951 = vmatprep.subr.bf16.mxu0 0
      %952 = vmatpush1.bf16.msra.mxu0 0
      %953 = vmatprep.subr.bf16.mxu0 0
      %954 = vmatpush1.bf16.msra.mxu0 0
      %955 = vmatprep.subr.bf16.mxu0 0
      %956 = vmatpush1.bf16.msra.mxu0 0
      %957 = vmatprep.subr.bf16.mxu0 0
      %958 = vmatpush1.bf16.msra.mxu0 0
      %959 = vmatprep.subr.bf16.mxu0 0
      %960 = vmatpush1.bf16.msra.mxu0 0
      %961 = vmatprep.mubr.bf16.mxu0 0
      %962 = vmatmul.mubr.bf16.gmra.mrb[0].mxu0 %v924
      %v963 = vpop.f32.mrb[0].mxu0
      %v964 = vadd.f32 0.0, %v963
      %v965 = vpop.f32.mrb[0].mxu0
      %v966 = vpop.f32.mrb[0].mxu0
      %v967 = vadd.f32 0.0, %v966
      %v968 = vpop.f32.mrb[0].mxu0
      %969 = vmatprep.mubr.bf16.mxu0 0
      %970 = vmatmul.mubr.bf16.gmra.mrb[0].mxu0 %v927
      %v971 = vpop.f32.mrb[0].mxu0
      %v972 = vadd.f32 0.0, %v971
      %v973 = vpop.f32.mrb[0].mxu0
      %v974 = vpop.f32.mrb[0].mxu0
      %v975 = vpop.f32.mrb[0].mxu0
      %976 = vdwg.mxu0
      %v977 = vadd.f32 %v885, %v964
      %v978 = vadd.f32 %v886, %v967
      %v979 = vadd.f32 %v887, %v972
      %v980 = vld [vmem:[%s257 + $0x4] sm:$0xc]
      %v981 = vld [vmem:[%s257 + $0xc] sm:$0x7]
      %s982 = scalar_lea.vmem %s1, 128
      %v983 = vld [vmem:[%s982] sm:$0xf]
      %v984 = vld [vmem:[%s982 + $0x4] sm:$0xf]
      %v985 = vld [vmem:[%s982 + $0x8] sm:$0xf]
      %v986 = vld [vmem:[%s982 + $0xc] sm:$0xf]
      %v989 = vunpack.c.l.b16 %v980
      %v990 = vunpack.c.l.b16 %v981
      %v991 = vpack.c.b16 %v721, %v989
      %v992 = vpack.c.b16 %v990, %v990
      %vm993 = vcmask 1045504
      %v994 = vrot.slane %v991, 2
      %v995 = vrot.slane %v992, 2
      %v996 = vsel %vm993, %v994, %v995
      %v1001 = vunpack.c.l.b16 %v983
      %v1002 = vunpack.c.l.b16 %v984
      %v1003 = vunpack.c.l.b16 %v985
      %v1004 = vunpack.c.l.b16 %v986
      %v1005 = vpack.c.b16 %v1002, %v1001
      %v1006 = vpack.c.b16 %v1004, %v1003
      %v1010 = vsel %vm319, %v996, 0
      %v1013 = vsel %vm319, %v995, 0
      %1015 = vmatprep.subr.bf16.mxu0 0
      %1016 = vmatpush1.bf16.msra.mxu0 %v1005
      %1017 = vmatprep.subr.bf16.mxu0 0
      %1018 = vmatpush1.bf16.msra.mxu0 %v1006
      %1019 = vmatprep.subr.bf16.mxu0 0
      %1020 = vmatpush1.bf16.msra.mxu0 0
      %1021 = vmatprep.subr.bf16.mxu0 0
      %1022 = vmatpush1.bf16.msra.mxu0 0
      %1023 = vmatprep.subr.bf16.mxu0 0
      %1024 = vmatpush1.bf16.msra.mxu0 0
      %1025 = vmatprep.subr.bf16.mxu0 0
      %1026 = vmatpush1.bf16.msra.mxu0 0
      %1027 = vmatprep.subr.bf16.mxu0 0
      %1028 = vmatpush1.bf16.msra.mxu0 0
      %1029 = vmatprep.subr.bf16.mxu0 0
      %1030 = vmatpush1.bf16.msra.mxu0 0
      %1031 = vmatprep.subr.bf16.mxu0 0
      %1032 = vmatpush1.bf16.msra.mxu0 0
      %1033 = vmatprep.subr.bf16.mxu0 0
      %1034 = vmatpush1.bf16.msra.mxu0 0
      %1035 = vmatprep.subr.bf16.mxu0 0
      %1036 = vmatpush1.bf16.msra.mxu0 0
      %1037 = vmatprep.subr.bf16.mxu0 0
      %1038 = vmatpush1.bf16.msra.mxu0 0
      %1039 = vmatprep.subr.bf16.mxu0 0
      %1040 = vmatpush1.bf16.msra.mxu0 0
      %1041 = vmatprep.subr.bf16.mxu0 0
      %1042 = vmatpush1.bf16.msra.mxu0 0
      %1043 = vmatprep.subr.bf16.mxu0 0
      %1044 = vmatpush1.bf16.msra.mxu0 0
      %1045 = vmatprep.subr.bf16.mxu0 0
      %1046 = vmatpush1.bf16.msra.mxu0 0
      %1047 = vmatprep.mubr.bf16.mxu0 0
      %1048 = vmatmul.mubr.bf16.gmra.mrb[0].mxu0 %v1010
      %v1049 = vpop.f32.mrb[0].mxu0
      %v1050 = vadd.f32 0.0, %v1049
      %v1051 = vpop.f32.mrb[0].mxu0
      %v1052 = vpop.f32.mrb[0].mxu0
      %v1053 = vadd.f32 0.0, %v1052
      %v1054 = vpop.f32.mrb[0].mxu0
      %1055 = vmatprep.mubr.bf16.mxu0 0
      %1056 = vmatmul.mubr.bf16.gmra.mrb[0].mxu0 %v1013
      %v1057 = vpop.f32.mrb[0].mxu0
      %v1058 = vadd.f32 0.0, %v1057
      %v1059 = vpop.f32.mrb[0].mxu0
      %v1060 = vpop.f32.mrb[0].mxu0
      %v1061 = vpop.f32.mrb[0].mxu0
      %1062 = vdwg.mxu0
      %v1063 = vadd.f32 %v977, %v1050
      %v1064 = vadd.f32 %v978, %v1053
      %v1065 = vadd.f32 %v979, %v1058
      %v1066 = vld [vmem:[%s257 + $0xc] sm:$0xf]
      %s1067 = scalar_lea.vmem %s1, 144
      %v1068 = vld [vmem:[%s1067] sm:$0xf]
      %v1069 = vld [vmem:[%s1067 + $0x4] sm:$0xf]
      %v1070 = vld [vmem:[%s1067 + $0x8] sm:$0xf]
      %v1071 = vld [vmem:[%s1067 + $0xc] sm:$0xf]
      %v1073 = vunpack.c.l.b16 %v1066
      %v1074 = vpack.c.b16 %v1073, %v1073
      %vm1075 = vsmask.f32 5376
      %v1077 = vshrl.u32 %v991, 16
      %v1079 = vrot.slane %v1077, 2
      %v1080 = vshll.u32 %v991, 16
      %v1082 = vrot.slane %v1080, 3
      %v1083 = vor.u32 %v1079, %v1082
      %v1085 = vshrl.u32 %v1074, 16
      %v1087 = vrot.slane %v1085, 2
      %v1088 = vshll.u32 %v1074, 16
      %v1090 = vrot.slane %v1088, 3
      %v1091 = vor.u32 %v1087, %v1090
      %v1092 = vsel %vm1075, %v1083, %v1091
      %v1097 = vunpack.c.l.b16 %v1068
      %v1098 = vunpack.c.l.b16 %v1069
      %v1099 = vunpack.c.l.b16 %v1070
      %v1100 = vunpack.c.l.b16 %v1071
      %v1101 = vpack.c.b16 %v1098, %v1097
      %v1102 = vpack.c.b16 %v1100, %v1099
      %v1106 = vsel %vm319, %v1092, 0
      %v1109 = vsel %vm319, %v1091, 0
      %1111 = vmatprep.subr.bf16.mxu0 0
      %1112 = vmatpush1.bf16.msra.mxu0 %v1101
      %1113 = vmatprep.subr.bf16.mxu0 0
      %1114 = vmatpush1.bf16.msra.mxu0 %v1102
      %1115 = vmatprep.subr.bf16.mxu0 0
      %1116 = vmatpush1.bf16.msra.mxu0 0
      %1117 = vmatprep.subr.bf16.mxu0 0
      %1118 = vmatpush1.bf16.msra.mxu0 0
      %1119 = vmatprep.subr.bf16.mxu0 0
      %1120 = vmatpush1.bf16.msra.mxu0 0
      %1121 = vmatprep.subr.bf16.mxu0 0
      %1122 = vmatpush1.bf16.msra.mxu0 0
      %1123 = vmatprep.subr.bf16.mxu0 0
      %1124 = vmatpush1.bf16.msra.mxu0 0
      %1125 = vmatprep.subr.bf16.mxu0 0
      %1126 = vmatpush1.bf16.msra.mxu0 0
      %1127 = vmatprep.subr.bf16.mxu0 0
      %1128 = vmatpush1.bf16.msra.mxu0 0
      %1129 = vmatprep.subr.bf16.mxu0 0
      %1130 = vmatpush1.bf16.msra.mxu0 0
      %1131 = vmatprep.subr.bf16.mxu0 0
      %1132 = vmatpush1.bf16.msra.mxu0 0
      %1133 = vmatprep.subr.bf16.mxu0 0
      %1134 = vmatpush1.bf16.msra.mxu0 0
      %1135 = vmatprep.subr.bf16.mxu0 0
      %1136 = vmatpush1.bf16.msra.mxu0 0
      %1137 = vmatprep.subr.bf16.mxu0 0
      %1138 = vmatpush1.bf16.msra.mxu0 0
      %1139 = vmatprep.subr.bf16.mxu0 0
      %1140 = vmatpush1.bf16.msra.mxu0 0
      %1141 = vmatprep.subr.bf16.mxu0 0
      %1142 = vmatpush1.bf16.msra.mxu0 0
      %1143 = vmatprep.mubr.bf16.mxu0 0
      %1144 = vmatmul.mubr.bf16.gmra.mrb[0].mxu0 %v1106
      %v1145 = vpop.f32.mrb[0].mxu0
      %v1146 = vadd.f32 0.0, %v1145
      %v1147 = vpop.f32.mrb[0].mxu0
      %v1148 = vpop.f32.mrb[0].mxu0
      %v1149 = vadd.f32 0.0, %v1148
      %v1150 = vpop.f32.mrb[0].mxu0
      %1151 = vmatprep.mubr.bf16.mxu0 0
      %1152 = vmatmul.mubr.bf16.gmra.mrb[0].mxu0 %v1109
      %v1153 = vpop.f32.mrb[0].mxu0
      %v1154 = vadd.f32 0.0, %v1153
      %v1155 = vpop.f32.mrb[0].mxu0
      %v1156 = vpop.f32.mrb[0].mxu0
      %v1157 = vpop.f32.mrb[0].mxu0
      %1158 = vdwg.mxu0
      %v1159 = vadd.f32 %v1063, %v1146
      %v1160 = vadd.f32 %v1064, %v1149
      %v1161 = vadd.f32 %v1065, %v1154
      %v1162 = vld [vmem:[%s257 + $0x4] sm:$0x8]
      %s1163 = scalar_lea.vmem %s1, 160
      %v1164 = vld [vmem:[%s1163] sm:$0xf]
      %v1165 = vld [vmem:[%s1163 + $0x4] sm:$0xf]
      %v1166 = vld [vmem:[%s1163 + $0x8] sm:$0xf]
      %v1167 = vld [vmem:[%s1163 + $0xc] sm:$0xf]
      %v1169 = vunpack.c.l.b16 %v1162
      %v1170 = vpack.c.b16 %v721, %v1169
      %v1171 = vrot.slane %v1170, 3
      %v1172 = vrot.slane %v1074, 3
      %v1173 = vsel %vm633, %v1171, %v1172
      %v1178 = vunpack.c.l.b16 %v1164
      %v1179 = vunpack.c.l.b16 %v1165
      %v1180 = vunpack.c.l.b16 %v1166
      %v1181 = vunpack.c.l.b16 %v1167
      %v1182 = vpack.c.b16 %v1179, %v1178
      %v1183 = vpack.c.b16 %v1181, %v1180
      %v1187 = vsel %vm319, %v1173, 0
      %v1190 = vsel %vm319, %v1172, 0
      %1192 = vmatprep.subr.bf16.mxu0 0
      %1193 = vmatpush1.bf16.msra.mxu0 %v1182
      %1194 = vmatprep.subr.bf16.mxu0 0
      %1195 = vmatpush1.bf16.msra.mxu0 %v1183
      %1196 = vmatprep.subr.bf16.mxu0 0
      %1197 = vmatpush1.bf16.msra.mxu0 0
      %1198 = vmatprep.subr.bf16.mxu0 0
      %1199 = vmatpush1.bf16.msra.mxu0 0
      %1200 = vmatprep.subr.bf16.mxu0 0
      %1201 = vmatpush1.bf16.msra.mxu0 0
      %1202 = vmatprep.subr.bf16.mxu0 0
      %1203 = vmatpush1.bf16.msra.mxu0 0
      %1204 = vmatprep.subr.bf16.mxu0 0
      %1205 = vmatpush1.bf16.msra.mxu0 0
      %1206 = vmatprep.subr.bf16.mxu0 0
      %1207 = vmatpush1.bf16.msra.mxu0 0
      %1208 = vmatprep.subr.bf16.mxu0 0
      %1209 = vmatpush1.bf16.msra.mxu0 0
      %1210 = vmatprep.subr.bf16.mxu0 0
      %1211 = vmatpush1.bf16.msra.mxu0 0
      %1212 = vmatprep.subr.bf16.mxu0 0
      %1213 = vmatpush1.bf16.msra.mxu0 0
      %1214 = vmatprep.subr.bf16.mxu0 0
      %1215 = vmatpush1.bf16.msra.mxu0 0
      %1216 = vmatprep.subr.bf16.mxu0 0
      %1217 = vmatpush1.bf16.msra.mxu0 0
      %1218 = vmatprep.subr.bf16.mxu0 0
      %1219 = vmatpush1.bf16.msra.mxu0 0
      %1220 = vmatprep.subr.bf16.mxu0 0
      %1221 = vmatpush1.bf16.msra.mxu0 0
      %1222 = vmatprep.subr.bf16.mxu0 0
      %1223 = vmatpush1.bf16.msra.mxu0 0
      %1224 = vmatprep.mubr.bf16.mxu0 0
      %1225 = vmatmul.mubr.bf16.gmra.mrb[0].mxu0 %v1187
      %v1226 = vpop.f32.mrb[0].mxu0
      %v1227 = vadd.f32 0.0, %v1226
      %v1228 = vpop.f32.mrb[0].mxu0
      %v1229 = vpop.f32.mrb[0].mxu0
      %v1230 = vadd.f32 0.0, %v1229
      %v1231 = vpop.f32.mrb[0].mxu0
      %1232 = vmatprep.mubr.bf16.mxu0 0
      %1233 = vmatmul.mubr.bf16.gmra.mrb[0].mxu0 %v1190
      %v1234 = vpop.f32.mrb[0].mxu0
      %v1235 = vadd.f32 0.0, %v1234
      %v1236 = vpop.f32.mrb[0].mxu0
      %v1237 = vpop.f32.mrb[0].mxu0
      %v1238 = vpop.f32.mrb[0].mxu0
      %1239 = vdwg.mxu0
      %v1240 = vadd.f32 %v1159, %v1227
      %v1241 = vadd.f32 %v1160, %v1230
      %v1242 = vadd.f32 %v1161, %v1235
      %v1243 = vld [vmem:[%s257 + $0x4] sm:$0x8]
      %v1244 = vld [vmem:[%s257 + $0x8] sm:$0xf]
      %v1245 = vld [vmem:[%s257 + $0xc] sm:$0xf]
      %v1246 = vld [vmem:[%s257 + $0x10] sm:$0x1]
      %s1247 = scalar_lea.vmem %s1, 176
      %v1248 = vld [vmem:[%s1247] sm:$0xf]
      %v1249 = vld [vmem:[%s1247 + $0x4] sm:$0xf]
      %v1250 = vld [vmem:[%s1247 + $0x8] sm:$0xf]
      %v1251 = vld [vmem:[%s1247 + $0xc] sm:$0xf]
      %v1256 = vunpack.c.l.b16 %v1243
      %v1257 = vunpack.c.l.b16 %v1244
      %v1258 = vunpack.c.l.b16 %v1245
      %v1259 = vunpack.c.l.b16 %v1246
      %v1260 = vpack.c.b16 %v1257, %v1256
      %v1261 = vpack.c.b16 %v1259, %v1258
      %v1263 = vshrl.u32 %v1260, 16
      %v1265 = vrot.slane %v1263, 3
      %v1266 = vshll.u32 %v1260, 16
      %v1268 = vrot.slane %v1266, 4
      %v1269 = vor.u32 %v1265, %v1268
      %v1271 = vshrl.u32 %v1261, 16
      %v1273 = vrot.slane %v1271, 3
      %v1274 = vshll.u32 %v1261, 16
      %v1276 = vrot.slane %v1274, 4
      %v1277 = vor.u32 %v1273, %v1276
      %v1278 = vsel %vm725, %v1269, %v1277
      %v1283 = vunpack.c.l.b16 %v1248
      %v1284 = vunpack.c.l.b16 %v1249
      %v1285 = vunpack.c.l.b16 %v1250
      %v1286 = vunpack.c.l.b16 %v1251
      %v1287 = vpack.c.b16 %v1284, %v1283
      %v1288 = vpack.c.b16 %v1286, %v1285
      %v1292 = vsel %vm319, %v1278, 0
      %v1295 = vsel %vm319, %v1277, 0
      %1297 = vmatprep.subr.bf16.mxu0 0
      %1298 = vmatpush1.bf16.msra.mxu0 %v1287
      %1299 = vmatprep.subr.bf16.mxu0 0
      %1300 = vmatpush1.bf16.msra.mxu0 %v1288
      %1301 = vmatprep.subr.bf16.mxu0 0
      %1302 = vmatpush1.bf16.msra.mxu0 0
      %1303 = vmatprep.subr.bf16.mxu0 0
      %1304 = vmatpush1.bf16.msra.mxu0 0
      %1305 = vmatprep.subr.bf16.mxu0 0
      %1306 = vmatpush1.bf16.msra.mxu0 0
      %1307 = vmatprep.subr.bf16.mxu0 0
      %1308 = vmatpush1.bf16.msra.mxu0 0
      %1309 = vmatprep.subr.bf16.mxu0 0
      %1310 = vmatpush1.bf16.msra.mxu0 0
      %1311 = vmatprep.subr.bf16.mxu0 0
      %1312 = vmatpush1.bf16.msra.mxu0 0
      %1313 = vmatprep.subr.bf16.mxu0 0
      %1314 = vmatpush1.bf16.msra.mxu0 0
      %1315 = vmatprep.subr.bf16.mxu0 0
      %1316 = vmatpush1.bf16.msra.mxu0 0
      %1317 = vmatprep.subr.bf16.mxu0 0
      %1318 = vmatpush1.bf16.msra.mxu0 0
      %1319 = vmatprep.subr.bf16.mxu0 0
      %1320 = vmatpush1.bf16.msra.mxu0 0
      %1321 = vmatprep.subr.bf16.mxu0 0
      %1322 = vmatpush1.bf16.msra.mxu0 0
      %1323 = vmatprep.subr.bf16.mxu0 0
      %1324 = vmatpush1.bf16.msra.mxu0 0
      %1325 = vmatprep.subr.bf16.mxu0 0
      %1326 = vmatpush1.bf16.msra.mxu0 0
      %1327 = vmatprep.subr.bf16.mxu0 0
      %1328 = vmatpush1.bf16.msra.mxu0 0
      %1329 = vmatprep.mubr.bf16.mxu0 0
      %1330 = vmatmul.mubr.bf16.gmra.mrb[0].mxu0 %v1292
      %v1331 = vpop.f32.mrb[0].mxu0
      %v1332 = vadd.f32 0.0, %v1331
      %v1333 = vpop.f32.mrb[0].mxu0
      %v1334 = vpop.f32.mrb[0].mxu0
      %v1335 = vadd.f32 0.0, %v1334
      %v1336 = vpop.f32.mrb[0].mxu0
      %1337 = vmatprep.mubr.bf16.mxu0 0
      %1338 = vmatmul.mubr.bf16.gmra.mrb[0].mxu0 %v1295
      %v1339 = vpop.f32.mrb[0].mxu0
      %v1340 = vadd.f32 0.0, %v1339
      %v1341 = vpop.f32.mrb[0].mxu0
      %v1342 = vpop.f32.mrb[0].mxu0
      %v1343 = vpop.f32.mrb[0].mxu0
      %1344 = vdwg.mxu0
      %v1345 = vadd.f32 %v1240, %v1332
      %v1346 = vadd.f32 %v1241, %v1335
      %v1347 = vadd.f32 %v1242, %v1340
      %v1348 = vld [vmem:[%s257 + $0x8] sm:$0xe]
      %v1349 = vld [vmem:[%s257 + $0x10] sm:$0x3]
      %s1350 = scalar_lea.vmem %s1, 192
      %v1351 = vld [vmem:[%s1350] sm:$0xf]
      %v1352 = vld [vmem:[%s1350 + $0x4] sm:$0xf]
      %v1353 = vld [vmem:[%s1350 + $0x8] sm:$0xf]
      %v1354 = vld [vmem:[%s1350 + $0xc] sm:$0xf]
      %v1357 = vunpack.c.l.b16 %v1348
      %v1358 = vunpack.c.l.b16 %v1349
      %v1359 = vpack.c.b16 %v1258, %v1357
      %v1360 = vpack.c.b16 %v1358, %v1358
      %v1361 = vrot.slane %v1359, 1
      %v1362 = vrot.slane %v1360, 1
      %v1363 = vsel %vm451, %v1361, %v1362
      %v1368 = vunpack.c.l.b16 %v1351
      %v1369 = vunpack.c.l.b16 %v1352
      %v1370 = vunpack.c.l.b16 %v1353
      %v1371 = vunpack.c.l.b16 %v1354
      %v1372 = vpack.c.b16 %v1369, %v1368
      %v1373 = vpack.c.b16 %v1371, %v1370
      %v1377 = vsel %vm319, %v1363, 0
      %v1380 = vsel %vm319, %v1362, 0
      %1382 = vmatprep.subr.bf16.mxu0 0
      %1383 = vmatpush1.bf16.msra.mxu0 %v1372
      %1384 = vmatprep.subr.bf16.mxu0 0
      %1385 = vmatpush1.bf16.msra.mxu0 %v1373
      %1386 = vmatprep.subr.bf16.mxu0 0
      %1387 = vmatpush1.bf16.msra.mxu0 0
      %1388 = vmatprep.subr.bf16.mxu0 0
      %1389 = vmatpush1.bf16.msra.mxu0 0
      %1390 = vmatprep.subr.bf16.mxu0 0
      %1391 = vmatpush1.bf16.msra.mxu0 0
      %1392 = vmatprep.subr.bf16.mxu0 0
      %1393 = vmatpush1.bf16.msra.mxu0 0
      %1394 = vmatprep.subr.bf16.mxu0 0
      %1395 = vmatpush1.bf16.msra.mxu0 0
      %1396 = vmatprep.subr.bf16.mxu0 0
      %1397 = vmatpush1.bf16.msra.mxu0 0
      %1398 = vmatprep.subr.bf16.mxu0 0
      %1399 = vmatpush1.bf16.msra.mxu0 0
      %1400 = vmatprep.subr.bf16.mxu0 0
      %1401 = vmatpush1.bf16.msra.mxu0 0
      %1402 = vmatprep.subr.bf16.mxu0 0
      %1403 = vmatpush1.bf16.msra.mxu0 0
      %1404 = vmatprep.subr.bf16.mxu0 0
      %1405 = vmatpush1.bf16.msra.mxu0 0
      %1406 = vmatprep.subr.bf16.mxu0 0
      %1407 = vmatpush1.bf16.msra.mxu0 0
      %1408 = vmatprep.subr.bf16.mxu0 0
      %1409 = vmatpush1.bf16.msra.mxu0 0
      %1410 = vmatprep.subr.bf16.mxu0 0
      %1411 = vmatpush1.bf16.msra.mxu0 0
      %1412 = vmatprep.subr.bf16.mxu0 0
      %1413 = vmatpush1.bf16.msra.mxu0 0
      %1414 = vmatprep.mubr.bf16.mxu0 0
      %1415 = vmatmul.mubr.bf16.gmra.mrb[0].mxu0 %v1377
      %v1416 = vpop.f32.mrb[0].mxu0
      %v1417 = vadd.f32 0.0, %v1416
      %v1418 = vpop.f32.mrb[0].mxu0
      %v1419 = vpop.f32.mrb[0].mxu0
      %v1420 = vadd.f32 0.0, %v1419
      %v1421 = vpop.f32.mrb[0].mxu0
      %1422 = vmatprep.mubr.bf16.mxu0 0
      %1423 = vmatmul.mubr.bf16.gmra.mrb[0].mxu0 %v1380
      %v1424 = vpop.f32.mrb[0].mxu0
      %v1425 = vadd.f32 0.0, %v1424
      %v1426 = vpop.f32.mrb[0].mxu0
      %v1427 = vpop.f32.mrb[0].mxu0
      %v1428 = vpop.f32.mrb[0].mxu0
      %1429 = vdwg.mxu0
      %v1430 = vadd.f32 %v1345, %v1417
      %v1431 = vadd.f32 %v1346, %v1420
      %v1432 = vadd.f32 %v1347, %v1425
      %v1433 = vld [vmem:[%s257 + $0x10] sm:$0x7]
      %s1434 = scalar_lea.vmem %s1, 208
      %v1435 = vld [vmem:[%s1434] sm:$0xf]
      %v1436 = vld [vmem:[%s1434 + $0x4] sm:$0xf]
      %v1437 = vld [vmem:[%s1434 + $0x8] sm:$0xf]
      %v1438 = vld [vmem:[%s1434 + $0xc] sm:$0xf]
      %v1440 = vunpack.c.l.b16 %v1433
      %v1441 = vpack.c.b16 %v1440, %v1440
      %v1443 = vshrl.u32 %v1359, 16
      %v1445 = vrot.slane %v1443, 1
      %v1446 = vshll.u32 %v1359, 16
      %v1448 = vrot.slane %v1446, 2
      %v1449 = vor.u32 %v1445, %v1448
      %v1451 = vshrl.u32 %v1441, 16
      %v1453 = vrot.slane %v1451, 1
      %v1454 = vshll.u32 %v1441, 16
      %v1456 = vrot.slane %v1454, 2
      %v1457 = vor.u32 %v1453, %v1456
      %v1458 = vsel %vm533, %v1449, %v1457
      %v1463 = vunpack.c.l.b16 %v1435
      %v1464 = vunpack.c.l.b16 %v1436
      %v1465 = vunpack.c.l.b16 %v1437
      %v1466 = vunpack.c.l.b16 %v1438
      %v1467 = vpack.c.b16 %v1464, %v1463
      %v1468 = vpack.c.b16 %v1466, %v1465
      %v1472 = vsel %vm319, %v1458, 0
      %v1475 = vsel %vm319, %v1457, 0
      %1477 = vmatprep.subr.bf16.mxu0 0
      %1478 = vmatpush1.bf16.msra.mxu0 %v1467
      %1479 = vmatprep.subr.bf16.mxu0 0
      %1480 = vmatpush1.bf16.msra.mxu0 %v1468
      %1481 = vmatprep.subr.bf16.mxu0 0
      %1482 = vmatpush1.bf16.msra.mxu0 0
      %1483 = vmatprep.subr.bf16.mxu0 0
      %1484 = vmatpush1.bf16.msra.mxu0 0
      %1485 = vmatprep.subr.bf16.mxu0 0
      %1486 = vmatpush1.bf16.msra.mxu0 0
      %1487 = vmatprep.subr.bf16.mxu0 0
      %1488 = vmatpush1.bf16.msra.mxu0 0
      %1489 = vmatprep.subr.bf16.mxu0 0
      %1490 = vmatpush1.bf16.msra.mxu0 0
      %1491 = vmatprep.subr.bf16.mxu0 0
      %1492 = vmatpush1.bf16.msra.mxu0 0
      %1493 = vmatprep.subr.bf16.mxu0 0
      %1494 = vmatpush1.bf16.msra.mxu0 0
      %1495 = vmatprep.subr.bf16.mxu0 0
      %1496 = vmatpush1.bf16.msra.mxu0 0
      %1497 = vmatprep.subr.bf16.mxu0 0
      %1498 = vmatpush1.bf16.msra.mxu0 0
      %1499 = vmatprep.subr.bf16.mxu0 0
      %1500 = vmatpush1.bf16.msra.mxu0 0
      %1501 = vmatprep.subr.bf16.mxu0 0
      %1502 = vmatpush1.bf16.msra.mxu0 0
      %1503 = vmatprep.subr.bf16.mxu0 0
      %1504 = vmatpush1.bf16.msra.mxu0 0
      %1505 = vmatprep.subr.bf16.mxu0 0
      %1506 = vmatpush1.bf16.msra.mxu0 0
      %1507 = vmatprep.subr.bf16.mxu0 0
      %1508 = vmatpush1.bf16.msra.mxu0 0
      %1509 = vmatprep.mubr.bf16.mxu0 0
      %1510 = vmatmul.mubr.bf16.gmra.mrb[0].mxu0 %v1472
      %v1511 = vpop.f32.mrb[0].mxu0
      %v1512 = vadd.f32 0.0, %v1511
      %v1513 = vpop.f32.mrb[0].mxu0
      %v1514 = vpop.f32.mrb[0].mxu0
      %v1515 = vadd.f32 0.0, %v1514
      %v1516 = vpop.f32.mrb[0].mxu0
      %1517 = vmatprep.mubr.bf16.mxu0 0
      %1518 = vmatmul.mubr.bf16.gmra.mrb[0].mxu0 %v1475
      %v1519 = vpop.f32.mrb[0].mxu0
      %v1520 = vadd.f32 0.0, %v1519
      %v1521 = vpop.f32.mrb[0].mxu0
      %v1522 = vpop.f32.mrb[0].mxu0
      %v1523 = vpop.f32.mrb[0].mxu0
      %1524 = vdwg.mxu0
      %v1525 = vadd.f32 %v1430, %v1512
      %v1526 = vadd.f32 %v1431, %v1515
      %v1527 = vadd.f32 %v1432, %v1520
      %v1528 = vld [vmem:[%s257 + $0x8] sm:$0xc]
      %s1529 = scalar_lea.vmem %s1, 224
      %v1530 = vld [vmem:[%s1529] sm:$0xf]
      %v1531 = vld [vmem:[%s1529 + $0x4] sm:$0xf]
      %v1532 = vld [vmem:[%s1529 + $0x8] sm:$0xf]
      %v1533 = vld [vmem:[%s1529 + $0xc] sm:$0xf]
      %v1535 = vunpack.c.l.b16 %v1528
      %v1536 = vpack.c.b16 %v1258, %v1535
      %v1537 = vrot.slane %v1536, 2
      %v1538 = vrot.slane %v1441, 2
      %v1539 = vsel %vm993, %v1537, %v1538
      %v1544 = vunpack.c.l.b16 %v1530
      %v1545 = vunpack.c.l.b16 %v1531
      %v1546 = vunpack.c.l.b16 %v1532
      %v1547 = vunpack.c.l.b16 %v1533
      %v1548 = vpack.c.b16 %v1545, %v1544
      %v1549 = vpack.c.b16 %v1547, %v1546
      %v1553 = vsel %vm319, %v1539, 0
      %v1556 = vsel %vm319, %v1538, 0
      %1558 = vmatprep.subr.bf16.mxu0 0
      %1559 = vmatpush1.bf16.msra.mxu0 %v1548
      %1560 = vmatprep.subr.bf16.mxu0 0
      %1561 = vmatpush1.bf16.msra.mxu0 %v1549
      %1562 = vmatprep.subr.bf16.mxu0 0
      %1563 = vmatpush1.bf16.msra.mxu0 0
      %1564 = vmatprep.subr.bf16.mxu0 0
      %1565 = vmatpush1.bf16.msra.mxu0 0
      %1566 = vmatprep.subr.bf16.mxu0 0
      %1567 = vmatpush1.bf16.msra.mxu0 0
      %1568 = vmatprep.subr.bf16.mxu0 0
      %1569 = vmatpush1.bf16.msra.mxu0 0
      %1570 = vmatprep.subr.bf16.mxu0 0
      %1571 = vmatpush1.bf16.msra.mxu0 0
      %1572 = vmatprep.subr.bf16.mxu0 0
      %1573 = vmatpush1.bf16.msra.mxu0 0
      %1574 = vmatprep.subr.bf16.mxu0 0
      %1575 = vmatpush1.bf16.msra.mxu0 0
      %1576 = vmatprep.subr.bf16.mxu0 0
      %1577 = vmatpush1.bf16.msra.mxu0 0
      %1578 = vmatprep.subr.bf16.mxu0 0
      %1579 = vmatpush1.bf16.msra.mxu0 0
      %1580 = vmatprep.subr.bf16.mxu0 0
      %1581 = vmatpush1.bf16.msra.mxu0 0
      %1582 = vmatprep.subr.bf16.mxu0 0
      %1583 = vmatpush1.bf16.msra.mxu0 0
      %1584 = vmatprep.subr.bf16.mxu0 0
      %1585 = vmatpush1.bf16.msra.mxu0 0
      %1586 = vmatprep.subr.bf16.mxu0 0
      %1587 = vmatpush1.bf16.msra.mxu0 0
      %1588 = vmatprep.subr.bf16.mxu0 0
      %1589 = vmatpush1.bf16.msra.mxu0 0
      %1590 = vmatprep.mubr.bf16.mxu0 0
      %1591 = vmatmul.mubr.bf16.gmra.mrb[0].mxu0 %v1553
      %v1592 = vpop.f32.mrb[0].mxu0
      %v1593 = vadd.f32 0.0, %v1592
      %v1594 = vpop.f32.mrb[0].mxu0
      %v1595 = vpop.f32.mrb[0].mxu0
      %v1596 = vadd.f32 0.0, %v1595
      %v1597 = vpop.f32.mrb[0].mxu0
      %1598 = vmatprep.mubr.bf16.mxu0 0
      %1599 = vmatmul.mubr.bf16.gmra.mrb[0].mxu0 %v1556
      %v1600 = vpop.f32.mrb[0].mxu0
      %v1601 = vadd.f32 0.0, %v1600
      %v1602 = vpop.f32.mrb[0].mxu0
      %v1603 = vpop.f32.mrb[0].mxu0
      %v1604 = vpop.f32.mrb[0].mxu0
      %1605 = vdwg.mxu0
      %v1606 = vadd.f32 %v1525, %v1593
      %v1607 = vadd.f32 %v1526, %v1596
      %v1608 = vadd.f32 %v1527, %v1601
      %v1609 = vld [vmem:[%s257 + $0x10] sm:$0xf]
      %s1610 = scalar_lea.vmem %s1, 240
      %v1611 = vld [vmem:[%s1610] sm:$0xf]
      %v1612 = vld [vmem:[%s1610 + $0x4] sm:$0xf]
      %v1613 = vld [vmem:[%s1610 + $0x8] sm:$0xf]
      %v1614 = vld [vmem:[%s1610 + $0xc] sm:$0xf]
      %v1616 = vunpack.c.l.b16 %v1609
      %v1617 = vpack.c.b16 %v1616, %v1616
      %v1619 = vshrl.u32 %v1536, 16
      %v1621 = vrot.slane %v1619, 2
      %v1622 = vshll.u32 %v1536, 16
      %v1624 = vrot.slane %v1622, 3
      %v1625 = vor.u32 %v1621, %v1624
      %v1627 = vshrl.u32 %v1617, 16
      %v1629 = vrot.slane %v1627, 2
      %v1630 = vshll.u32 %v1617, 16
      %v1632 = vrot.slane %v1630, 3
      %v1633 = vor.u32 %v1629, %v1632
      %v1634 = vsel %vm1075, %v1625, %v1633
      %v1639 = vunpack.c.l.b16 %v1611
      %v1640 = vunpack.c.l.b16 %v1612
      %v1641 = vunpack.c.l.b16 %v1613
      %v1642 = vunpack.c.l.b16 %v1614
      %v1643 = vpack.c.b16 %v1640, %v1639
      %v1644 = vpack.c.b16 %v1642, %v1641
      %v1648 = vsel %vm319, %v1634, 0
      %v1651 = vsel %vm319, %v1633, 0
      %1653 = vmatprep.subr.bf16.mxu0 0
      %1654 = vmatpush1.bf16.msra.mxu0 %v1643
      %1655 = vmatprep.subr.bf16.mxu0 0
      %1656 = vmatpush1.bf16.msra.mxu0 %v1644
      %1657 = vmatprep.subr.bf16.mxu0 0
      %1658 = vmatpush1.bf16.msra.mxu0 0
      %1659 = vmatprep.subr.bf16.mxu0 0
      %1660 = vmatpush1.bf16.msra.mxu0 0
      %1661 = vmatprep.subr.bf16.mxu0 0
      %1662 = vmatpush1.bf16.msra.mxu0 0
      %1663 = vmatprep.subr.bf16.mxu0 0
      %1664 = vmatpush1.bf16.msra.mxu0 0
      %1665 = vmatprep.subr.bf16.mxu0 0
      %1666 = vmatpush1.bf16.msra.mxu0 0
      %1667 = vmatprep.subr.bf16.mxu0 0
      %1668 = vmatpush1.bf16.msra.mxu0 0
      %1669 = vmatprep.subr.bf16.mxu0 0
      %1670 = vmatpush1.bf16.msra.mxu0 0
      %1671 = vmatprep.subr.bf16.mxu0 0
      %1672 = vmatpush1.bf16.msra.mxu0 0
      %1673 = vmatprep.subr.bf16.mxu0 0
      %1674 = vmatpush1.bf16.msra.mxu0 0
      %1675 = vmatprep.subr.bf16.mxu0 0
      %1676 = vmatpush1.bf16.msra.mxu0 0
      %1677 = vmatprep.subr.bf16.mxu0 0
      %1678 = vmatpush1.bf16.msra.mxu0 0
      %1679 = vmatprep.subr.bf16.mxu0 0
      %1680 = vmatpush1.bf16.msra.mxu0 0
      %1681 = vmatprep.subr.bf16.mxu0 0
      %1682 = vmatpush1.bf16.msra.mxu0 0
      %1683 = vmatprep.subr.bf16.mxu0 0
      %1684 = vmatpush1.bf16.msra.mxu0 0
      %1685 = vmatprep.mubr.bf16.mxu0 0
      %1686 = vmatmul.mubr.bf16.gmra.mrb[0].mxu0 %v1648
      %v1687 = vpop.f32.mrb[0].mxu0
      %v1688 = vadd.f32 0.0, %v1687
      %v1689 = vpop.f32.mrb[0].mxu0
      %v1690 = vpop.f32.mrb[0].mxu0
      %v1691 = vadd.f32 0.0, %v1690
      %v1692 = vpop.f32.mrb[0].mxu0
      %1693 = vmatprep.mubr.bf16.mxu0 0
      %1694 = vmatmul.mubr.bf16.gmra.mrb[0].mxu0 %v1651
      %v1695 = vpop.f32.mrb[0].mxu0
      %v1696 = vadd.f32 0.0, %v1695
      %v1697 = vpop.f32.mrb[0].mxu0
      %v1698 = vpop.f32.mrb[0].mxu0
      %v1699 = vpop.f32.mrb[0].mxu0
      %1700 = vdwg.mxu0
      %v1701 = vadd.f32 %v1606, %v1688
      %v1702 = vadd.f32 %v1607, %v1691
      %v1703 = vadd.f32 %v1608, %v1696
      %v1704 = vld [vmem:[%s3] sm:$0xff]
      %v1705 = vld [vmem:[%s3 + $0x8] sm:$0xff]
      %v1706 = vld [vmem:[%s3 + $0x10] sm:$0x3]
      %1708 = vset.pattern.permute.xlu0 0
      %1709 = vperm.xlu0 %1708, %v1704
      %v1710 = vpop.permute.xlu0 %1709
      %1713 = vset.pattern.permute.xlu0 0
      %1714 = vperm.xlu0 %1713, %v1705
      %v1715 = vpop.permute.xlu0 %1714
      %1718 = vset.pattern.permute.xlu0 0
      %1719 = vperm.xlu0 %1718, %v1706
      %v1720 = vpop.permute.xlu0 %1719
      %v1722 = vmul.f32 %v1701, %v1710
      %v1723 = vmul.f32 %v1702, %v1715
      %v1724 = vmul.f32 %v1703, %v1720
      %vm1725 = vcmask 523264
      %v1726 = vsel %vm1725, %v1722, 0.0
      %v1727 = vsel %vm1725, %v1723, 0.0
      %v1728 = vadd.f32 %v1726, %v1727
      %vm1729 = vcmask 517120
      %v1730 = vsel %vm1729, %v1724, 0.0
      %v1731 = vadd.f32 %v1728, %v1730
      %v1732 = vrot.slane %v1731, 4
      %v1733 = vadd.f32 %v1731, %v1732
      %v1734 = vrot.slane %v1733, 2
      %v1735 = vadd.f32 %v1733, %v1734
      %v1736 = vrot.slane %v1735, 1
      %v1737 = vadd.f32 %v1735, %v1736
      %vm1738 = vcmask 516096
      %1739 = vst.msk [vmem:[%s265] sm:$0x1] %vm1738, %v1737
      %v1740 = vmul.f32 %v1722, %v1722
      %v1741 = vmul.f32 %v1723, %v1723
      %v1742 = vmul.f32 %v1724, %v1724
      %v1743 = vsel %vm1725, %v1740, 0.0
      %v1744 = vsel %vm1725, %v1741, 0.0
      %v1745 = vadd.f32 %v1743, %v1744
      %v1746 = vsel %vm1729, %v1742, 0.0
      %v1747 = vadd.f32 %v1745, %v1746
      %v1748 = vrot.slane %v1747, 4
      %v1749 = vadd.f32 %v1747, %v1748
      %v1750 = vrot.slane %v1749, 2
      %v1751 = vadd.f32 %v1749, %v1750
      %v1752 = vrot.slane %v1751, 1
      %v1753 = vadd.f32 %v1751, %v1752
      %1754 = vst.msk [vmem:[%s268] sm:$0x1] %vm1738, %v1753
      %v1755 = vld [vmem:[%s2] sm:$0x1]
      %v1757 = vlaneseq
      %v1758 = vshrl.u32 %v1757, 7
      %v1759 = vsub.s32 0, %v1758
      %v1760 = vrot.slane %v1755, %v1759
      %v1762 = vadd.f32 %v1701, %v1760
      %v1763 = vadd.f32 %v1702, %v1760
      %v1764 = vadd.f32 %v1703, %v1760
      %v1765 = vpack.c.bf16 %v1763, %v1762
      %v1766 = vpack.c.bf16 %v1764, %v1764
      %v1769 = vunpack.c.l.b16 %v1765
      %v1770 = vunpack.c.h.b16 %v1765
      %v1771 = vunpack.c.l.b16 %v1766
      %v1772 = vpack.c.b16 %v1769, %v1769
      %v1773 = vpack.c.b16 %v1770, %v1770
      %v1774 = vpack.c.b16 %v1771, %v1771
      %vm1778 = vcmask 519168
      %1779 = vst.msk [vmem:[%s262] sm:$0xf] %vm1778, %v1772
      %1780 = vst.msk [vmem:[%s262 + $0x4] sm:$0xf] %vm1778, %v1773
      %1781 = vst.msk [vmem:[%s262 + $0x8] sm:$0x1] %vm1738, %v1774
      %p1782 = scmp.lt.s32.totalorder %s18, 1
      %s1783 = scalar_select %p1782, %s18, 1
      %s1784 = smul.addr %s1783, 3
      %s1785 = smul.addr %s1784, 4
      %s1786 = scalar_lea.vmem %s4, %s1785
      %p1787 = scmp.lt.s32.totalorder %s18, 1
      %s1788 = scalar_select %p1787, %s18, 1
      %s1789 = scalar_lea.vmem %s5, %s1788
      %p1790 = scmp.lt.s32.totalorder %s18, 1
      %s1791 = scalar_select %p1790, %s18, 1
      %s1792 = scalar_lea.vmem %s6, %s1791
      // Predicated region
      $region37: #{d_forward.8} parent=35 // pred_check
        %p1793 = pneg %p125
      $region38: #{d_forward.8} parent=35 // pred_check_branch
        %1795 = sbr.rel (%p1793) target = $region40
      $region39: #{d_forward.8} parent=35 // pred_region
        _
      $region40: #{d_forward.8} parent=35 // pred_fallthru
        _
      // Predicated region
      $region41: #{d_forward.8} parent=35 // pred_check
        %p1796 = pneg %p151
      $region42: #{d_forward.8} parent=35 // pred_check_branch
        %1798 = sbr.rel (%p1796) target = $region44
      $region43: #{d_forward.8} parent=35 // pred_region
        _
      $region44: #{d_forward.8} parent=35 // pred_fallthru
        _
      // Predicated region
      $region45: #{d_forward.8} parent=35 // pred_check
        %p1799 = pneg %p177
      $region46: #{d_forward.8} parent=35 // pred_check_branch
        %1801 = sbr.rel (%p1799) target = $region48
      $region47: #{d_forward.8} parent=35 // pred_region
        _
      $region48: #{d_forward.8} parent=35 // pred_fallthru
        _
    $region36: #{d_forward.8} parent=5 // pred_fallthru
      _
    %p1802 = scmp.le.s32.totalorder 2, %s13
    // Predicated region
    $region49: #{d_forward.8} parent=5 // pred_check
      %p1803 = pneg %p1802
    $region50: #{d_forward.8} parent=5 // pred_check_branch
      %1805 = sbr.rel (%p1803) target = $region52
    $region51: #{d_forward.8} parent=5 // pred_region
      %s1806 = ssub.s32 %s13, 2
      // Predicated region
      $region53: #{d_forward.8} parent=51 // pred_check
        %p1807 = pneg %p131
      $region54: #{d_forward.8} parent=51 // pred_check_branch
        %1809 = sbr.rel (%p1807) target = $region56
      $region55: #{d_forward.8} parent=51 // pred_region
        %p1810 = scmp.lt.s32.totalorder %s19, 1
        %s1811 = scalar_select %p1810, %s19, 1
        %s1812 = smul.addr %s1811, 3
        %s1813 = smul.addr %s1812, 4
        %s1814 = scalar_lea.vmem %s4, %s1813
      $region56: #{d_forward.8} parent=51 // pred_fallthru
        _
      // Predicated region
      $region57: #{d_forward.8} parent=51 // pred_check
        %p1815 = pneg %p157
      $region58: #{d_forward.8} parent=51 // pred_check_branch
        %1817 = sbr.rel (%p1815) target = $region60
      $region59: #{d_forward.8} parent=51 // pred_region
        %p1818 = scmp.lt.s32.totalorder %s19, 1
        %s1819 = scalar_select %p1818, %s19, 1
        %s1820 = scalar_lea.vmem %s5, %s1819
      $region60: #{d_forward.8} parent=51 // pred_fallthru
        _
      // Predicated region
      $region61: #{d_forward.8} parent=51 // pred_check
        %p1821 = pneg %p183
      $region62: #{d_forward.8} parent=51 // pred_check_branch
        %1823 = sbr.rel (%p1821) target = $region64
      $region63: #{d_forward.8} parent=51 // pred_region
        %p1824 = scmp.lt.s32.totalorder %s19, 1
        %s1825 = scalar_select %p1824, %s19, 1
        %s1826 = scalar_lea.vmem %s6, %s1825
      $region64: #{d_forward.8} parent=51 // pred_fallthru
        _
    $region52: #{d_forward.8} parent=5 // pred_fallthru
      _
  $region6: #{d_forward.8} parent=0 // loop_footer
    %s17 = sadd.s32 1, %s13
  $region7: #{d_forward.8} parent=0 // loop_footer_branch
    %12 = sbr.rel target = $region3
  $region8: #{d_forward.8} parent=0 // loop_exit
    _

// kernel: d_forward.9
$region0: #{d_forward.9}
  #allocation0 [shape = 'u32[]', space=smem, size = 0x4, offset = 0x4, fixed_abs, tag = 'smem constant byte address 0x4 - core index']
  #allocation1 [shape = 'u32[144,128]{1,0:T(1,128)}', space=vmem, size = 0x12000, scoped, tag = 'internal scratch']
  %s0 = inlined_call_operand.vmem [shape: bf16[2,30,64], index: 0, kind: input, shape index: {}]
  %s1 = inlined_call_operand.vmem [shape: bf16[16,64,128], index: 1, kind: input, shape index: {}]
  %s2 = inlined_call_operand.vmem [shape: f32[1,128], index: 2, kind: input, shape index: {}]
  %s3 = inlined_call_operand.vmem [shape: f32[2,10,128], index: 3, kind: output, shape index: {}]
  %s4 = sld [smem:[#allocation0]]
  $region45: #{d_forward.9} parent=0
    _
  %s6 = ssub.s32 1, %s4
  %s7 = scalar_select 0, %s6, %s4
  loop: start=0, step=1, limit=4
  $region2: #{d_forward.9} parent=0 // loop_pre_header
    _
  $region3: #{d_forward.9} parent=0 // loop_header
    %s9 = sphi 0, %s13
    %p10 = scmp.ge.s32.totalorder %s9, 4
    %s19 = sphi 0, %s21
    %s22 = sphi 0, %s19
    %s23 = sphi 0, %s22
    %s39 = sphi 0, %s23
    %s43 = sphi 0, %s43
    %s45 = sphi 0, %s43
    %s46 = sphi 0, %s45
    %s60 = sphi 0, %s46
    %s64 = sphi 0, %s64
    %s66 = sphi 0, %s64
    %s67 = sphi 0, %s66
    %s81 = sphi 0, %s67
    %s87 = sphi 0, %s89
    %s90 = sphi 0, %s87
    %s91 = sphi 0, %s90
    %s107 = sphi 0, %s91
  $region4: #{d_forward.9} parent=0 // loop_header_branch
    %12 = sbr.rel (%p10) target = $region8
  $region5: #{d_forward.9} parent=0 // loop_body
    %s14 = ssub.s32 %s9, 1
    %s15 = ssub.s32 %s9, 2
    %s16 = sadd.s32 %s9, 1
    %s17 = ssub.s32 %s9, %s16
    %p18 = scmp.eq.s32.totalorder %s17, 0
    %s20 = sadd.s32 %s19, 1
    %s21 = scalar_select %p18, %s19, %s20
    %p24 = pneg %p18
    %p25 = scmp.eq.s32.totalorder %s9, 1
    %p26 = por %p24, %p25
    %p27 = scmp.ne.s32.totalorder %s19, %s22
    %p28 = scmp.eq.s32.totalorder %s9, 0
    %p29 = por %p27, %p28
    %p30 = scmp.ne.s32.totalorder %s19, %s22
    %p31 = scmp.eq.s32.totalorder %s14, 1
    %p32 = por %p30, %p31
    %p33 = scmp.ne.s32.totalorder %s22, %s23
    %p34 = scmp.eq.s32.totalorder %s14, 0
    %p35 = por %p33, %p34
    %p36 = scmp.ne.s32.totalorder %s22, %s23
    %p37 = scmp.eq.s32.totalorder %s15, 1
    %p38 = por %p36, %p37
    %p40 = scmp.ne.s32.totalorder %s23, %s39
    %p41 = scmp.eq.s32.totalorder %s15, 0
    %p42 = por %p40, %p41
    %s44 = sadd.s32 %s43, 1
    %p47 = scmp.eq.s32.totalorder %s9, 1
    %p48 = scmp.ne.s32.totalorder %s43, %s45
    %p49 = scmp.eq.s32.totalorder %s9, 0
    %p50 = por %p48, %p49
    %p51 = scmp.ne.s32.totalorder %s43, %s45
    %p52 = scmp.eq.s32.totalorder %s14, 1
    %p53 = por %p51, %p52
    %p54 = scmp.ne.s32.totalorder %s45, %s46
    %p55 = scmp.eq.s32.totalorder %s14, 0
    %p56 = por %p54, %p55
    %p57 = scmp.ne.s32.totalorder %s45, %s46
    %p58 = scmp.eq.s32.totalorder %s15, 1
    %p59 = por %p57, %p58
    %p61 = scmp.ne.s32.totalorder %s46, %s60
    %p62 = scmp.eq.s32.totalorder %s15, 0
    %p63 = por %p61, %p62
    %s65 = sadd.s32 %s64, 1
    %p68 = scmp.eq.s32.totalorder %s9, 1
    %p69 = scmp.ne.s32.totalorder %s64, %s66
    %p70 = scmp.eq.s32.totalorder %s9, 0
    %p71 = por %p69, %p70
    %p72 = scmp.ne.s32.totalorder %s64, %s66
    %p73 = scmp.eq.s32.totalorder %s14, 1
    %p74 = por %p72, %p73
    %p75 = scmp.ne.s32.totalorder %s66, %s67
    %p76 = scmp.eq.s32.totalorder %s14, 0
    %p77 = por %p75, %p76
    %p78 = scmp.ne.s32.totalorder %s66, %s67
    %p79 = scmp.eq.s32.totalorder %s15, 1
    %p80 = por %p78, %p79
    %p82 = scmp.ne.s32.totalorder %s67, %s81
    %p83 = scmp.eq.s32.totalorder %s15, 0
    %p84 = por %p82, %p83
    %s85 = ssub.s32 %s9, %s16
    %p86 = scmp.eq.s32.totalorder %s85, 0
    %s88 = sadd.s32 %s87, 1
    %s89 = scalar_select %p86, %s87, %s88
    %p92 = pneg %p86
    %p93 = scmp.eq.s32.totalorder %s9, 1
    %p94 = por %p92, %p93
    %p95 = scmp.ne.s32.totalorder %s87, %s90
    %p96 = scmp.eq.s32.totalorder %s9, 0
    %p97 = por %p95, %p96
    %p98 = scmp.ne.s32.totalorder %s87, %s90
    %p99 = scmp.eq.s32.totalorder %s14, 1
    %p100 = por %p98, %p99
    %p101 = scmp.ne.s32.totalorder %s90, %s91
    %p102 = scmp.eq.s32.totalorder %s14, 0
    %p103 = por %p101, %p102
    %p104 = scmp.ne.s32.totalorder %s90, %s91
    %p105 = scmp.eq.s32.totalorder %s15, 1
    %p106 = por %p104, %p105
    %p108 = scmp.ne.s32.totalorder %s91, %s107
    %p109 = scmp.eq.s32.totalorder %s15, 0
    %p110 = por %p108, %p109
    %p111 = scmp.le.s32.totalorder 1, %s9
    %p112 = scmp.lt.s32.totalorder %s9, 3
    %p113 = pnand %p111, %p112
    %p114 = pneg %p113
    // Predicated region
    $region9: #{d_forward.9} parent=5 // pred_check
      _
    $region10: #{d_forward.9} parent=5 // pred_check_branch
      %116 = sbr.rel (%p113) target = $region12
    $region11: #{d_forward.9} parent=5 // pred_region
      %s117 = ssub.s32 %s9, 1
      // Predicated region
      $region13: #{d_forward.9} parent=11 // pred_check
        %p118 = pneg %p56
      $region14: #{d_forward.9} parent=11 // pred_check_branch
        %120 = sbr.rel (%p118) target = $region16
      $region15: #{d_forward.9} parent=11 // pred_region
        _
      $region16: #{d_forward.9} parent=11 // pred_fallthru
        _
      // Predicated region
      $region17: #{d_forward.9} parent=11 // pred_check
        %p121 = pneg %p77
      $region18: #{d_forward.9} parent=11 // pred_check_branch
        %123 = sbr.rel (%p121) target = $region20
      $region19: #{d_forward.9} parent=11 // pred_region
        _
      $region20: #{d_forward.9} parent=11 // pred_fallthru
        _
    $region12: #{d_forward.9} parent=5 // pred_fallthru
      _
    %p124 = scmp.lt.s32.totalorder %s9, 2
    // Predicated region
    $region21: #{d_forward.9} parent=5 // pred_check
      %p125 = pneg %p124
    $region22: #{d_forward.9} parent=5 // pred_check_branch
      %127 = sbr.rel (%p125) target = $region24
    $region23: #{d_forward.9} parent=5 // pred_region
      // Predicated region
      $region25: #{d_forward.9} parent=23 // pred_check
        %p128 = pneg %p29
      $region26: #{d_forward.9} parent=23 // pred_check_branch
        %130 = sbr.rel (%p128) target = $region28
      $region27: #{d_forward.9} parent=23 // pred_region
        %p131 = scmp.lt.s32.totalorder %s9, 1
        %s132 = scalar_select %p131, %s9, 1
        %s133 = smul.addr %s132, 4
        %s134 = smul.addr %s133, 4
        %s135 = scalar_lea.vmem %s0, %s134
      $region28: #{d_forward.9} parent=23 // pred_fallthru
        _
    $region24: #{d_forward.9} parent=5 // pred_fallthru
      _
    %p136 = scmp.le.s32.totalorder 1, %s9
    %p137 = scmp.lt.s32.totalorder %s9, 3
    %p138 = pnand %p136, %p137
    %p139 = pneg %p138
    // Predicated region
    $region29: #{d_forward.9} parent=5 // pred_check
      _
    $region30: #{d_forward.9} parent=5 // pred_check_branch
      %141 = sbr.rel (%p138) target = $region32
    $region31: #{d_forward.9} parent=5 // pred_region
      %s142 = ssub.s32 %s9, 1
      %p143 = scmp.lt.s32.totalorder %s14, 1
      %s144 = scalar_select %p143, %s14, 1
      %s145 = smul.addr %s144, 4
      %s146 = smul.addr %s145, 4
      %s147 = scalar_lea.vmem %s0, %s146
      %p148 = pneg %p35
      %p149 = pneg %p32
      %p150 = pneg %p56
      %p151 = pneg %p53
      %p152 = pneg %p77
      %p153 = pneg %p74
      %p154 = pneg %p103
      %p155 = pneg %p100
      %p156 = scmp.lt.s32.totalorder %s14, 1
      %s157 = scalar_select %p156, %s14, 1
      %s158 = smul.addr %s157, 2
      %s159 = smul.addr %s158, 8
      %s160 = scalar_lea.vmem %s3, %s159
      %p161 = scmp.lt.s32.totalorder %s14, 1
      %s162 = scalar_select %p161, %s14, 1
      %s163 = smul.addr %s162, 4
      %s164 = smul.addr %s163, 4
      %s165 = scalar_lea.vmem %s0, %s164
      %p166 = scmp.lt.s32.totalorder %s14, 1
      %s167 = scalar_select %p166, %s14, 1
      %s168 = smul.addr %s167, 2
      %s169 = smul.addr %s168, 8
      %s170 = scalar_lea.vmem %s3, %s169
      %v172 = vld [vmem:[%s165] sm:$0xf]
      %v173 = vld [vmem:[%s165 + $0x4] sm:$0x1]
      %v174 = vld [vmem:[%s1] sm:$0xf]
      %v175 = vld [vmem:[%s1 + $0x4] sm:$0xf]
      %v176 = vld [vmem:[%s1 + $0x8] sm:$0xf]
      %v177 = vld [vmem:[%s1 + $0xc] sm:$0xf]
      %v178 = vld [vmem:[%s1 + $0x10] sm:$0xf]
      %v179 = vld [vmem:[%s1 + $0x14] sm:$0xf]
      %v180 = vld [vmem:[%s1 + $0x18] sm:$0xf]
      %v181 = vld [vmem:[%s1 + $0x1c] sm:$0xf]
      %v182 = vld [vmem:[%s165 + $0x4] sm:$0x3]
      %s183 = scalar_lea.vmem %s1, 32
      %v184 = vld [vmem:[%s183] sm:$0xf]
      %v185 = vld [vmem:[%s183 + $0x4] sm:$0xf]
      %v186 = vld [vmem:[%s183 + $0x8] sm:$0xf]
      %v187 = vld [vmem:[%s183 + $0xc] sm:$0xf]
      %v188 = vld [vmem:[%s183 + $0x10] sm:$0xf]
      %v189 = vld [vmem:[%s183 + $0x14] sm:$0xf]
      %v190 = vld [vmem:[%s183 + $0x18] sm:$0xf]
      %v191 = vld [vmem:[%s183 + $0x1c] sm:$0xf]
      %v194 = vunpack.c.l.b16 %v172
      %v195 = vunpack.c.l.b16 %v182
      %v196 = vpack.c.b16 %v195, %v194
      %v198 = vshrl.u32 %v196, 16
      %v200 = vshll.u32 %v196, 16
      %v202 = vrot.slane %v200, 1
      %v203 = vor.u32 %v198, %v202
      %v212 = vunpack.c.l.b16 %v184
      %v213 = vunpack.c.l.b16 %v185
      %v214 = vunpack.c.l.b16 %v186
      %v215 = vunpack.c.l.b16 %v187
      %v216 = vunpack.c.l.b16 %v188
      %v217 = vunpack.c.l.b16 %v189
      %v218 = vunpack.c.l.b16 %v190
      %v219 = vunpack.c.l.b16 %v191
      %v220 = vpack.c.b16 %v213, %v212
      %v221 = vpack.c.b16 %v215, %v214
      %v222 = vpack.c.b16 %v217, %v216
      %v223 = vpack.c.b16 %v219, %v218
      %vm228 = vcmask 523264
      %v230 = vsel %vm228, %v203, 0
      %232 = vmatprep.subr.bf16.mxu0 0
      %233 = vmatpush1.bf16.msra.mxu0 %v220
      %234 = vmatprep.subr.bf16.mxu0 0
      %235 = vmatpush1.bf16.msra.mxu0 %v221
      %236 = vmatprep.subr.bf16.mxu0 0
      %237 = vmatpush1.bf16.msra.mxu0 %v222
      %238 = vmatprep.subr.bf16.mxu0 0
      %239 = vmatpush1.bf16.msra.mxu0 %v223
      %240 = vmatprep.subr.bf16.mxu0 0
      %241 = vmatpush1.bf16.msra.mxu0 0
      %242 = vmatprep.subr.bf16.mxu0 0
      %243 = vmatpush1.bf16.msra.mxu0 0
      %244 = vmatprep.subr.bf16.mxu0 0
      %245 = vmatpush1.bf16.msra.mxu0 0
      %246 = vmatprep.subr.bf16.mxu0 0
      %247 = vmatpush1.bf16.msra.mxu0 0
      %248 = vmatprep.subr.bf16.mxu0 0
      %249 = vmatpush1.bf16.msra.mxu0 0
      %250 = vmatprep.subr.bf16.mxu0 0
      %251 = vmatpush1.bf16.msra.mxu0 0
      %252 = vmatprep.subr.bf16.mxu0 0
      %253 = vmatpush1.bf16.msra.mxu0 0
      %254 = vmatprep.subr.bf16.mxu0 0
      %255 = vmatpush1.bf16.msra.mxu0 0
      %256 = vmatprep.subr.bf16.mxu0 0
      %257 = vmatpush1.bf16.msra.mxu0 0
      %258 = vmatprep.subr.bf16.mxu0 0
      %259 = vmatpush1.bf16.msra.mxu0 0
      %260 = vmatprep.subr.bf16.mxu0 0
      %261 = vmatpush1.bf16.msra.mxu0 0
      %262 = vmatprep.subr.bf16.mxu0 0
      %263 = vmatpush1.bf16.msra.mxu0 0
      %264 = vmatprep.mubr.bf16.mxu0 0
      %265 = vmatmul.mubr.bf16.gmra.mrb[0].mxu0 %v230
      %v266 = vpop.f32.mrb[0].mxu0
      %v267 = vadd.f32 0.0, %v266
      %v268 = vpop.f32.mrb[0].mxu0
      %v269 = vpop.f32.mrb[0].mxu0
      %v270 = vadd.f32 0.0, %v269
      %v271 = vpop.f32.mrb[0].mxu0
      %272 = vdwg.mxu0
      %v274 = vunpack.c.l.b16 %v173
      %v275 = vpack.c.b16 %v274, %v194
      %v284 = vunpack.c.l.b16 %v174
      %v285 = vunpack.c.l.b16 %v175
      %v286 = vunpack.c.l.b16 %v176
      %v287 = vunpack.c.l.b16 %v177
      %v288 = vunpack.c.l.b16 %v178
      %v289 = vunpack.c.l.b16 %v179
      %v290 = vunpack.c.l.b16 %v180
      %v291 = vunpack.c.l.b16 %v181
      %v292 = vpack.c.b16 %v285, %v284
      %v293 = vpack.c.b16 %v287, %v286
      %v294 = vpack.c.b16 %v289, %v288
      %v295 = vpack.c.b16 %v291, %v290
      %v301 = vsel %vm228, %v275, 0
      %303 = vmatprep.subr.bf16.mxu0 0
      %304 = vmatpush1.bf16.msra.mxu0 %v292
      %305 = vmatprep.subr.bf16.mxu0 0
      %306 = vmatpush1.bf16.msra.mxu0 %v293
      %307 = vmatprep.subr.bf16.mxu0 0
      %308 = vmatpush1.bf16.msra.mxu0 %v294
      %309 = vmatprep.subr.bf16.mxu0 0
      %310 = vmatpush1.bf16.msra.mxu0 %v295
      %311 = vmatprep.subr.bf16.mxu0 0
      %312 = vmatpush1.bf16.msra.mxu0 0
      %313 = vmatprep.subr.bf16.mxu0 0
      %314 = vmatpush1.bf16.msra.mxu0 0
      %315 = vmatprep.subr.bf16.mxu0 0
      %316 = vmatpush1.bf16.msra.mxu0 0
      %317 = vmatprep.subr.bf16.mxu0 0
      %318 = vmatpush1.bf16.msra.mxu0 0
      %319 = vmatprep.subr.bf16.mxu0 0
      %320 = vmatpush1.bf16.msra.mxu0 0
      %321 = vmatprep.subr.bf16.mxu0 0
      %322 = vmatpush1.bf16.msra.mxu0 0
      %323 = vmatprep.subr.bf16.mxu0 0
      %324 = vmatpush1.bf16.msra.mxu0 0
      %325 = vmatprep.subr.bf16.mxu0 0
      %326 = vmatpush1.bf16.msra.mxu0 0
      %327 = vmatprep.subr.bf16.mxu0 0
      %328 = vmatpush1.bf16.msra.mxu0 0
      %329 = vmatprep.subr.bf16.mxu0 0
      %330 = vmatpush1.bf16.msra.mxu0 0
      %331 = vmatprep.subr.bf16.mxu0 0
      %332 = vmatpush1.bf16.msra.mxu0 0
      %333 = vmatprep.subr.bf16.mxu0 0
      %334 = vmatpush1.bf16.msra.mxu0 0
      %335 = vmatprep.mubr.bf16.mxu0 0
      %336 = vmatmul.mubr.bf16.gmra.mrb[0].mxu0 %v301
      %v337 = vpop.f32.mrb[0].mxu0
      %v338 = vadd.f32 %v267, %v337
      %v339 = vpop.f32.mrb[0].mxu0
      %v340 = vpop.f32.mrb[0].mxu0
      %v341 = vadd.f32 %v270, %v340
      %v342 = vpop.f32.mrb[0].mxu0
      %343 = vdwg.mxu0
      %v344 = vld [vmem:[%s165] sm:$0xe]
      %s345 = scalar_lea.vmem %s1, 64
      %v346 = vld [vmem:[%s345] sm:$0xf]
      %v347 = vld [vmem:[%s345 + $0x4] sm:$0xf]
      %v348 = vld [vmem:[%s345 + $0x8] sm:$0xf]
      %v349 = vld [vmem:[%s345 + $0xc] sm:$0xf]
      %v350 = vld [vmem:[%s345 + $0x10] sm:$0xf]
      %v351 = vld [vmem:[%s345 + $0x14] sm:$0xf]
      %v352 = vld [vmem:[%s345 + $0x18] sm:$0xf]
      %v353 = vld [vmem:[%s345 + $0x1c] sm:$0xf]
      %v355 = vunpack.c.l.b16 %v344
      %v356 = vpack.c.b16 %v195, %v355
      %v357 = vrot.slane %v356, 1
      %v366 = vunpack.c.l.b16 %v346
      %v367 = vunpack.c.l.b16 %v347
      %v368 = vunpack.c.l.b16 %v348
      %v369 = vunpack.c.l.b16 %v349
      %v370 = vunpack.c.l.b16 %v350
      %v371 = vunpack.c.l.b16 %v351
      %v372 = vunpack.c.l.b16 %v352
      %v373 = vunpack.c.l.b16 %v353
      %v374 = vpack.c.b16 %v367, %v366
      %v375 = vpack.c.b16 %v369, %v368
      %v376 = vpack.c.b16 %v371, %v370
      %v377 = vpack.c.b16 %v373, %v372
      %v383 = vsel %vm228, %v357, 0
      %385 = vmatprep.subr.bf16.mxu0 0
      %386 = vmatpush1.bf16.msra.mxu0 %v374
      %387 = vmatprep.subr.bf16.mxu0 0
      %388 = vmatpush1.bf16.msra.mxu0 %v375
      %389 = vmatprep.subr.bf16.mxu0 0
      %390 = vmatpush1.bf16.msra.mxu0 %v376
      %391 = vmatprep.subr.bf16.mxu0 0
      %392 = vmatpush1.bf16.msra.mxu0 %v377
      %393 = vmatprep.subr.bf16.mxu0 0
      %394 = vmatpush1.bf16.msra.mxu0 0
      %395 = vmatprep.subr.bf16.mxu0 0
      %396 = vmatpush1.bf16.msra.mxu0 0
      %397 = vmatprep.subr.bf16.mxu0 0
      %398 = vmatpush1.bf16.msra.mxu0 0
      %399 = vmatprep.subr.bf16.mxu0 0
      %400 = vmatpush1.bf16.msra.mxu0 0
      %401 = vmatprep.subr.bf16.mxu0 0
      %402 = vmatpush1.bf16.msra.mxu0 0
      %403 = vmatprep.subr.bf16.mxu0 0
      %404 = vmatpush1.bf16.msra.mxu0 0
      %405 = vmatprep.subr.bf16.mxu0 0
      %406 = vmatpush1.bf16.msra.mxu0 0
      %407 = vmatprep.subr.bf16.mxu0 0
      %408 = vmatpush1.bf16.msra.mxu0 0
      %409 = vmatprep.subr.bf16.mxu0 0
      %410 = vmatpush1.bf16.msra.mxu0 0
      %411 = vmatprep.subr.bf16.mxu0 0
      %412 = vmatpush1.bf16.msra.mxu0 0
      %413 = vmatprep.subr.bf16.mxu0 0
      %414 = vmatpush1.bf16.msra.mxu0 0
      %415 = vmatprep.subr.bf16.mxu0 0
      %416 = vmatpush1.bf16.msra.mxu0 0
      %417 = vmatprep.mubr.bf16.mxu0 0
      %418 = vmatmul.mubr.bf16.gmra.mrb[0].mxu0 %v383
      %v419 = vpop.f32.mrb[0].mxu0
      %v420 = vadd.f32 0.0, %v419
      %v421 = vpop.f32.mrb[0].mxu0
      %v422 = vpop.f32.mrb[0].mxu0
      %v423 = vadd.f32 0.0, %v422
      %v424 = vpop.f32.mrb[0].mxu0
      %425 = vdwg.mxu0
      %v426 = vadd.f32 %v338, %v420
      %v427 = vadd.f32 %v341, %v423
      %v428 = vld [vmem:[%s165 + $0x4] sm:$0x7]
      %s429 = scalar_lea.vmem %s1, 96
      %v430 = vld [vmem:[%s429] sm:$0xf]
      %v431 = vld [vmem:[%s429 + $0x4] sm:$0xf]
      %v432 = vld [vmem:[%s429 + $0x8] sm:$0xf]
      %v433 = vld [vmem:[%s429 + $0xc] sm:$0xf]
      %v434 = vld [vmem:[%s429 + $0x10] sm:$0xf]
      %v435 = vld [vmem:[%s429 + $0x14] sm:$0xf]
      %v436 = vld [vmem:[%s429 + $0x18] sm:$0xf]
      %v437 = vld [vmem:[%s429 + $0x1c] sm:$0xf]
      %v439 = vunpack.c.l.b16 %v428
      %v440 = vpack.c.b16 %v439, %v355
      %v442 = vshrl.u32 %v440, 16
      %v444 = vrot.slane %v442, 1
      %v445 = vshll.u32 %v440, 16
      %v447 = vrot.slane %v445, 2
      %v448 = vor.u32 %v444, %v447
      %v457 = vunpack.c.l.b16 %v430
      %v458 = vunpack.c.l.b16 %v431
      %v459 = vunpack.c.l.b16 %v432
      %v460 = vunpack.c.l.b16 %v433
      %v461 = vunpack.c.l.b16 %v434
      %v462 = vunpack.c.l.b16 %v435
      %v463 = vunpack.c.l.b16 %v436
      %v464 = vunpack.c.l.b16 %v437
      %v465 = vpack.c.b16 %v458, %v457
      %v466 = vpack.c.b16 %v460, %v459
      %v467 = vpack.c.b16 %v462, %v461
      %v468 = vpack.c.b16 %v464, %v463
      %v474 = vsel %vm228, %v448, 0
      %476 = vmatprep.subr.bf16.mxu0 0
      %477 = vmatpush1.bf16.msra.mxu0 %v465
      %478 = vmatprep.subr.bf16.mxu0 0
      %479 = vmatpush1.bf16.msra.mxu0 %v466
      %480 = vmatprep.subr.bf16.mxu0 0
      %481 = vmatpush1.bf16.msra.mxu0 %v467
      %482 = vmatprep.subr.bf16.mxu0 0
      %483 = vmatpush1.bf16.msra.mxu0 %v468
      %484 = vmatprep.subr.bf16.mxu0 0
      %485 = vmatpush1.bf16.msra.mxu0 0
      %486 = vmatprep.subr.bf16.mxu0 0
      %487 = vmatpush1.bf16.msra.mxu0 0
      %488 = vmatprep.subr.bf16.mxu0 0
      %489 = vmatpush1.bf16.msra.mxu0 0
      %490 = vmatprep.subr.bf16.mxu0 0
      %491 = vmatpush1.bf16.msra.mxu0 0
      %492 = vmatprep.subr.bf16.mxu0 0
      %493 = vmatpush1.bf16.msra.mxu0 0
      %494 = vmatprep.subr.bf16.mxu0 0
      %495 = vmatpush1.bf16.msra.mxu0 0
      %496 = vmatprep.subr.bf16.mxu0 0
      %497 = vmatpush1.bf16.msra.mxu0 0
      %498 = vmatprep.subr.bf16.mxu0 0
      %499 = vmatpush1.bf16.msra.mxu0 0
      %500 = vmatprep.subr.bf16.mxu0 0
      %501 = vmatpush1.bf16.msra.mxu0 0
      %502 = vmatprep.subr.bf16.mxu0 0
      %503 = vmatpush1.bf16.msra.mxu0 0
      %504 = vmatprep.subr.bf16.mxu0 0
      %505 = vmatpush1.bf16.msra.mxu0 0
      %506 = vmatprep.subr.bf16.mxu0 0
      %507 = vmatpush1.bf16.msra.mxu0 0
      %508 = vmatprep.mubr.bf16.mxu0 0
      %509 = vmatmul.mubr.bf16.gmra.mrb[0].mxu0 %v474
      %v510 = vpop.f32.mrb[0].mxu0
      %v511 = vadd.f32 0.0, %v510
      %v512 = vpop.f32.mrb[0].mxu0
      %v513 = vpop.f32.mrb[0].mxu0
      %v514 = vadd.f32 0.0, %v513
      %v515 = vpop.f32.mrb[0].mxu0
      %516 = vdwg.mxu0
      %v517 = vadd.f32 %v426, %v511
      %v518 = vadd.f32 %v427, %v514
      %v519 = vld [vmem:[%s165] sm:$0xc]
      %v520 = vld [vmem:[%s165 + $0x4] sm:$0xf]
      %s521 = scalar_lea.vmem %s1, 128
      %v522 = vld [vmem:[%s521] sm:$0xf]
      %v523 = vld [vmem:[%s521 + $0x4] sm:$0xf]
      %v524 = vld [vmem:[%s521 + $0x8] sm:$0xf]
      %v525 = vld [vmem:[%s521 + $0xc] sm:$0xf]
      %v526 = vld [vmem:[%s521 + $0x10] sm:$0xf]
      %v527 = vld [vmem:[%s521 + $0x14] sm:$0xf]
      %v528 = vld [vmem:[%s521 + $0x18] sm:$0xf]
      %v529 = vld [vmem:[%s521 + $0x1c] sm:$0xf]
      %v532 = vunpack.c.l.b16 %v519
      %v533 = vunpack.c.l.b16 %v520
      %v534 = vpack.c.b16 %v533, %v532
      %v536 = vshrl.u32 %v534, 16
      %v538 = vrot.slane %v536, 2
      %v539 = vshll.u32 %v534, 16
      %v541 = vrot.slane %v539, 3
      %v542 = vor.u32 %v538, %v541
      %v551 = vunpack.c.l.b16 %v522
      %v552 = vunpack.c.l.b16 %v523
      %v553 = vunpack.c.l.b16 %v524
      %v554 = vunpack.c.l.b16 %v525
      %v555 = vunpack.c.l.b16 %v526
      %v556 = vunpack.c.l.b16 %v527
      %v557 = vunpack.c.l.b16 %v528
      %v558 = vunpack.c.l.b16 %v529
      %v559 = vpack.c.b16 %v552, %v551
      %v560 = vpack.c.b16 %v554, %v553
      %v561 = vpack.c.b16 %v556, %v555
      %v562 = vpack.c.b16 %v558, %v557
      %v568 = vsel %vm228, %v542, 0
      %570 = vmatprep.subr.bf16.mxu0 0
      %571 = vmatpush1.bf16.msra.mxu0 %v559
      %572 = vmatprep.subr.bf16.mxu0 0
      %573 = vmatpush1.bf16.msra.mxu0 %v560
      %574 = vmatprep.subr.bf16.mxu0 0
      %575 = vmatpush1.bf16.msra.mxu0 %v561
      %576 = vmatprep.subr.bf16.mxu0 0
      %577 = vmatpush1.bf16.msra.mxu0 %v562
      %578 = vmatprep.subr.bf16.mxu0 0
      %579 = vmatpush1.bf16.msra.mxu0 0
      %580 = vmatprep.subr.bf16.mxu0 0
      %581 = vmatpush1.bf16.msra.mxu0 0
      %582 = vmatprep.subr.bf16.mxu0 0
      %583 = vmatpush1.bf16.msra.mxu0 0
      %584 = vmatprep.subr.bf16.mxu0 0
      %585 = vmatpush1.bf16.msra.mxu0 0
      %586 = vmatprep.subr.bf16.mxu0 0
      %587 = vmatpush1.bf16.msra.mxu0 0
      %588 = vmatprep.subr.bf16.mxu0 0
      %589 = vmatpush1.bf16.msra.mxu0 0
      %590 = vmatprep.subr.bf16.mxu0 0
      %591 = vmatpush1.bf16.msra.mxu0 0
      %592 = vmatprep.subr.bf16.mxu0 0
      %593 = vmatpush1.bf16.msra.mxu0 0
      %594 = vmatprep.subr.bf16.mxu0 0
      %595 = vmatpush1.bf16.msra.mxu0 0
      %596 = vmatprep.subr.bf16.mxu0 0
      %597 = vmatpush1.bf16.msra.mxu0 0
      %598 = vmatprep.subr.bf16.mxu0 0
      %599 = vmatpush1.bf16.msra.mxu0 0
      %600 = vmatprep.subr.bf16.mxu0 0
      %601 = vmatpush1.bf16.msra.mxu0 0
      %602 = vmatprep.mubr.bf16.mxu0 0
      %603 = vmatmul.mubr.bf16.gmra.mrb[0].mxu0 %v568
      %v604 = vpop.f32.mrb[0].mxu0
      %v605 = vadd.f32 0.0, %v604
      %v606 = vpop.f32.mrb[0].mxu0
      %v607 = vpop.f32.mrb[0].mxu0
      %v608 = vadd.f32 0.0, %v607
      %v609 = vpop.f32.mrb[0].mxu0
      %610 = vdwg.mxu0
      %v611 = vadd.f32 %v517, %v605
      %v612 = vadd.f32 %v518, %v608
      %v613 = vld [vmem:[%s165] sm:$0x8]
      %s614 = scalar_lea.vmem %s1, 160
      %v615 = vld [vmem:[%s614] sm:$0xf]
      %v616 = vld [vmem:[%s614 + $0x4] sm:$0xf]
      %v617 = vld [vmem:[%s614 + $0x8] sm:$0xf]
      %v618 = vld [vmem:[%s614 + $0xc] sm:$0xf]
      %v619 = vld [vmem:[%s614 + $0x10] sm:$0xf]
      %v620 = vld [vmem:[%s614 + $0x14] sm:$0xf]
      %v621 = vld [vmem:[%s614 + $0x18] sm:$0xf]
      %v622 = vld [vmem:[%s614 + $0x1c] sm:$0xf]
      %v624 = vunpack.c.l.b16 %v613
      %v625 = vpack.c.b16 %v533, %v624
      %v626 = vrot.slane %v625, 3
      %v635 = vunpack.c.l.b16 %v615
      %v636 = vunpack.c.l.b16 %v616
      %v637 = vunpack.c.l.b16 %v617
      %v638 = vunpack.c.l.b16 %v618
      %v639 = vunpack.c.l.b16 %v619
      %v640 = vunpack.c.l.b16 %v620
      %v641 = vunpack.c.l.b16 %v621
      %v642 = vunpack.c.l.b16 %v622
      %v643 = vpack.c.b16 %v636, %v635
      %v644 = vpack.c.b16 %v638, %v637
      %v645 = vpack.c.b16 %v640, %v639
      %v646 = vpack.c.b16 %v642, %v641
      %v652 = vsel %vm228, %v626, 0
      %654 = vmatprep.subr.bf16.mxu0 0
      %655 = vmatpush1.bf16.msra.mxu0 %v643
      %656 = vmatprep.subr.bf16.mxu0 0
      %657 = vmatpush1.bf16.msra.mxu0 %v644
      %658 = vmatprep.subr.bf16.mxu0 0
      %659 = vmatpush1.bf16.msra.mxu0 %v645
      %660 = vmatprep.subr.bf16.mxu0 0
      %661 = vmatpush1.bf16.msra.mxu0 %v646
      %662 = vmatprep.subr.bf16.mxu0 0
      %663 = vmatpush1.bf16.msra.mxu0 0
      %664 = vmatprep.subr.bf16.mxu0 0
      %665 = vmatpush1.bf16.msra.mxu0 0
      %666 = vmatprep.subr.bf16.mxu0 0
      %667 = vmatpush1.bf16.msra.mxu0 0
      %668 = vmatprep.subr.bf16.mxu0 0
      %669 = vmatpush1.bf16.msra.mxu0 0
      %670 = vmatprep.subr.bf16.mxu0 0
      %671 = vmatpush1.bf16.msra.mxu0 0
      %672 = vmatprep.subr.bf16.mxu0 0
      %673 = vmatpush1.bf16.msra.mxu0 0
      %674 = vmatprep.subr.bf16.mxu0 0
      %675 = vmatpush1.bf16.msra.mxu0 0
      %676 = vmatprep.subr.bf16.mxu0 0
      %677 = vmatpush1.bf16.msra.mxu0 0
      %678 = vmatprep.subr.bf16.mxu0 0
      %679 = vmatpush1.bf16.msra.mxu0 0
      %680 = vmatprep.subr.bf16.mxu0 0
      %681 = vmatpush1.bf16.msra.mxu0 0
      %682 = vmatprep.subr.bf16.mxu0 0
      %683 = vmatpush1.bf16.msra.mxu0 0
      %684 = vmatprep.subr.bf16.mxu0 0
      %685 = vmatpush1.bf16.msra.mxu0 0
      %686 = vmatprep.mubr.bf16.mxu0 0
      %687 = vmatmul.mubr.bf16.gmra.mrb[0].mxu0 %v652
      %v688 = vpop.f32.mrb[0].mxu0
      %v689 = vadd.f32 0.0, %v688
      %v690 = vpop.f32.mrb[0].mxu0
      %v691 = vpop.f32.mrb[0].mxu0
      %v692 = vadd.f32 0.0, %v691
      %v693 = vpop.f32.mrb[0].mxu0
      %694 = vdwg.mxu0
      %v695 = vadd.f32 %v611, %v689
      %v696 = vadd.f32 %v612, %v692
      %v697 = vld [vmem:[%s165] sm:$0x8]
      %v698 = vld [vmem:[%s165 + $0x4] sm:$0xf]
      %v699 = vld [vmem:[%s165 + $0x8] sm:$0x1]
      %s700 = scalar_lea.vmem %s1, 192
      %v701 = vld [vmem:[%s700] sm:$0xf]
      %v702 = vld [vmem:[%s700 + $0x4] sm:$0xf]
      %v703 = vld [vmem:[%s700 + $0x8] sm:$0xf]
      %v704 = vld [vmem:[%s700 + $0xc] sm:$0xf]
      %v705 = vld [vmem:[%s700 + $0x10] sm:$0xf]
      %v706 = vld [vmem:[%s700 + $0x14] sm:$0xf]
      %v707 = vld [vmem:[%s700 + $0x18] sm:$0xf]
      %v708 = vld [vmem:[%s700 + $0x1c] sm:$0xf]
      %v712 = vunpack.c.l.b16 %v697
      %v713 = vunpack.c.l.b16 %v698
      %v714 = vunpack.c.l.b16 %v699
      %v715 = vpack.c.b16 %v713, %v712
      %v716 = vpack.c.b16 %v714, %v714
      %vm717 = vsmask.f32 4352
      %v719 = vshrl.u32 %v715, 16
      %v721 = vrot.slane %v719, 3
      %v722 = vshll.u32 %v715, 16
      %v724 = vrot.slane %v722, 4
      %v725 = vor.u32 %v721, %v724
      %v727 = vshll.u32 %v716, 16
      %v729 = vrot.slane %v727, 4
      %v730 = vsel %vm717, %v725, %v729
      %v739 = vunpack.c.l.b16 %v701
      %v740 = vunpack.c.l.b16 %v702
      %v741 = vunpack.c.l.b16 %v703
      %v742 = vunpack.c.l.b16 %v704
      %v743 = vunpack.c.l.b16 %v705
      %v744 = vunpack.c.l.b16 %v706
      %v745 = vunpack.c.l.b16 %v707
      %v746 = vunpack.c.l.b16 %v708
      %v747 = vpack.c.b16 %v740, %v739
      %v748 = vpack.c.b16 %v742, %v741
      %v749 = vpack.c.b16 %v744, %v743
      %v750 = vpack.c.b16 %v746, %v745
      %v756 = vsel %vm228, %v730, 0
      %758 = vmatprep.subr.bf16.mxu0 0
      %759 = vmatpush1.bf16.msra.mxu0 %v747
      %760 = vmatprep.subr.bf16.mxu0 0
      %761 = vmatpush1.bf16.msra.mxu0 %v748
      %762 = vmatprep.subr.bf16.mxu0 0
      %763 = vmatpush1.bf16.msra.mxu0 %v749
      %764 = vmatprep.subr.bf16.mxu0 0
      %765 = vmatpush1.bf16.msra.mxu0 %v750
      %766 = vmatprep.subr.bf16.mxu0 0
      %767 = vmatpush1.bf16.msra.mxu0 0
      %768 = vmatprep.subr.bf16.mxu0 0
      %769 = vmatpush1.bf16.msra.mxu0 0
      %770 = vmatprep.subr.bf16.mxu0 0
      %771 = vmatpush1.bf16.msra.mxu0 0
      %772 = vmatprep.subr.bf16.mxu0 0
      %773 = vmatpush1.bf16.msra.mxu0 0
      %774 = vmatprep.subr.bf16.mxu0 0
      %775 = vmatpush1.bf16.msra.mxu0 0
      %776 = vmatprep.subr.bf16.mxu0 0
      %777 = vmatpush1.bf16.msra.mxu0 0
      %778 = vmatprep.subr.bf16.mxu0 0
      %779 = vmatpush1.bf16.msra.mxu0 0
      %780 = vmatprep.subr.bf16.mxu0 0
      %781 = vmatpush1.bf16.msra.mxu0 0
      %782 = vmatprep.subr.bf16.mxu0 0
      %783 = vmatpush1.bf16.msra.mxu0 0
      %784 = vmatprep.subr.bf16.mxu0 0
      %785 = vmatpush1.bf16.msra.mxu0 0
      %786 = vmatprep.subr.bf16.mxu0 0
      %787 = vmatpush1.bf16.msra.mxu0 0
      %788 = vmatprep.subr.bf16.mxu0 0
      %789 = vmatpush1.bf16.msra.mxu0 0
      %790 = vmatprep.mubr.bf16.mxu0 0
      %791 = vmatmul.mubr.bf16.gmra.mrb[0].mxu0 %v756
      %v792 = vpop.f32.mrb[0].mxu0
      %v793 = vadd.f32 0.0, %v792
      %v794 = vpop.f32.mrb[0].mxu0
      %v795 = vpop.f32.mrb[0].mxu0
      %v796 = vadd.f32 0.0, %v795
      %v797 = vpop.f32.mrb[0].mxu0
      %798 = vdwg.mxu0
      %v799 = vadd.f32 %v695, %v793
      %v800 = vadd.f32 %v696, %v796
      %s801 = scalar_lea.vmem %s1, 224
      %v802 = vld [vmem:[%s801] sm:$0xf]
      %v803 = vld [vmem:[%s801 + $0x4] sm:$0xf]
      %v804 = vld [vmem:[%s801 + $0x8] sm:$0xf]
      %v805 = vld [vmem:[%s801 + $0xc] sm:$0xf]
      %v806 = vld [vmem:[%s801 + $0x10] sm:$0xf]
      %v807 = vld [vmem:[%s801 + $0x14] sm:$0xf]
      %v808 = vld [vmem:[%s801 + $0x18] sm:$0xf]
      %v809 = vld [vmem:[%s801 + $0x1c] sm:$0xf]
      %v810 = vpack.c.b16 %v714, %v713
      %v819 = vunpack.c.l.b16 %v802
      %v820 = vunpack.c.l.b16 %v803
      %v821 = vunpack.c.l.b16 %v804
      %v822 = vunpack.c.l.b16 %v805
      %v823 = vunpack.c.l.b16 %v806
      %v824 = vunpack.c.l.b16 %v807
      %v825 = vunpack.c.l.b16 %v808
      %v826 = vunpack.c.l.b16 %v809
      %v827 = vpack.c.b16 %v820, %v819
      %v828 = vpack.c.b16 %v822, %v821
      %v829 = vpack.c.b16 %v824, %v823
      %v830 = vpack.c.b16 %v826, %v825
      %v836 = vsel %vm228, %v810, 0
      %838 = vmatprep.subr.bf16.mxu0 0
      %839 = vmatpush1.bf16.msra.mxu0 %v827
      %840 = vmatprep.subr.bf16.mxu0 0
      %841 = vmatpush1.bf16.msra.mxu0 %v828
      %842 = vmatprep.subr.bf16.mxu0 0
      %843 = vmatpush1.bf16.msra.mxu0 %v829
      %844 = vmatprep.subr.bf16.mxu0 0
      %845 = vmatpush1.bf16.msra.mxu0 %v830
      %846 = vmatprep.subr.bf16.mxu0 0
      %847 = vmatpush1.bf16.msra.mxu0 0
      %848 = vmatprep.subr.bf16.mxu0 0
      %849 = vmatpush1.bf16.msra.mxu0 0
      %850 = vmatprep.subr.bf16.mxu0 0
      %851 = vmatpush1.bf16.msra.mxu0 0
      %852 = vmatprep.subr.bf16.mxu0 0
      %853 = vmatpush1.bf16.msra.mxu0 0
      %854 = vmatprep.subr.bf16.mxu0 0
      %855 = vmatpush1.bf16.msra.mxu0 0
      %856 = vmatprep.subr.bf16.mxu0 0
      %857 = vmatpush1.bf16.msra.mxu0 0
      %858 = vmatprep.subr.bf16.mxu0 0
      %859 = vmatpush1.bf16.msra.mxu0 0
      %860 = vmatprep.subr.bf16.mxu0 0
      %861 = vmatpush1.bf16.msra.mxu0 0
      %862 = vmatprep.subr.bf16.mxu0 0
      %863 = vmatpush1.bf16.msra.mxu0 0
      %864 = vmatprep.subr.bf16.mxu0 0
      %865 = vmatpush1.bf16.msra.mxu0 0
      %866 = vmatprep.subr.bf16.mxu0 0
      %867 = vmatpush1.bf16.msra.mxu0 0
      %868 = vmatprep.subr.bf16.mxu0 0
      %869 = vmatpush1.bf16.msra.mxu0 0
      %870 = vmatprep.mubr.bf16.mxu0 0
      %871 = vmatmul.mubr.bf16.gmra.mrb[0].mxu0 %v836
      %v872 = vpop.f32.mrb[0].mxu0
      %v873 = vadd.f32 0.0, %v872
      %v874 = vpop.f32.mrb[0].mxu0
      %v875 = vpop.f32.mrb[0].mxu0
      %v876 = vadd.f32 0.0, %v875
      %v877 = vpop.f32.mrb[0].mxu0
      %878 = vdwg.mxu0
      %v879 = vadd.f32 %v799, %v873
      %v880 = vadd.f32 %v800, %v876
      %v881 = vld [vmem:[%s165 + $0x4] sm:$0xe]
      %v882 = vld [vmem:[%s165 + $0x8] sm:$0x3]
      %s883 = scalar_lea.vmem %s1, 256
      %v884 = vld [vmem:[%s883] sm:$0xf]
      %v885 = vld [vmem:[%s883 + $0x4] sm:$0xf]
      %v886 = vld [vmem:[%s883 + $0x8] sm:$0xf]
      %v887 = vld [vmem:[%s883 + $0xc] sm:$0xf]
      %v888 = vld [vmem:[%s883 + $0x10] sm:$0xf]
      %v889 = vld [vmem:[%s883 + $0x14] sm:$0xf]
      %v890 = vld [vmem:[%s883 + $0x18] sm:$0xf]
      %v891 = vld [vmem:[%s883 + $0x1c] sm:$0xf]
      %v894 = vunpack.c.l.b16 %v881
      %v895 = vunpack.c.l.b16 %v882
      %v896 = vpack.c.b16 %v895, %v894
      %v897 = vrot.slane %v896, 1
      %v906 = vunpack.c.l.b16 %v884
      %v907 = vunpack.c.l.b16 %v885
      %v908 = vunpack.c.l.b16 %v886
      %v909 = vunpack.c.l.b16 %v887
      %v910 = vunpack.c.l.b16 %v888
      %v911 = vunpack.c.l.b16 %v889
      %v912 = vunpack.c.l.b16 %v890
      %v913 = vunpack.c.l.b16 %v891
      %v914 = vpack.c.b16 %v907, %v906
      %v915 = vpack.c.b16 %v909, %v908
      %v916 = vpack.c.b16 %v911, %v910
      %v917 = vpack.c.b16 %v913, %v912
      %v923 = vsel %vm228, %v897, 0
      %925 = vmatprep.subr.bf16.mxu0 0
      %926 = vmatpush1.bf16.msra.mxu0 %v914
      %927 = vmatprep.subr.bf16.mxu0 0
      %928 = vmatpush1.bf16.msra.mxu0 %v915
      %929 = vmatprep.subr.bf16.mxu0 0
      %930 = vmatpush1.bf16.msra.mxu0 %v916
      %931 = vmatprep.subr.bf16.mxu0 0
      %932 = vmatpush1.bf16.msra.mxu0 %v917
      %933 = vmatprep.subr.bf16.mxu0 0
      %934 = vmatpush1.bf16.msra.mxu0 0
      %935 = vmatprep.subr.bf16.mxu0 0
      %936 = vmatpush1.bf16.msra.mxu0 0
      %937 = vmatprep.subr.bf16.mxu0 0
      %938 = vmatpush1.bf16.msra.mxu0 0
      %939 = vmatprep.subr.bf16.mxu0 0
      %940 = vmatpush1.bf16.msra.mxu0 0
      %941 = vmatprep.subr.bf16.mxu0 0
      %942 = vmatpush1.bf16.msra.mxu0 0
      %943 = vmatprep.subr.bf16.mxu0 0
      %944 = vmatpush1.bf16.msra.mxu0 0
      %945 = vmatprep.subr.bf16.mxu0 0
      %946 = vmatpush1.bf16.msra.mxu0 0
      %947 = vmatprep.subr.bf16.mxu0 0
      %948 = vmatpush1.bf16.msra.mxu0 0
      %949 = vmatprep.subr.bf16.mxu0 0
      %950 = vmatpush1.bf16.msra.mxu0 0
      %951 = vmatprep.subr.bf16.mxu0 0
      %952 = vmatpush1.bf16.msra.mxu0 0
      %953 = vmatprep.subr.bf16.mxu0 0
      %954 = vmatpush1.bf16.msra.mxu0 0
      %955 = vmatprep.subr.bf16.mxu0 0
      %956 = vmatpush1.bf16.msra.mxu0 0
      %957 = vmatprep.mubr.bf16.mxu0 0
      %958 = vmatmul.mubr.bf16.gmra.mrb[0].mxu0 %v923
      %v959 = vpop.f32.mrb[0].mxu0
      %v960 = vadd.f32 0.0, %v959
      %v961 = vpop.f32.mrb[0].mxu0
      %v962 = vpop.f32.mrb[0].mxu0
      %v963 = vadd.f32 0.0, %v962
      %v964 = vpop.f32.mrb[0].mxu0
      %965 = vdwg.mxu0
      %v966 = vadd.f32 %v879, %v960
      %v967 = vadd.f32 %v880, %v963
      %v968 = vld [vmem:[%s165 + $0x8] sm:$0x7]
      %s969 = scalar_lea.vmem %s1, 288
      %v970 = vld [vmem:[%s969] sm:$0xf]
      %v971 = vld [vmem:[%s969 + $0x4] sm:$0xf]
      %v972 = vld [vmem:[%s969 + $0x8] sm:$0xf]
      %v973 = vld [vmem:[%s969 + $0xc] sm:$0xf]
      %v974 = vld [vmem:[%s969 + $0x10] sm:$0xf]
      %v975 = vld [vmem:[%s969 + $0x14] sm:$0xf]
      %v976 = vld [vmem:[%s969 + $0x18] sm:$0xf]
      %v977 = vld [vmem:[%s969 + $0x1c] sm:$0xf]
      %v979 = vunpack.c.l.b16 %v968
      %v980 = vpack.c.b16 %v979, %v894
      %v982 = vshrl.u32 %v980, 16
      %v984 = vrot.slane %v982, 1
      %v985 = vshll.u32 %v980, 16
      %v987 = vrot.slane %v985, 2
      %v988 = vor.u32 %v984, %v987
      %v997 = vunpack.c.l.b16 %v970
      %v998 = vunpack.c.l.b16 %v971
      %v999 = vunpack.c.l.b16 %v972
      %v1000 = vunpack.c.l.b16 %v973
      %v1001 = vunpack.c.l.b16 %v974
      %v1002 = vunpack.c.l.b16 %v975
      %v1003 = vunpack.c.l.b16 %v976
      %v1004 = vunpack.c.l.b16 %v977
      %v1005 = vpack.c.b16 %v998, %v997
      %v1006 = vpack.c.b16 %v1000, %v999
      %v1007 = vpack.c.b16 %v1002, %v1001
      %v1008 = vpack.c.b16 %v1004, %v1003
      %v1014 = vsel %vm228, %v988, 0
      %1016 = vmatprep.subr.bf16.mxu0 0
      %1017 = vmatpush1.bf16.msra.mxu0 %v1005
      %1018 = vmatprep.subr.bf16.mxu0 0
      %1019 = vmatpush1.bf16.msra.mxu0 %v1006
      %1020 = vmatprep.subr.bf16.mxu0 0
      %1021 = vmatpush1.bf16.msra.mxu0 %v1007
      %1022 = vmatprep.subr.bf16.mxu0 0
      %1023 = vmatpush1.bf16.msra.mxu0 %v1008
      %1024 = vmatprep.subr.bf16.mxu0 0
      %1025 = vmatpush1.bf16.msra.mxu0 0
      %1026 = vmatprep.subr.bf16.mxu0 0
      %1027 = vmatpush1.bf16.msra.mxu0 0
      %1028 = vmatprep.subr.bf16.mxu0 0
      %1029 = vmatpush1.bf16.msra.mxu0 0
      %1030 = vmatprep.subr.bf16.mxu0 0
      %1031 = vmatpush1.bf16.msra.mxu0 0
      %1032 = vmatprep.subr.bf16.mxu0 0
      %1033 = vmatpush1.bf16.msra.mxu0 0
      %1034 = vmatprep.subr.bf16.mxu0 0
      %1035 = vmatpush1.bf16.msra.mxu0 0
      %1036 = vmatprep.subr.bf16.mxu0 0
      %1037 = vmatpush1.bf16.msra.mxu0 0
      %1038 = vmatprep.subr.bf16.mxu0 0
      %1039 = vmatpush1.bf16.msra.mxu0 0
      %1040 = vmatprep.subr.bf16.mxu0 0
      %1041 = vmatpush1.bf16.msra.mxu0 0
      %1042 = vmatprep.subr.bf16.mxu0 0
      %1043 = vmatpush1.bf16.msra.mxu0 0
      %1044 = vmatprep.subr.bf16.mxu0 0
      %1045 = vmatpush1.bf16.msra.mxu0 0
      %1046 = vmatprep.subr.bf16.mxu0 0
      %1047 = vmatpush1.bf16.msra.mxu0 0
      %1048 = vmatprep.mubr.bf16.mxu0 0
      %1049 = vmatmul.mubr.bf16.gmra.mrb[0].mxu0 %v1014
      %v1050 = vpop.f32.mrb[0].mxu0
      %v1051 = vadd.f32 0.0, %v1050
      %v1052 = vpop.f32.mrb[0].mxu0
      %v1053 = vpop.f32.mrb[0].mxu0
      %v1054 = vadd.f32 0.0, %v1053
      %v1055 = vpop.f32.mrb[0].mxu0
      %1056 = vdwg.mxu0
      %v1057 = vadd.f32 %v966, %v1051
      %v1058 = vadd.f32 %v967, %v1054
      %v1059 = vld [vmem:[%s165 + $0x4] sm:$0xc]
      %s1060 = scalar_lea.vmem %s1, 320
      %v1061 = vld [vmem:[%s1060] sm:$0xf]
      %v1062 = vld [vmem:[%s1060 + $0x4] sm:$0xf]
      %v1063 = vld [vmem:[%s1060 + $0x8] sm:$0xf]
      %v1064 = vld [vmem:[%s1060 + $0xc] sm:$0xf]
      %v1065 = vld [vmem:[%s1060 + $0x10] sm:$0xf]
      %v1066 = vld [vmem:[%s1060 + $0x14] sm:$0xf]
      %v1067 = vld [vmem:[%s1060 + $0x18] sm:$0xf]
      %v1068 = vld [vmem:[%s1060 + $0x1c] sm:$0xf]
      %v1070 = vunpack.c.l.b16 %v1059
      %v1071 = vpack.c.b16 %v979, %v1070
      %v1072 = vrot.slane %v1071, 2
      %v1081 = vunpack.c.l.b16 %v1061
      %v1082 = vunpack.c.l.b16 %v1062
      %v1083 = vunpack.c.l.b16 %v1063
      %v1084 = vunpack.c.l.b16 %v1064
      %v1085 = vunpack.c.l.b16 %v1065
      %v1086 = vunpack.c.l.b16 %v1066
      %v1087 = vunpack.c.l.b16 %v1067
      %v1088 = vunpack.c.l.b16 %v1068
      %v1089 = vpack.c.b16 %v1082, %v1081
      %v1090 = vpack.c.b16 %v1084, %v1083
      %v1091 = vpack.c.b16 %v1086, %v1085
      %v1092 = vpack.c.b16 %v1088, %v1087
      %v1098 = vsel %vm228, %v1072, 0
      %1100 = vmatprep.subr.bf16.mxu0 0
      %1101 = vmatpush1.bf16.msra.mxu0 %v1089
      %1102 = vmatprep.subr.bf16.mxu0 0
      %1103 = vmatpush1.bf16.msra.mxu0 %v1090
      %1104 = vmatprep.subr.bf16.mxu0 0
      %1105 = vmatpush1.bf16.msra.mxu0 %v1091
      %1106 = vmatprep.subr.bf16.mxu0 0
      %1107 = vmatpush1.bf16.msra.mxu0 %v1092
      %1108 = vmatprep.subr.bf16.mxu0 0
      %1109 = vmatpush1.bf16.msra.mxu0 0
      %1110 = vmatprep.subr.bf16.mxu0 0
      %1111 = vmatpush1.bf16.msra.mxu0 0
      %1112 = vmatprep.subr.bf16.mxu0 0
      %1113 = vmatpush1.bf16.msra.mxu0 0
      %1114 = vmatprep.subr.bf16.mxu0 0
      %1115 = vmatpush1.bf16.msra.mxu0 0
      %1116 = vmatprep.subr.bf16.mxu0 0
      %1117 = vmatpush1.bf16.msra.mxu0 0
      %1118 = vmatprep.subr.bf16.mxu0 0
      %1119 = vmatpush1.bf16.msra.mxu0 0
      %1120 = vmatprep.subr.bf16.mxu0 0
      %1121 = vmatpush1.bf16.msra.mxu0 0
      %1122 = vmatprep.subr.bf16.mxu0 0
      %1123 = vmatpush1.bf16.msra.mxu0 0
      %1124 = vmatprep.subr.bf16.mxu0 0
      %1125 = vmatpush1.bf16.msra.mxu0 0
      %1126 = vmatprep.subr.bf16.mxu0 0
      %1127 = vmatpush1.bf16.msra.mxu0 0
      %1128 = vmatprep.subr.bf16.mxu0 0
      %1129 = vmatpush1.bf16.msra.mxu0 0
      %1130 = vmatprep.subr.bf16.mxu0 0
      %1131 = vmatpush1.bf16.msra.mxu0 0
      %1132 = vmatprep.mubr.bf16.mxu0 0
      %1133 = vmatmul.mubr.bf16.gmra.mrb[0].mxu0 %v1098
      %v1134 = vpop.f32.mrb[0].mxu0
      %v1135 = vadd.f32 0.0, %v1134
      %v1136 = vpop.f32.mrb[0].mxu0
      %v1137 = vpop.f32.mrb[0].mxu0
      %v1138 = vadd.f32 0.0, %v1137
      %v1139 = vpop.f32.mrb[0].mxu0
      %1140 = vdwg.mxu0
      %v1141 = vadd.f32 %v1057, %v1135
      %v1142 = vadd.f32 %v1058, %v1138
      %v1143 = vld [vmem:[%s165 + $0x8] sm:$0xf]
      %s1144 = scalar_lea.vmem %s1, 352
      %v1145 = vld [vmem:[%s1144] sm:$0xf]
      %v1146 = vld [vmem:[%s1144 + $0x4] sm:$0xf]
      %v1147 = vld [vmem:[%s1144 + $0x8] sm:$0xf]
      %v1148 = vld [vmem:[%s1144 + $0xc] sm:$0xf]
      %v1149 = vld [vmem:[%s1144 + $0x10] sm:$0xf]
      %v1150 = vld [vmem:[%s1144 + $0x14] sm:$0xf]
      %v1151 = vld [vmem:[%s1144 + $0x18] sm:$0xf]
      %v1152 = vld [vmem:[%s1144 + $0x1c] sm:$0xf]
      %v1154 = vunpack.c.l.b16 %v1143
      %v1155 = vpack.c.b16 %v1154, %v1070
      %v1157 = vshrl.u32 %v1155, 16
      %v1159 = vrot.slane %v1157, 2
      %v1160 = vshll.u32 %v1155, 16
      %v1162 = vrot.slane %v1160, 3
      %v1163 = vor.u32 %v1159, %v1162
      %v1172 = vunpack.c.l.b16 %v1145
      %v1173 = vunpack.c.l.b16 %v1146
      %v1174 = vunpack.c.l.b16 %v1147
      %v1175 = vunpack.c.l.b16 %v1148
      %v1176 = vunpack.c.l.b16 %v1149
      %v1177 = vunpack.c.l.b16 %v1150
      %v1178 = vunpack.c.l.b16 %v1151
      %v1179 = vunpack.c.l.b16 %v1152
      %v1180 = vpack.c.b16 %v1173, %v1172
      %v1181 = vpack.c.b16 %v1175, %v1174
      %v1182 = vpack.c.b16 %v1177, %v1176
      %v1183 = vpack.c.b16 %v1179, %v1178
      %v1189 = vsel %vm228, %v1163, 0
      %1191 = vmatprep.subr.bf16.mxu0 0
      %1192 = vmatpush1.bf16.msra.mxu0 %v1180
      %1193 = vmatprep.subr.bf16.mxu0 0
      %1194 = vmatpush1.bf16.msra.mxu0 %v1181
      %1195 = vmatprep.subr.bf16.mxu0 0
      %1196 = vmatpush1.bf16.msra.mxu0 %v1182
      %1197 = vmatprep.subr.bf16.mxu0 0
      %1198 = vmatpush1.bf16.msra.mxu0 %v1183
      %1199 = vmatprep.subr.bf16.mxu0 0
      %1200 = vmatpush1.bf16.msra.mxu0 0
      %1201 = vmatprep.subr.bf16.mxu0 0
      %1202 = vmatpush1.bf16.msra.mxu0 0
      %1203 = vmatprep.subr.bf16.mxu0 0
      %1204 = vmatpush1.bf16.msra.mxu0 0
      %1205 = vmatprep.subr.bf16.mxu0 0
      %1206 = vmatpush1.bf16.msra.mxu0 0
      %1207 = vmatprep.subr.bf16.mxu0 0
      %1208 = vmatpush1.bf16.msra.mxu0 0
      %1209 = vmatprep.subr.bf16.mxu0 0
      %1210 = vmatpush1.bf16.msra.mxu0 0
      %1211 = vmatprep.subr.bf16.mxu0 0
      %1212 = vmatpush1.bf16.msra.mxu0 0
      %1213 = vmatprep.subr.bf16.mxu0 0
      %1214 = vmatpush1.bf16.msra.mxu0 0
      %1215 = vmatprep.subr.bf16.mxu0 0
      %1216 = vmatpush1.bf16.msra.mxu0 0
      %1217 = vmatprep.subr.bf16.mxu0 0
      %1218 = vmatpush1.bf16.msra.mxu0 0
      %1219 = vmatprep.subr.bf16.mxu0 0
      %1220 = vmatpush1.bf16.msra.mxu0 0
      %1221 = vmatprep.subr.bf16.mxu0 0
      %1222 = vmatpush1.bf16.msra.mxu0 0
      %1223 = vmatprep.mubr.bf16.mxu0 0
      %1224 = vmatmul.mubr.bf16.gmra.mrb[0].mxu0 %v1189
      %v1225 = vpop.f32.mrb[0].mxu0
      %v1226 = vadd.f32 0.0, %v1225
      %v1227 = vpop.f32.mrb[0].mxu0
      %v1228 = vpop.f32.mrb[0].mxu0
      %v1229 = vadd.f32 0.0, %v1228
      %v1230 = vpop.f32.mrb[0].mxu0
      %1231 = vdwg.mxu0
      %v1232 = vadd.f32 %v1141, %v1226
      %v1233 = vadd.f32 %v1142, %v1229
      %v1234 = vld [vmem:[%s165 + $0x4] sm:$0x8]
      %v1235 = vld [vmem:[%s165 + $0x8] sm:$0xf]
      %v1236 = vld [vmem:[%s165 + $0xc] sm:$0x1]
      %s1237 = scalar_lea.vmem %s1, 384
      %v1238 = vld [vmem:[%s1237] sm:$0xf]
      %v1239 = vld [vmem:[%s1237 + $0x4] sm:$0xf]
      %v1240 = vld [vmem:[%s1237 + $0x8] sm:$0xf]
      %v1241 = vld [vmem:[%s1237 + $0xc] sm:$0xf]
      %v1242 = vld [vmem:[%s1237 + $0x10] sm:$0xf]
      %v1243 = vld [vmem:[%s1237 + $0x14] sm:$0xf]
      %v1244 = vld [vmem:[%s1237 + $0x18] sm:$0xf]
      %v1245 = vld [vmem:[%s1237 + $0x1c] sm:$0xf]
      %v1249 = vunpack.c.l.b16 %v1234
      %v1250 = vunpack.c.l.b16 %v1235
      %v1251 = vunpack.c.l.b16 %v1236
      %v1252 = vpack.c.b16 %v1250, %v1249
      %v1253 = vpack.c.b16 %v1251, %v1251
      %v1255 = vshrl.u32 %v1252, 16
      %v1257 = vrot.slane %v1255, 3
      %v1258 = vshll.u32 %v1252, 16
      %v1260 = vrot.slane %v1258, 4
      %v1261 = vor.u32 %v1257, %v1260
      %v1263 = vshll.u32 %v1253, 16
      %v1265 = vrot.slane %v1263, 4
      %v1266 = vsel %vm717, %v1261, %v1265
      %v1275 = vunpack.c.l.b16 %v1238
      %v1276 = vunpack.c.l.b16 %v1239
      %v1277 = vunpack.c.l.b16 %v1240
      %v1278 = vunpack.c.l.b16 %v1241
      %v1279 = vunpack.c.l.b16 %v1242
      %v1280 = vunpack.c.l.b16 %v1243
      %v1281 = vunpack.c.l.b16 %v1244
      %v1282 = vunpack.c.l.b16 %v1245
      %v1283 = vpack.c.b16 %v1276, %v1275
      %v1284 = vpack.c.b16 %v1278, %v1277
      %v1285 = vpack.c.b16 %v1280, %v1279
      %v1286 = vpack.c.b16 %v1282, %v1281
      %v1292 = vsel %vm228, %v1266, 0
      %1294 = vmatprep.subr.bf16.mxu0 0
      %1295 = vmatpush1.bf16.msra.mxu0 %v1283
      %1296 = vmatprep.subr.bf16.mxu0 0
      %1297 = vmatpush1.bf16.msra.mxu0 %v1284
      %1298 = vmatprep.subr.bf16.mxu0 0
      %1299 = vmatpush1.bf16.msra.mxu0 %v1285
      %1300 = vmatprep.subr.bf16.mxu0 0
      %1301 = vmatpush1.bf16.msra.mxu0 %v1286
      %1302 = vmatprep.subr.bf16.mxu0 0
      %1303 = vmatpush1.bf16.msra.mxu0 0
      %1304 = vmatprep.subr.bf16.mxu0 0
      %1305 = vmatpush1.bf16.msra.mxu0 0
      %1306 = vmatprep.subr.bf16.mxu0 0
      %1307 = vmatpush1.bf16.msra.mxu0 0
      %1308 = vmatprep.subr.bf16.mxu0 0
      %1309 = vmatpush1.bf16.msra.mxu0 0
      %1310 = vmatprep.subr.bf16.mxu0 0
      %1311 = vmatpush1.bf16.msra.mxu0 0
      %1312 = vmatprep.subr.bf16.mxu0 0
      %1313 = vmatpush1.bf16.msra.mxu0 0
      %1314 = vmatprep.subr.bf16.mxu0 0
      %1315 = vmatpush1.bf16.msra.mxu0 0
      %1316 = vmatprep.subr.bf16.mxu0 0
      %1317 = vmatpush1.bf16.msra.mxu0 0
      %1318 = vmatprep.subr.bf16.mxu0 0
      %1319 = vmatpush1.bf16.msra.mxu0 0
      %1320 = vmatprep.subr.bf16.mxu0 0
      %1321 = vmatpush1.bf16.msra.mxu0 0
      %1322 = vmatprep.subr.bf16.mxu0 0
      %1323 = vmatpush1.bf16.msra.mxu0 0
      %1324 = vmatprep.subr.bf16.mxu0 0
      %1325 = vmatpush1.bf16.msra.mxu0 0
      %1326 = vmatprep.mubr.bf16.mxu0 0
      %1327 = vmatmul.mubr.bf16.gmra.mrb[0].mxu0 %v1292
      %v1328 = vpop.f32.mrb[0].mxu0
      %v1329 = vadd.f32 0.0, %v1328
      %v1330 = vpop.f32.mrb[0].mxu0
      %v1331 = vpop.f32.mrb[0].mxu0
      %v1332 = vadd.f32 0.0, %v1331
      %v1333 = vpop.f32.mrb[0].mxu0
      %1334 = vdwg.mxu0
      %v1335 = vadd.f32 %v1232, %v1329
      %v1336 = vadd.f32 %v1233, %v1332
      %s1337 = scalar_lea.vmem %s1, 416
      %v1338 = vld [vmem:[%s1337] sm:$0xf]
      %v1339 = vld [vmem:[%s1337 + $0x4] sm:$0xf]
      %v1340 = vld [vmem:[%s1337 + $0x8] sm:$0xf]
      %v1341 = vld [vmem:[%s1337 + $0xc] sm:$0xf]
      %v1342 = vld [vmem:[%s1337 + $0x10] sm:$0xf]
      %v1343 = vld [vmem:[%s1337 + $0x14] sm:$0xf]
      %v1344 = vld [vmem:[%s1337 + $0x18] sm:$0xf]
      %v1345 = vld [vmem:[%s1337 + $0x1c] sm:$0xf]
      %v1346 = vpack.c.b16 %v1251, %v1250
      %v1355 = vunpack.c.l.b16 %v1338
      %v1356 = vunpack.c.l.b16 %v1339
      %v1357 = vunpack.c.l.b16 %v1340
      %v1358 = vunpack.c.l.b16 %v1341
      %v1359 = vunpack.c.l.b16 %v1342
      %v1360 = vunpack.c.l.b16 %v1343
      %v1361 = vunpack.c.l.b16 %v1344
      %v1362 = vunpack.c.l.b16 %v1345
      %v1363 = vpack.c.b16 %v1356, %v1355
      %v1364 = vpack.c.b16 %v1358, %v1357
      %v1365 = vpack.c.b16 %v1360, %v1359
      %v1366 = vpack.c.b16 %v1362, %v1361
      %v1372 = vsel %vm228, %v1346, 0
      %1374 = vmatprep.subr.bf16.mxu0 0
      %1375 = vmatpush1.bf16.msra.mxu0 %v1363
      %1376 = vmatprep.subr.bf16.mxu0 0
      %1377 = vmatpush1.bf16.msra.mxu0 %v1364
      %1378 = vmatprep.subr.bf16.mxu0 0
      %1379 = vmatpush1.bf16.msra.mxu0 %v1365
      %1380 = vmatprep.subr.bf16.mxu0 0
      %1381 = vmatpush1.bf16.msra.mxu0 %v1366
      %1382 = vmatprep.subr.bf16.mxu0 0
      %1383 = vmatpush1.bf16.msra.mxu0 0
      %1384 = vmatprep.subr.bf16.mxu0 0
      %1385 = vmatpush1.bf16.msra.mxu0 0
      %1386 = vmatprep.subr.bf16.mxu0 0
      %1387 = vmatpush1.bf16.msra.mxu0 0
      %1388 = vmatprep.subr.bf16.mxu0 0
      %1389 = vmatpush1.bf16.msra.mxu0 0
      %1390 = vmatprep.subr.bf16.mxu0 0
      %1391 = vmatpush1.bf16.msra.mxu0 0
      %1392 = vmatprep.subr.bf16.mxu0 0
      %1393 = vmatpush1.bf16.msra.mxu0 0
      %1394 = vmatprep.subr.bf16.mxu0 0
      %1395 = vmatpush1.bf16.msra.mxu0 0
      %1396 = vmatprep.subr.bf16.mxu0 0
      %1397 = vmatpush1.bf16.msra.mxu0 0
      %1398 = vmatprep.subr.bf16.mxu0 0
      %1399 = vmatpush1.bf16.msra.mxu0 0
      %1400 = vmatprep.subr.bf16.mxu0 0
      %1401 = vmatpush1.bf16.msra.mxu0 0
      %1402 = vmatprep.subr.bf16.mxu0 0
      %1403 = vmatpush1.bf16.msra.mxu0 0
      %1404 = vmatprep.subr.bf16.mxu0 0
      %1405 = vmatpush1.bf16.msra.mxu0 0
      %1406 = vmatprep.mubr.bf16.mxu0 0
      %1407 = vmatmul.mubr.bf16.gmra.mrb[0].mxu0 %v1372
      %v1408 = vpop.f32.mrb[0].mxu0
      %v1409 = vadd.f32 0.0, %v1408
      %v1410 = vpop.f32.mrb[0].mxu0
      %v1411 = vpop.f32.mrb[0].mxu0
      %v1412 = vadd.f32 0.0, %v1411
      %v1413 = vpop.f32.mrb[0].mxu0
      %1414 = vdwg.mxu0
      %v1415 = vadd.f32 %v1335, %v1409
      %v1416 = vadd.f32 %v1336, %v1412
      %v1417 = vld [vmem:[%s165 + $0xc] sm:$0x3]
      %s1418 = scalar_lea.vmem %s1, 448
      %v1419 = vld [vmem:[%s1418] sm:$0xf]
      %v1420 = vld [vmem:[%s1418 + $0x4] sm:$0xf]
      %v1421 = vld [vmem:[%s1418 + $0x8] sm:$0xf]
      %v1422 = vld [vmem:[%s1418 + $0xc] sm:$0xf]
      %v1423 = vld [vmem:[%s1418 + $0x10] sm:$0xf]
      %v1424 = vld [vmem:[%s1418 + $0x14] sm:$0xf]
      %v1425 = vld [vmem:[%s1418 + $0x18] sm:$0xf]
      %v1426 = vld [vmem:[%s1418 + $0x1c] sm:$0xf]
      %v1428 = vunpack.c.l.b16 %v1417
      %v1429 = vpack.c.b16 %v1428, %v1250
      %v1431 = vshrl.u32 %v1429, 16
      %v1433 = vshll.u32 %v1429, 16
      %v1435 = vrot.slane %v1433, 1
      %v1436 = vor.u32 %v1431, %v1435
      %v1445 = vunpack.c.l.b16 %v1419
      %v1446 = vunpack.c.l.b16 %v1420
      %v1447 = vunpack.c.l.b16 %v1421
      %v1448 = vunpack.c.l.b16 %v1422
      %v1449 = vunpack.c.l.b16 %v1423
      %v1450 = vunpack.c.l.b16 %v1424
      %v1451 = vunpack.c.l.b16 %v1425
      %v1452 = vunpack.c.l.b16 %v1426
      %v1453 = vpack.c.b16 %v1446, %v1445
      %v1454 = vpack.c.b16 %v1448, %v1447
      %v1455 = vpack.c.b16 %v1450, %v1449
      %v1456 = vpack.c.b16 %v1452, %v1451
      %v1462 = vsel %vm228, %v1436, 0
      %1464 = vmatprep.subr.bf16.mxu0 0
      %1465 = vmatpush1.bf16.msra.mxu0 %v1453
      %1466 = vmatprep.subr.bf16.mxu0 0
      %1467 = vmatpush1.bf16.msra.mxu0 %v1454
      %1468 = vmatprep.subr.bf16.mxu0 0
      %1469 = vmatpush1.bf16.msra.mxu0 %v1455
      %1470 = vmatprep.subr.bf16.mxu0 0
      %1471 = vmatpush1.bf16.msra.mxu0 %v1456
      %1472 = vmatprep.subr.bf16.mxu0 0
      %1473 = vmatpush1.bf16.msra.mxu0 0
      %1474 = vmatprep.subr.bf16.mxu0 0
      %1475 = vmatpush1.bf16.msra.mxu0 0
      %1476 = vmatprep.subr.bf16.mxu0 0
      %1477 = vmatpush1.bf16.msra.mxu0 0
      %1478 = vmatprep.subr.bf16.mxu0 0
      %1479 = vmatpush1.bf16.msra.mxu0 0
      %1480 = vmatprep.subr.bf16.mxu0 0
      %1481 = vmatpush1.bf16.msra.mxu0 0
      %1482 = vmatprep.subr.bf16.mxu0 0
      %1483 = vmatpush1.bf16.msra.mxu0 0
      %1484 = vmatprep.subr.bf16.mxu0 0
      %1485 = vmatpush1.bf16.msra.mxu0 0
      %1486 = vmatprep.subr.bf16.mxu0 0
      %1487 = vmatpush1.bf16.msra.mxu0 0
      %1488 = vmatprep.subr.bf16.mxu0 0
      %1489 = vmatpush1.bf16.msra.mxu0 0
      %1490 = vmatprep.subr.bf16.mxu0 0
      %1491 = vmatpush1.bf16.msra.mxu0 0
      %1492 = vmatprep.subr.bf16.mxu0 0
      %1493 = vmatpush1.bf16.msra.mxu0 0
      %1494 = vmatprep.subr.bf16.mxu0 0
      %1495 = vmatpush1.bf16.msra.mxu0 0
      %1496 = vmatprep.mubr.bf16.mxu0 0
      %1497 = vmatmul.mubr.bf16.gmra.mrb[0].mxu0 %v1462
      %v1498 = vpop.f32.mrb[0].mxu0
      %v1499 = vadd.f32 0.0, %v1498
      %v1500 = vpop.f32.mrb[0].mxu0
      %v1501 = vpop.f32.mrb[0].mxu0
      %v1502 = vadd.f32 0.0, %v1501
      %v1503 = vpop.f32.mrb[0].mxu0
      %1504 = vdwg.mxu0
      %v1505 = vadd.f32 %v1415, %v1499
      %v1506 = vadd.f32 %v1416, %v1502
      %v1507 = vld [vmem:[%s165 + $0x8] sm:$0xe]
      %s1508 = scalar_lea.vmem %s1, 480
      %v1509 = vld [vmem:[%s1508] sm:$0xf]
      %v1510 = vld [vmem:[%s1508 + $0x4] sm:$0xf]
      %v1511 = vld [vmem:[%s1508 + $0x8] sm:$0xf]
      %v1512 = vld [vmem:[%s1508 + $0xc] sm:$0xf]
      %v1513 = vld [vmem:[%s1508 + $0x10] sm:$0xf]
      %v1514 = vld [vmem:[%s1508 + $0x14] sm:$0xf]
      %v1515 = vld [vmem:[%s1508 + $0x18] sm:$0xf]
      %v1516 = vld [vmem:[%s1508 + $0x1c] sm:$0xf]
      %v1518 = vunpack.c.l.b16 %v1507
      %v1519 = vpack.c.b16 %v1428, %v1518
      %v1520 = vrot.slane %v1519, 1
      %v1529 = vunpack.c.l.b16 %v1509
      %v1530 = vunpack.c.l.b16 %v1510
      %v1531 = vunpack.c.l.b16 %v1511
      %v1532 = vunpack.c.l.b16 %v1512
      %v1533 = vunpack.c.l.b16 %v1513
      %v1534 = vunpack.c.l.b16 %v1514
      %v1535 = vunpack.c.l.b16 %v1515
      %v1536 = vunpack.c.l.b16 %v1516
      %v1537 = vpack.c.b16 %v1530, %v1529
      %v1538 = vpack.c.b16 %v1532, %v1531
      %v1539 = vpack.c.b16 %v1534, %v1533
      %v1540 = vpack.c.b16 %v1536, %v1535
      %v1546 = vsel %vm228, %v1520, 0
      %1548 = vmatprep.subr.bf16.mxu0 0
      %1549 = vmatpush1.bf16.msra.mxu0 %v1537
      %1550 = vmatprep.subr.bf16.mxu0 0
      %1551 = vmatpush1.bf16.msra.mxu0 %v1538
      %1552 = vmatprep.subr.bf16.mxu0 0
      %1553 = vmatpush1.bf16.msra.mxu0 %v1539
      %1554 = vmatprep.subr.bf16.mxu0 0
      %1555 = vmatpush1.bf16.msra.mxu0 %v1540
      %1556 = vmatprep.subr.bf16.mxu0 0
      %1557 = vmatpush1.bf16.msra.mxu0 0
      %1558 = vmatprep.subr.bf16.mxu0 0
      %1559 = vmatpush1.bf16.msra.mxu0 0
      %1560 = vmatprep.subr.bf16.mxu0 0
      %1561 = vmatpush1.bf16.msra.mxu0 0
      %1562 = vmatprep.subr.bf16.mxu0 0
      %1563 = vmatpush1.bf16.msra.mxu0 0
      %1564 = vmatprep.subr.bf16.mxu0 0
      %1565 = vmatpush1.bf16.msra.mxu0 0
      %1566 = vmatprep.subr.bf16.mxu0 0
      %1567 = vmatpush1.bf16.msra.mxu0 0
      %1568 = vmatprep.subr.bf16.mxu0 0
      %1569 = vmatpush1.bf16.msra.mxu0 0
      %1570 = vmatprep.subr.bf16.mxu0 0
      %1571 = vmatpush1.bf16.msra.mxu0 0
      %1572 = vmatprep.subr.bf16.mxu0 0
      %1573 = vmatpush1.bf16.msra.mxu0 0
      %1574 = vmatprep.subr.bf16.mxu0 0
      %1575 = vmatpush1.bf16.msra.mxu0 0
      %1576 = vmatprep.subr.bf16.mxu0 0
      %1577 = vmatpush1.bf16.msra.mxu0 0
      %1578 = vmatprep.subr.bf16.mxu0 0
      %1579 = vmatpush1.bf16.msra.mxu0 0
      %1580 = vmatprep.mubr.bf16.mxu0 0
      %1581 = vmatmul.mubr.bf16.gmra.mrb[0].mxu0 %v1546
      %v1582 = vpop.f32.mrb[0].mxu0
      %v1583 = vadd.f32 0.0, %v1582
      %v1584 = vpop.f32.mrb[0].mxu0
      %v1585 = vpop.f32.mrb[0].mxu0
      %v1586 = vadd.f32 0.0, %v1585
      %v1587 = vpop.f32.mrb[0].mxu0
      %1588 = vdwg.mxu0
      %v1589 = vadd.f32 %v1505, %v1583
      %v1590 = vadd.f32 %v1506, %v1586
      %v1591 = vld [vmem:[%s2] sm:$0x1]
      %v1593 = vlaneseq
      %v1594 = vshrl.u32 %v1593, 7
      %v1595 = vsub.s32 0, %v1594
      %v1596 = vrot.slane %v1591, %v1595
      %v1598 = vadd.f32 %v1589, %v1596
      %v1599 = vadd.f32 %v1590, %v1596
      %v1600 = vxor.u32 %v1598, 2147483648
      %v1601 = vxor.u32 %v1599, 2147483648
      %v1602 = vmul.f32 %v1600, 1.442695
      %v1603 = vpow.pop %v1602
      %v1604 = vmul.f32 %v1601, 1.442695
      %v1605 = vpow.pop %v1604
      %v1606 = vadd.f32 %v1603, 1.0
      %v1607 = vadd.f32 %v1605, 1.0
      %v1608 = vrcp.pop %v1606
      %v1609 = vmul.f32 1.0, %v1608
      %v1610 = vrcp.pop %v1607
      %v1611 = vmul.f32 1.0, %v1610
      %1612 = vst [vmem:[%s170] sm:$0xff] %v1609
      %1613 = vst [vmem:[%s170 + $0x8] sm:$0x3] %v1611
      %p1614 = scmp.lt.s32.totalorder %s14, 1
      %s1615 = scalar_select %p1614, %s14, 1
      %s1616 = smul.addr %s1615, 2
      %s1617 = smul.addr %s1616, 8
      %s1618 = scalar_lea.vmem %s3, %s1617
      // Predicated region
      $region33: #{d_forward.9} parent=31 // pred_check
        %p1619 = pneg %p100
      $region34: #{d_forward.9} parent=31 // pred_check_branch
        %1621 = sbr.rel (%p1619) target = $region36
      $region35: #{d_forward.9} parent=31 // pred_region
        _
      $region36: #{d_forward.9} parent=31 // pred_fallthru
        _
    $region32: #{d_forward.9} parent=5 // pred_fallthru
      _
    %p1622 = scmp.le.s32.totalorder 2, %s9
    // Predicated region
    $region37: #{d_forward.9} parent=5 // pred_check
      %p1623 = pneg %p1622
    $region38: #{d_forward.9} parent=5 // pred_check_branch
      %1625 = sbr.rel (%p1623) target = $region40
    $region39: #{d_forward.9} parent=5 // pred_region
      %s1626 = ssub.s32 %s9, 2
      // Predicated region
      $region41: #{d_forward.9} parent=39 // pred_check
        %p1627 = pneg %p106
      $region42: #{d_forward.9} parent=39 // pred_check_branch
        %1629 = sbr.rel (%p1627) target = $region44
      $region43: #{d_forward.9} parent=39 // pred_region
        %p1630 = scmp.lt.s32.totalorder %s15, 1
        %s1631 = scalar_select %p1630, %s15, 1
        %s1632 = smul.addr %s1631, 2
        %s1633 = smul.addr %s1632, 8
        %s1634 = scalar_lea.vmem %s3, %s1633
      $region44: #{d_forward.9} parent=39 // pred_fallthru
        _
    $region40: #{d_forward.9} parent=5 // pred_fallthru
      _
  $region6: #{d_forward.9} parent=0 // loop_footer
    %s13 = sadd.s32 1, %s9
  $region7: #{d_forward.9} parent=0 // loop_footer_branch
    %8 = sbr.rel target = $region3
  $region8: #{d_forward.9} parent=0 // loop_exit
    _

</llo_original>
